<compile_context>
chip_gen: v7x
topology: tpu7x:2x2x1
jax: 0.10.0
libtpu: 0.0.40
codegen_flags: <defaults>
</compile_context>

<pallas_src>
import functools

import jax
import jax.numpy as jnp
from jax.experimental import pallas as pl
from jax.experimental.pallas import tpu as pltpu


def _round_up(x, m):
    return ((x + m - 1) // m) * m


def _ds_dense_block_kernel(x_ref, wd_ref, wp_ref, vec_ref, o_ref, plane_ref, *,
                           C, Cpad, depth, H, W, S):
    """Whole DS_DenseBlock for one batch element, lane-dense (channels, H*W) layout.

    x_ref    : (1, C, H*W)            flattened input
    wd_ref   : (depth, Rtot, 9)       depthwise 3x3 taps, Cpad-strided channel slots
    wp_ref   : (depth, C, Rtot)       1x1 conv weights, Cpad-strided / zero-padded
    vec_ref  : (depth, C, 4)          [bp' (dw bias folded in), gamma, beta, alpha]
    o_ref    : (1, C, H*W)            output (written by the last layer only)
    plane_ref: VMEM (Rtot, 2*S+H*W)   merged dense-skip + zero-padded flat plane
    """
    HW = H * W
    Rtot = depth * Cpad
    PADW = plane_ref.shape[1]                       # == 2*S + HW

    # Zero only the halo strips; the middle columns are always written before read.
    plane_ref[:, 0:S] = jnp.zeros((Rtot, S), jnp.float32)
    plane_ref[:, S + HW:] = jnp.zeros((Rtot, PADW - S - HW), jnp.float32)
    if Cpad > C:
        # Inter-slot sublane-padding rows must be zero (their weights are zero, but
        # stale VMEM could hold NaNs on the first invocation).
        for s in range(depth):
            plane_ref[s * Cpad + C:(s + 1) * Cpad, S:S + HW] = (
                jnp.zeros((Cpad - C, HW), jnp.float32))

    # The original input sits in the LAST slot so that layer i's input rows
    # [r0:Rtot) are exactly [y_{i-1}, ..., y_0, x] — the torch.cat channel order.
    plane_ref[(depth - 1) * Cpad:(depth - 1) * Cpad + C, S:S + HW] = (
        x_ref[0].astype(jnp.float32))

    # Row-boundary masks for the w-1 / w+1 taps (zero "same" padding in W).
    wpos = jax.lax.broadcasted_iota(jnp.int32, (1, HW), 1) % W
    mask_l = (wpos != 0).astype(jnp.float32)
    mask_r = (wpos != W - 1).astype(jnp.float32)

    for i in range(depth):
        dil = 2 ** i
        cin_p = Cpad * (i + 1)
        r0 = (depth - 1 - i) * Cpad                 # first plane row of this layer's input

        wd = wd_ref[i, 0:cin_p, :]                  # (cin_p, 9)   channels on sublanes
        wp = wp_ref[i, :, 0:cin_p]                  # (C, cin_p)
        vec = vec_ref[i]                            # (C, 4)

        # ---- depthwise 3x3 conv, dilation (dil, 1), "same" padding ----
        # Accumulate per kw column, mask the w-wraparound once per column.
        acc = None
        for kw in range(3):
            col = None
            for kh in range(3):
                shift = (kh - 1) * dil * W + (kw - 1)
                win = plane_ref[r0:Rtot, S + shift:S + shift + HW]
                t = win * wd[:, kh * 3 + kw:kh * 3 + kw + 1]
                col = t if col is None else col + t
            if kw == 0:
                col = col * mask_l
            elif kw == 2:
                col = col * mask_r
            acc = col if acc is None else acc + col

        # ---- pointwise 1x1 conv: (C, cin_p) @ (cin_p, H*W) on the MXU ----
        pw = jax.lax.dot_general(wp, acc, (((1,), (0,)), ((), ())),
                                 preferred_element_type=jnp.float32,
                                 precision=jax.lax.Precision.HIGHEST)
        pw = pw + vec[:, 0:1]                       # folded pointwise+depthwise bias

        # ---- InstanceNorm2d(C, affine=True), eps=1e-5, single-pass stats ----
        mean = jnp.mean(pw, axis=-1, keepdims=True)
        msq = jnp.mean(pw * pw, axis=-1, keepdims=True)
        var = msq - mean * mean
        y = (pw - mean) * jax.lax.rsqrt(var + 1e-5)
        y = y * vec[:, 1:2] + vec[:, 2:3]

        # ---- PReLU (per-channel slope) ----
        y = jnp.where(y >= 0, y, vec[:, 3:4] * y)

        if i < depth - 1:
            s = depth - 2 - i
            plane_ref[s * Cpad:s * Cpad + C, S:S + HW] = y
        else:
            o_ref[0] = y.astype(o_ref.dtype)


def _pack_params(params, C, depth, Cpad):
    """Pack natural per-layer params into Cpad-strided flat tables; fold dw bias."""
    Rtot = depth * Cpad
    wd_all = jnp.zeros((depth, Rtot, 9), jnp.float32)
    wp_all = jnp.zeros((depth, C, Rtot), jnp.float32)
    vec_all = jnp.zeros((depth, C, 4), jnp.float32)
    for i, p in enumerate(params):
        cin = C * (i + 1)
        wd = p['wd'].reshape(cin, 9)
        bp_f = p['bp'] + p['wp'] @ p['bd']          # fold depthwise bias (exact)
        for j in range(i + 1):
            wd_all = wd_all.at[i, j * Cpad:j * Cpad + C, :].set(wd[j * C:(j + 1) * C])
            wp_all = wp_all.at[i, :, j * Cpad:j * Cpad + C].set(
                p['wp'][:, j * C:(j + 1) * C])
        vec_all = vec_all.at[i].set(
            jnp.stack([bp_f, p['gamma'], p['beta'], p['alpha']], axis=-1))
    return wd_all, wp_all, vec_all


def ds_dense_block(x, params):
    """DS_DenseBlock.forward.  x: (B, C, H, W) -> (B, C, H, W)."""
    B, C, H, W = x.shape
    depth = len(params)
    HW = H * W
    Cpad = _round_up(C, 8)                          # sublane-aligned channel-slot stride
    Rtot = depth * Cpad
    S = _round_up((2 ** (depth - 1)) * W + 1, 128)  # lane-aligned halo, >= max |tap shift|
    PADW = 2 * S + HW

    wd_all, wp_all, vec_all = _pack_params(params, C, depth, Cpad)

    kernel = functools.partial(_ds_dense_block_kernel,
                               C=C, Cpad=Cpad, depth=depth, H=H, W=W, S=S)

    out_flat = pl.pallas_call(
        kernel,
        out_shape=jax.ShapeDtypeStruct((B, C, HW), x.dtype),
        grid_spec=pltpu.PrefetchScalarGridSpec(
            num_scalar_prefetch=0,
            grid=(B,),
            in_specs=[
                pl.BlockSpec((1, C, HW), lambda b: (b, 0, 0)),
                pl.BlockSpec((depth, Rtot, 9), lambda b: (0, 0, 0)),
                pl.BlockSpec((depth, C, Rtot), lambda b: (0, 0, 0)),
                pl.BlockSpec((depth, C, 4), lambda b: (0, 0, 0)),
            ],
            out_specs=pl.BlockSpec((1, C, HW), lambda b: (b, 0, 0)),
            scratch_shapes=[
                pltpu.VMEM((Rtot, PADW), jnp.float32),   # merged skip + padded plane
            ],
        ),
        compiler_params=pltpu.CompilerParams(
            dimension_semantics=("parallel",)),
    )(x.reshape(B, C, HW), wd_all, wp_all, vec_all)
    return out_flat.reshape(B, C, H, W)


def init_params(key, dense_channel, depth):
    """Deterministic synthetic parameters in natural (PyTorch-like) shapes."""
    C = dense_channel
    params = []
    for i in range(depth):
        cin = C * (i + 1)
        ks = jax.random.split(jax.random.fold_in(key, i), 6)
        params.append(dict(
            wd=0.3 * jax.random.normal(ks[0], (cin, 3, 3), jnp.float32),
            bd=0.05 * jax.random.normal(ks[1], (cin,), jnp.float32),
            wp=0.3 * jax.random.normal(ks[2], (C, cin), jnp.float32),
            bp=0.05 * jax.random.normal(ks[3], (C,), jnp.float32),
            gamma=1.0 + 0.1 * jax.random.normal(ks[4], (C,), jnp.float32),
            beta=0.1 * jax.random.normal(ks[5], (C,), jnp.float32),
            alpha=jnp.full((C,), 0.25, jnp.float32),     # PReLU default init
        ))
    return params


def ds_dense_block_ref(x, params):
    """Pure-JAX reference of DS_DenseBlock.forward (NCHW, PyTorch semantics)."""
    B, C, H, W = x.shape
    skip = x
    out = x
    for i, p in enumerate(params):
        dil = 2 ** i
        cin = skip.shape[1]
        xp = jnp.pad(skip, ((0, 0), (0, 0), (dil, dil), (1, 1)))
        acc = jnp.zeros((B, cin, H, W), jnp.float32)
        for kh in range(3):
            for kw in range(3):
                acc = acc + (xp[:, :, kh * dil:kh * dil + H, kw:kw + W]
                             * p['wd'][:, kh, kw][None, :, None, None])
        acc = acc + p['bd'][None, :, None, None]
        pw = jnp.einsum('oc,bchw->bohw', p['wp'], acc,
                        precision=jax.lax.Precision.HIGHEST)
        pw = pw + p['bp'][None, :, None, None]
        mean = pw.mean(axis=(2, 3), keepdims=True)
        var = ((pw - mean) ** 2).mean(axis=(2, 3), keepdims=True)
        y = (pw - mean) * jax.lax.rsqrt(var + 1e-5)
        y = p['gamma'][None, :, None, None] * y + p['beta'][None, :, None, None]
        y = jnp.where(y >= 0, y, p['alpha'][None, :, None, None] * y)
        out = y
        skip = jnp.concatenate([y, skip], axis=1)
    return out


if __name__ == "__main__":
    B, C, H, W = 2, 4, 16, 16   # dense_channel = 4
    depth = 4

    key = jax.random.PRNGKey(0)
    kx, kp = jax.random.split(key)
    x = jax.random.normal(kx, (B, C, H, W), jnp.float32)
    params = init_params(kp, C, depth)

    y = ds_dense_block(x, params)
    y = jax.block_until_ready(y)

    assert y.shape == (B, C, H, W), y.shape
    assert bool(jnp.all(jnp.isfinite(y)))

    y_ref = jax.block_until_ready(ds_dense_block_ref(x, params))
    err = float(jnp.max(jnp.abs(y - y_ref)))
    assert err < 5e-2, f"max abs err vs reference: {err}"

    print("KERNEL_OK")
</pallas_src>

<mosaic_0001>
module attributes {stable_mosaic.version = 11 : i64} {
  func.func @_ds_dense_block_kernel(%arg0: i32, %arg1: memref<1x4x256xf32, #tpu.memory_space<vmem>>, %arg2: memref<4x32x9xf32, #tpu.memory_space<vmem>>, %arg3: memref<4x4x32xf32, #tpu.memory_space<vmem>>, %arg4: memref<4x4x4xf32, #tpu.memory_space<vmem>>, %arg5: memref<1x4x256xf32, #tpu.memory_space<vmem>>, %arg6: memref<32x768xf32, #tpu.memory_space<vmem>>) attributes {dimension_semantics = [#tpu.dimension_semantics<parallel>], iteration_bounds = array<i64: 2>, scalar_prefetch = 0 : i64, scratch_operands = 1 : i64, tpu.core_type = #tpu.core_type<tc>, window_params = [{transform_indices = @transform_0, window_bounds = array<i64: 1, 4, 256>}, {pipeline_mode = #tpu.pipeline_mode<synchronous>, transform_indices = @transform_1, window_bounds = array<i64: 4, 32, 9>}, {pipeline_mode = #tpu.pipeline_mode<synchronous>, transform_indices = @transform_2, window_bounds = array<i64: 4, 4, 32>}, {pipeline_mode = #tpu.pipeline_mode<synchronous>, transform_indices = @transform_3, window_bounds = array<i64: 4, 4, 4>}, {transform_indices = @transform_4, window_bounds = array<i64: 1, 4, 256>}]} {
    %cst = arith.constant 0.000000e+00 : f32
    %0 = vector.broadcast %cst : f32 to vector<32x256xf32>
    %c0 = arith.constant 0 : index
    %c0_0 = arith.constant 0 : index
    %1 = vector.load %arg6[%c0, %c0_0] : memref<32x768xf32, #tpu.memory_space<vmem>>, vector<32x256xf32>
    tpu.vector_store %arg6[%c0, %c0_0], %0 {strides = array<i32>} : memref<32x768xf32, #tpu.memory_space<vmem>>, vector<32x256xf32>,
    %cst_1 = arith.constant 0.000000e+00 : f32
    %2 = vector.broadcast %cst_1 : f32 to vector<32x256xf32>
    %c0_2 = arith.constant 0 : index
    %c512 = arith.constant 512 : index
    %3 = vector.load %arg6[%c0_2, %c512] : memref<32x768xf32, #tpu.memory_space<vmem>>, vector<32x256xf32>
    tpu.vector_store %arg6[%c0_2, %c512], %2 {strides = array<i32>} : memref<32x768xf32, #tpu.memory_space<vmem>>, vector<32x256xf32>,
    %cst_3 = arith.constant 0.000000e+00 : f32
    %4 = vector.broadcast %cst_3 : f32 to vector<4x256xf32>
    %c4 = arith.constant 4 : index
    %c256 = arith.constant 256 : index
    %5 = vector.load %arg6[%c4, %c256] : memref<32x768xf32, #tpu.memory_space<vmem>>, vector<4x256xf32>
    tpu.vector_store %arg6[%c4, %c256], %4 {strides = array<i32>} : memref<32x768xf32, #tpu.memory_space<vmem>>, vector<4x256xf32>,
    %cst_4 = arith.constant 0.000000e+00 : f32
    %6 = vector.broadcast %cst_4 : f32 to vector<4x256xf32>
    %c12 = arith.constant 12 : index
    %c256_5 = arith.constant 256 : index
    %7 = vector.load %arg6[%c12, %c256_5] : memref<32x768xf32, #tpu.memory_space<vmem>>, vector<4x256xf32>
    tpu.vector_store %arg6[%c12, %c256_5], %6 {strides = array<i32>} : memref<32x768xf32, #tpu.memory_space<vmem>>, vector<4x256xf32>,
    %cst_6 = arith.constant 0.000000e+00 : f32
    %8 = vector.broadcast %cst_6 : f32 to vector<4x256xf32>
    %c20 = arith.constant 20 : index
    %c256_7 = arith.constant 256 : index
    %9 = vector.load %arg6[%c20, %c256_7] : memref<32x768xf32, #tpu.memory_space<vmem>>, vector<4x256xf32>
    tpu.vector_store %arg6[%c20, %c256_7], %8 {strides = array<i32>} : memref<32x768xf32, #tpu.memory_space<vmem>>, vector<4x256xf32>,
    %cst_8 = arith.constant 0.000000e+00 : f32
    %10 = vector.broadcast %cst_8 : f32 to vector<4x256xf32>
    %c28 = arith.constant 28 : index
    %c256_9 = arith.constant 256 : index
    %11 = vector.load %arg6[%c28, %c256_9] : memref<32x768xf32, #tpu.memory_space<vmem>>, vector<4x256xf32>
    tpu.vector_store %arg6[%c28, %c256_9], %10 {strides = array<i32>} : memref<32x768xf32, #tpu.memory_space<vmem>>, vector<4x256xf32>,
    %c0_10 = arith.constant 0 : index
    %c0_11 = arith.constant 0 : index
    %c0_12 = arith.constant 0 : index
    %12 = vector.load %arg1[%c0_10, %c0_11, %c0_12] : memref<1x4x256xf32, #tpu.memory_space<vmem>>, vector<1x4x256xf32>
    %13 = vector.shape_cast %12 : vector<1x4x256xf32> to vector<4x256xf32>
    %c24 = arith.constant 24 : index
    %c256_13 = arith.constant 256 : index
    %14 = vector.load %arg6[%c24, %c256_13] : memref<32x768xf32, #tpu.memory_space<vmem>>, vector<4x256xf32>
    tpu.vector_store %arg6[%c24, %c256_13], %13 {strides = array<i32>} : memref<32x768xf32, #tpu.memory_space<vmem>>, vector<4x256xf32>,
    %15 = tpu.iota {dimensions = array<i32: 1>} : vector<1x256xi32>
    %c16_i32 = arith.constant 16 : i32
    %c0_i32 = arith.constant 0 : i32
    %16 = arith.cmpi eq, %c16_i32, %c0_i32 : i32
    %c1_i32 = arith.constant 1 : i32
    %17 = arith.select %16, %c1_i32, %c16_i32 : i32
    %18 = vector.broadcast %17 : i32 to vector<1x256xi32>
    %19 = arith.remsi %15, %18 : vector<1x256xi32>
    %c0_i32_14 = arith.constant 0 : i32
    %20 = vector.broadcast %c0_i32_14 : i32 to vector<1x256xi32>
    %21 = arith.cmpi ne, %19, %20 : vector<1x256xi32>
    %c0_i32_15 = arith.constant 0 : i32
    %22 = vector.broadcast %c0_i32_15 : i32 to vector<1x256xi32>
    %23 = arith.cmpi slt, %19, %22 : vector<1x256xi32>
    %c0_i32_16 = arith.constant 0 : i32
    %24 = arith.cmpi slt, %17, %c0_i32_16 : i32
    %25 = vector.broadcast %24 : i1 to vector<1x256xi1>
    %26 = vector.broadcast %25 : vector<1x256xi1> to vector<1x256xi1>
    %27 = arith.xori %23, %26 : vector<1x256xi1>
    %28 = arith.andi %27, %21 : vector<1x256xi1>
    %29 = vector.broadcast %17 : i32 to vector<1x256xi32>
    %30 = arith.addi %19, %29 : vector<1x256xi32>
    %31 = arith.select %28, %30, %19 : vector<1x256xi1>, vector<1x256xi32>
    %c0_i32_17 = arith.constant 0 : i32
    %32 = vector.broadcast %c0_i32_17 : i32 to vector<1x256xi32>
    %33 = arith.cmpi ne, %31, %32 : vector<1x256xi32>
    %34 = arith.extui %33 : vector<1x256xi1> to vector<1x256xi32>
    %35 = arith.sitofp %34 : vector<1x256xi32> to vector<1x256xf32>
    %c15_i32 = arith.constant 15 : i32
    %36 = vector.broadcast %c15_i32 : i32 to vector<1x256xi32>
    %37 = arith.cmpi ne, %31, %36 : vector<1x256xi32>
    %38 = arith.extui %37 : vector<1x256xi1> to vector<1x256xi32>
    %39 = arith.sitofp %38 : vector<1x256xi32> to vector<1x256xf32>
    %c0_18 = arith.constant 0 : index
    %c0_19 = arith.constant 0 : index
    %c0_20 = arith.constant 0 : index
    %40 = vector.load %arg2[%c0_18, %c0_19, %c0_20] : memref<4x32x9xf32, #tpu.memory_space<vmem>>, vector<1x8x9xf32>
    %41 = vector.shape_cast %40 : vector<1x8x9xf32> to vector<8x9xf32>
    %c0_21 = arith.constant 0 : index
    %c0_22 = arith.constant 0 : index
    %c0_23 = arith.constant 0 : index
    %42 = vector.load %arg3[%c0_21, %c0_22, %c0_23] : memref<4x4x32xf32, #tpu.memory_space<vmem>>, vector<1x4x8xf32>
    %43 = vector.shape_cast %42 : vector<1x4x8xf32> to vector<4x8xf32>
    %c0_24 = arith.constant 0 : index
    %c0_25 = arith.constant 0 : index
    %c0_26 = arith.constant 0 : index
    %44 = vector.load %arg4[%c0_24, %c0_25, %c0_26] : memref<4x4x4xf32, #tpu.memory_space<vmem>>, vector<1x4x4xf32>
    %45 = vector.shape_cast %44 : vector<1x4x4xf32> to vector<4x4xf32>
    %c24_27 = arith.constant 24 : index
    %c239 = arith.constant 239 : index
    %46 = vector.load %arg6[%c24_27, %c239] : memref<32x768xf32, #tpu.memory_space<vmem>>, vector<8x256xf32>
    %47 = vector.extract_strided_slice %41 {offsets = [0, 0], sizes = [8, 1], strides = [1, 1]} : vector<8x9xf32> to vector<8x1xf32>
    %48 = vector.broadcast %47 : vector<8x1xf32> to vector<8x256xf32>
    %49 = arith.mulf %46, %48 : vector<8x256xf32>
    %c24_28 = arith.constant 24 : index
    %c255 = arith.constant 255 : index
    %50 = vector.load %arg6[%c24_28, %c255] : memref<32x768xf32, #tpu.memory_space<vmem>>, vector<8x256xf32>
    %51 = vector.extract_strided_slice %41 {offsets = [0, 3], sizes = [8, 1], strides = [1, 1]} : vector<8x9xf32> to vector<8x1xf32>
    %52 = vector.broadcast %51 : vector<8x1xf32> to vector<8x256xf32>
    %53 = arith.mulf %50, %52 : vector<8x256xf32>
    %54 = arith.addf %49, %53 : vector<8x256xf32>
    %c24_29 = arith.constant 24 : index
    %c271 = arith.constant 271 : index
    %55 = vector.load %arg6[%c24_29, %c271] : memref<32x768xf32, #tpu.memory_space<vmem>>, vector<8x256xf32>
    %56 = vector.extract_strided_slice %41 {offsets = [0, 6], sizes = [8, 1], strides = [1, 1]} : vector<8x9xf32> to vector<8x1xf32>
    %57 = vector.broadcast %56 : vector<8x1xf32> to vector<8x256xf32>
    %58 = arith.mulf %55, %57 : vector<8x256xf32>
    %59 = arith.addf %54, %58 : vector<8x256xf32>
    %60 = vector.broadcast %35 : vector<1x256xf32> to vector<8x256xf32>
    %61 = arith.mulf %59, %60 : vector<8x256xf32>
    %c24_30 = arith.constant 24 : index
    %c240 = arith.constant 240 : index
    %62 = vector.load %arg6[%c24_30, %c240] : memref<32x768xf32, #tpu.memory_space<vmem>>, vector<8x256xf32>
    %63 = vector.extract_strided_slice %41 {offsets = [0, 1], sizes = [8, 1], strides = [1, 1]} : vector<8x9xf32> to vector<8x1xf32>
    %64 = vector.broadcast %63 : vector<8x1xf32> to vector<8x256xf32>
    %65 = arith.mulf %62, %64 : vector<8x256xf32>
    %c24_31 = arith.constant 24 : index
    %c256_32 = arith.constant 256 : index
    %66 = vector.load %arg6[%c24_31, %c256_32] : memref<32x768xf32, #tpu.memory_space<vmem>>, vector<8x256xf32>
    %67 = vector.extract_strided_slice %41 {offsets = [0, 4], sizes = [8, 1], strides = [1, 1]} : vector<8x9xf32> to vector<8x1xf32>
    %68 = vector.broadcast %67 : vector<8x1xf32> to vector<8x256xf32>
    %69 = arith.mulf %66, %68 : vector<8x256xf32>
    %70 = arith.addf %65, %69 : vector<8x256xf32>
    %c24_33 = arith.constant 24 : index
    %c272 = arith.constant 272 : index
    %71 = vector.load %arg6[%c24_33, %c272] : memref<32x768xf32, #tpu.memory_space<vmem>>, vector<8x256xf32>
    %72 = vector.extract_strided_slice %41 {offsets = [0, 7], sizes = [8, 1], strides = [1, 1]} : vector<8x9xf32> to vector<8x1xf32>
    %73 = vector.broadcast %72 : vector<8x1xf32> to vector<8x256xf32>
    %74 = arith.mulf %71, %73 : vector<8x256xf32>
    %75 = arith.addf %70, %74 : vector<8x256xf32>
    %76 = arith.addf %61, %75 : vector<8x256xf32>
    %c24_34 = arith.constant 24 : index
    %c241 = arith.constant 241 : index
    %77 = vector.load %arg6[%c24_34, %c241] : memref<32x768xf32, #tpu.memory_space<vmem>>, vector<8x256xf32>
    %78 = vector.extract_strided_slice %41 {offsets = [0, 2], sizes = [8, 1], strides = [1, 1]} : vector<8x9xf32> to vector<8x1xf32>
    %79 = vector.broadcast %78 : vector<8x1xf32> to vector<8x256xf32>
    %80 = arith.mulf %77, %79 : vector<8x256xf32>
    %c24_35 = arith.constant 24 : index
    %c257 = arith.constant 257 : index
    %81 = vector.load %arg6[%c24_35, %c257] : memref<32x768xf32, #tpu.memory_space<vmem>>, vector<8x256xf32>
    %82 = vector.extract_strided_slice %41 {offsets = [0, 5], sizes = [8, 1], strides = [1, 1]} : vector<8x9xf32> to vector<8x1xf32>
    %83 = vector.broadcast %82 : vector<8x1xf32> to vector<8x256xf32>
    %84 = arith.mulf %81, %83 : vector<8x256xf32>
    %85 = arith.addf %80, %84 : vector<8x256xf32>
    %c24_36 = arith.constant 24 : index
    %c273 = arith.constant 273 : index
    %86 = vector.load %arg6[%c24_36, %c273] : memref<32x768xf32, #tpu.memory_space<vmem>>, vector<8x256xf32>
    %87 = vector.extract_strided_slice %41 {offsets = [0, 8], sizes = [8, 1], strides = [1, 1]} : vector<8x9xf32> to vector<8x1xf32>
    %88 = vector.broadcast %87 : vector<8x1xf32> to vector<8x256xf32>
    %89 = arith.mulf %86, %88 : vector<8x256xf32>
    %90 = arith.addf %85, %89 : vector<8x256xf32>
    %91 = vector.broadcast %39 : vector<1x256xf32> to vector<8x256xf32>
    %92 = arith.mulf %90, %91 : vector<8x256xf32>
    %93 = arith.addf %76, %92 : vector<8x256xf32>
    %cst_37 = arith.constant dense<0.000000e+00> : vector<4x256xf32>
    %94 = tpu.matmul %43, %93, %cst_37 {dimension_numbers = #tpu.dot_dimension_numbers<[1], [0], [0], [1], [0, 0, 1, 1], [], []>, precision = #tpu.contract_precision<fp32>} : vector<4x8xf32>, vector<8x256xf32>, vector<4x256xf32> -> vector<4x256xf32>
    %95 = vector.extract_strided_slice %45 {offsets = [0, 0], sizes = [4, 1], strides = [1, 1]} : vector<4x4xf32> to vector<4x1xf32>
    %96 = vector.broadcast %95 : vector<4x1xf32> to vector<4x256xf32>
    %97 = arith.addf %94, %96 : vector<4x256xf32>
    %cst_38 = arith.constant dense<0.000000e+00> : vector<4xf32>
    %98 = vector.multi_reduction <add>, %97, %cst_38 [1] : vector<4x256xf32> to vector<4xf32>
    %99 = vector.shape_cast %98 : vector<4xf32> to vector<4x1xf32>
    %cst_39 = arith.constant 2.560000e+02 : f32
    %100 = vector.broadcast %cst_39 : f32 to vector<4x1xf32>
    %101 = arith.divf %99, %100 : vector<4x1xf32>
    %102 = arith.mulf %97, %97 : vector<4x256xf32>
    %cst_40 = arith.constant dense<0.000000e+00> : vector<4xf32>
    %103 = vector.multi_reduction <add>, %102, %cst_40 [1] : vector<4x256xf32> to vector<4xf32>
    %104 = vector.shape_cast %103 : vector<4xf32> to vector<4x1xf32>
    %cst_41 = arith.constant 2.560000e+02 : f32
    %105 = vector.broadcast %cst_41 : f32 to vector<4x1xf32>
    %106 = arith.divf %104, %105 : vector<4x1xf32>
    %107 = arith.mulf %101, %101 : vector<4x1xf32>
    %108 = arith.subf %106, %107 : vector<4x1xf32>
    %109 = vector.broadcast %101 : vector<4x1xf32> to vector<4x256xf32>
    %110 = arith.subf %97, %109 : vector<4x256xf32>
    %cst_42 = arith.constant 9.99999974E-6 : f32
    %111 = vector.broadcast %cst_42 : f32 to vector<4x1xf32>
    %112 = arith.addf %108, %111 : vector<4x1xf32>
    %113 = math.rsqrt %112 : vector<4x1xf32>
    %114 = vector.broadcast %113 : vector<4x1xf32> to vector<4x256xf32>
    %115 = arith.mulf %110, %114 : vector<4x256xf32>
    %116 = vector.extract_strided_slice %45 {offsets = [0, 1], sizes = [4, 1], strides = [1, 1]} : vector<4x4xf32> to vector<4x1xf32>
    %117 = vector.broadcast %116 : vector<4x1xf32> to vector<4x256xf32>
    %118 = arith.mulf %115, %117 : vector<4x256xf32>
    %119 = vector.extract_strided_slice %45 {offsets = [0, 2], sizes = [4, 1], strides = [1, 1]} : vector<4x4xf32> to vector<4x1xf32>
    %120 = vector.broadcast %119 : vector<4x1xf32> to vector<4x256xf32>
    %121 = arith.addf %118, %120 : vector<4x256xf32>
    %cst_43 = arith.constant 0.000000e+00 : f32
    %122 = vector.broadcast %cst_43 : f32 to vector<4x256xf32>
    %123 = arith.cmpf oge, %121, %122 : vector<4x256xf32>
    %124 = vector.extract_strided_slice %45 {offsets = [0, 3], sizes = [4, 1], strides = [1, 1]} : vector<4x4xf32> to vector<4x1xf32>
    %125 = vector.broadcast %124 : vector<4x1xf32> to vector<4x256xf32>
    %126 = arith.mulf %125, %121 : vector<4x256xf32>
    %127 = arith.select %123, %121, %126 : vector<4x256xi1>, vector<4x256xf32>
    %c16 = arith.constant 16 : index
    %c256_44 = arith.constant 256 : index
    %128 = vector.load %arg6[%c16, %c256_44] : memref<32x768xf32, #tpu.memory_space<vmem>>, vector<4x256xf32>
    tpu.vector_store %arg6[%c16, %c256_44], %127 {strides = array<i32>} : memref<32x768xf32, #tpu.memory_space<vmem>>, vector<4x256xf32>,
    %c1 = arith.constant 1 : index
    %c0_45 = arith.constant 0 : index
    %c0_46 = arith.constant 0 : index
    %129 = vector.load %arg2[%c1, %c0_45, %c0_46] : memref<4x32x9xf32, #tpu.memory_space<vmem>>, vector<1x16x9xf32>
    %130 = vector.shape_cast %129 : vector<1x16x9xf32> to vector<16x9xf32>
    %c1_47 = arith.constant 1 : index
    %c0_48 = arith.constant 0 : index
    %c0_49 = arith.constant 0 : index
    %131 = vector.load %arg3[%c1_47, %c0_48, %c0_49] : memref<4x4x32xf32, #tpu.memory_space<vmem>>, vector<1x4x16xf32>
    %132 = vector.shape_cast %131 : vector<1x4x16xf32> to vector<4x16xf32>
    %c1_50 = arith.constant 1 : index
    %c0_51 = arith.constant 0 : index
    %c0_52 = arith.constant 0 : index
    %133 = vector.load %arg4[%c1_50, %c0_51, %c0_52] : memref<4x4x4xf32, #tpu.memory_space<vmem>>, vector<1x4x4xf32>
    %134 = vector.shape_cast %133 : vector<1x4x4xf32> to vector<4x4xf32>
    %c16_53 = arith.constant 16 : index
    %c223 = arith.constant 223 : index
    %135 = vector.load %arg6[%c16_53, %c223] : memref<32x768xf32, #tpu.memory_space<vmem>>, vector<16x256xf32>
    %136 = vector.extract_strided_slice %130 {offsets = [0, 0], sizes = [16, 1], strides = [1, 1]} : vector<16x9xf32> to vector<16x1xf32>
    %137 = vector.broadcast %136 : vector<16x1xf32> to vector<16x256xf32>
    %138 = arith.mulf %135, %137 : vector<16x256xf32>
    %c16_54 = arith.constant 16 : index
    %c255_55 = arith.constant 255 : index
    %139 = vector.load %arg6[%c16_54, %c255_55] : memref<32x768xf32, #tpu.memory_space<vmem>>, vector<16x256xf32>
    %140 = vector.extract_strided_slice %130 {offsets = [0, 3], sizes = [16, 1], strides = [1, 1]} : vector<16x9xf32> to vector<16x1xf32>
    %141 = vector.broadcast %140 : vector<16x1xf32> to vector<16x256xf32>
    %142 = arith.mulf %139, %141 : vector<16x256xf32>
    %143 = arith.addf %138, %142 : vector<16x256xf32>
    %c16_56 = arith.constant 16 : index
    %c287 = arith.constant 287 : index
    %144 = vector.load %arg6[%c16_56, %c287] : memref<32x768xf32, #tpu.memory_space<vmem>>, vector<16x256xf32>
    %145 = vector.extract_strided_slice %130 {offsets = [0, 6], sizes = [16, 1], strides = [1, 1]} : vector<16x9xf32> to vector<16x1xf32>
    %146 = vector.broadcast %145 : vector<16x1xf32> to vector<16x256xf32>
    %147 = arith.mulf %144, %146 : vector<16x256xf32>
    %148 = arith.addf %143, %147 : vector<16x256xf32>
    %149 = vector.broadcast %35 : vector<1x256xf32> to vector<16x256xf32>
    %150 = arith.mulf %148, %149 : vector<16x256xf32>
    %c16_57 = arith.constant 16 : index
    %c224 = arith.constant 224 : index
    %151 = vector.load %arg6[%c16_57, %c224] : memref<32x768xf32, #tpu.memory_space<vmem>>, vector<16x256xf32>
    %152 = vector.extract_strided_slice %130 {offsets = [0, 1], sizes = [16, 1], strides = [1, 1]} : vector<16x9xf32> to vector<16x1xf32>
    %153 = vector.broadcast %152 : vector<16x1xf32> to vector<16x256xf32>
    %154 = arith.mulf %151, %153 : vector<16x256xf32>
    %c16_58 = arith.constant 16 : index
    %c256_59 = arith.constant 256 : index
    %155 = vector.load %arg6[%c16_58, %c256_59] : memref<32x768xf32, #tpu.memory_space<vmem>>, vector<16x256xf32>
    %156 = vector.extract_strided_slice %130 {offsets = [0, 4], sizes = [16, 1], strides = [1, 1]} : vector<16x9xf32> to vector<16x1xf32>
    %157 = vector.broadcast %156 : vector<16x1xf32> to vector<16x256xf32>
    %158 = arith.mulf %155, %157 : vector<16x256xf32>
    %159 = arith.addf %154, %158 : vector<16x256xf32>
    %c16_60 = arith.constant 16 : index
    %c288 = arith.constant 288 : index
    %160 = vector.load %arg6[%c16_60, %c288] : memref<32x768xf32, #tpu.memory_space<vmem>>, vector<16x256xf32>
    %161 = vector.extract_strided_slice %130 {offsets = [0, 7], sizes = [16, 1], strides = [1, 1]} : vector<16x9xf32> to vector<16x1xf32>
    %162 = vector.broadcast %161 : vector<16x1xf32> to vector<16x256xf32>
    %163 = arith.mulf %160, %162 : vector<16x256xf32>
    %164 = arith.addf %159, %163 : vector<16x256xf32>
    %165 = arith.addf %150, %164 : vector<16x256xf32>
    %c16_61 = arith.constant 16 : index
    %c225 = arith.constant 225 : index
    %166 = vector.load %arg6[%c16_61, %c225] : memref<32x768xf32, #tpu.memory_space<vmem>>, vector<16x256xf32>
    %167 = vector.extract_strided_slice %130 {offsets = [0, 2], sizes = [16, 1], strides = [1, 1]} : vector<16x9xf32> to vector<16x1xf32>
    %168 = vector.broadcast %167 : vector<16x1xf32> to vector<16x256xf32>
    %169 = arith.mulf %166, %168 : vector<16x256xf32>
    %c16_62 = arith.constant 16 : index
    %c257_63 = arith.constant 257 : index
    %170 = vector.load %arg6[%c16_62, %c257_63] : memref<32x768xf32, #tpu.memory_space<vmem>>, vector<16x256xf32>
    %171 = vector.extract_strided_slice %130 {offsets = [0, 5], sizes = [16, 1], strides = [1, 1]} : vector<16x9xf32> to vector<16x1xf32>
    %172 = vector.broadcast %171 : vector<16x1xf32> to vector<16x256xf32>
    %173 = arith.mulf %170, %172 : vector<16x256xf32>
    %174 = arith.addf %169, %173 : vector<16x256xf32>
    %c16_64 = arith.constant 16 : index
    %c289 = arith.constant 289 : index
    %175 = vector.load %arg6[%c16_64, %c289] : memref<32x768xf32, #tpu.memory_space<vmem>>, vector<16x256xf32>
    %176 = vector.extract_strided_slice %130 {offsets = [0, 8], sizes = [16, 1], strides = [1, 1]} : vector<16x9xf32> to vector<16x1xf32>
    %177 = vector.broadcast %176 : vector<16x1xf32> to vector<16x256xf32>
    %178 = arith.mulf %175, %177 : vector<16x256xf32>
    %179 = arith.addf %174, %178 : vector<16x256xf32>
    %180 = vector.broadcast %39 : vector<1x256xf32> to vector<16x256xf32>
    %181 = arith.mulf %179, %180 : vector<16x256xf32>
    %182 = arith.addf %165, %181 : vector<16x256xf32>
    %cst_65 = arith.constant dense<0.000000e+00> : vector<4x256xf32>
    %183 = tpu.matmul %132, %182, %cst_65 {dimension_numbers = #tpu.dot_dimension_numbers<[1], [0], [0], [1], [0, 0, 1, 1], [], []>, precision = #tpu.contract_precision<fp32>} : vector<4x16xf32>, vector<16x256xf32>, vector<4x256xf32> -> vector<4x256xf32>
    %184 = vector.extract_strided_slice %134 {offsets = [0, 0], sizes = [4, 1], strides = [1, 1]} : vector<4x4xf32> to vector<4x1xf32>
    %185 = vector.broadcast %184 : vector<4x1xf32> to vector<4x256xf32>
    %186 = arith.addf %183, %185 : vector<4x256xf32>
    %cst_66 = arith.constant dense<0.000000e+00> : vector<4xf32>
    %187 = vector.multi_reduction <add>, %186, %cst_66 [1] : vector<4x256xf32> to vector<4xf32>
    %188 = vector.shape_cast %187 : vector<4xf32> to vector<4x1xf32>
    %cst_67 = arith.constant 2.560000e+02 : f32
    %189 = vector.broadcast %cst_67 : f32 to vector<4x1xf32>
    %190 = arith.divf %188, %189 : vector<4x1xf32>
    %191 = arith.mulf %186, %186 : vector<4x256xf32>
    %cst_68 = arith.constant dense<0.000000e+00> : vector<4xf32>
    %192 = vector.multi_reduction <add>, %191, %cst_68 [1] : vector<4x256xf32> to vector<4xf32>
    %193 = vector.shape_cast %192 : vector<4xf32> to vector<4x1xf32>
    %cst_69 = arith.constant 2.560000e+02 : f32
    %194 = vector.broadcast %cst_69 : f32 to vector<4x1xf32>
    %195 = arith.divf %193, %194 : vector<4x1xf32>
    %196 = arith.mulf %190, %190 : vector<4x1xf32>
    %197 = arith.subf %195, %196 : vector<4x1xf32>
    %198 = vector.broadcast %190 : vector<4x1xf32> to vector<4x256xf32>
    %199 = arith.subf %186, %198 : vector<4x256xf32>
    %cst_70 = arith.constant 9.99999974E-6 : f32
    %200 = vector.broadcast %cst_70 : f32 to vector<4x1xf32>
    %201 = arith.addf %197, %200 : vector<4x1xf32>
    %202 = math.rsqrt %201 : vector<4x1xf32>
    %203 = vector.broadcast %202 : vector<4x1xf32> to vector<4x256xf32>
    %204 = arith.mulf %199, %203 : vector<4x256xf32>
    %205 = vector.extract_strided_slice %134 {offsets = [0, 1], sizes = [4, 1], strides = [1, 1]} : vector<4x4xf32> to vector<4x1xf32>
    %206 = vector.broadcast %205 : vector<4x1xf32> to vector<4x256xf32>
    %207 = arith.mulf %204, %206 : vector<4x256xf32>
    %208 = vector.extract_strided_slice %134 {offsets = [0, 2], sizes = [4, 1], strides = [1, 1]} : vector<4x4xf32> to vector<4x1xf32>
    %209 = vector.broadcast %208 : vector<4x1xf32> to vector<4x256xf32>
    %210 = arith.addf %207, %209 : vector<4x256xf32>
    %cst_71 = arith.constant 0.000000e+00 : f32
    %211 = vector.broadcast %cst_71 : f32 to vector<4x256xf32>
    %212 = arith.cmpf oge, %210, %211 : vector<4x256xf32>
    %213 = vector.extract_strided_slice %134 {offsets = [0, 3], sizes = [4, 1], strides = [1, 1]} : vector<4x4xf32> to vector<4x1xf32>
    %214 = vector.broadcast %213 : vector<4x1xf32> to vector<4x256xf32>
    %215 = arith.mulf %214, %210 : vector<4x256xf32>
    %216 = arith.select %212, %210, %215 : vector<4x256xi1>, vector<4x256xf32>
    %c8 = arith.constant 8 : index
    %c256_72 = arith.constant 256 : index
    %217 = vector.load %arg6[%c8, %c256_72] : memref<32x768xf32, #tpu.memory_space<vmem>>, vector<4x256xf32>
    tpu.vector_store %arg6[%c8, %c256_72], %216 {strides = array<i32>} : memref<32x768xf32, #tpu.memory_space<vmem>>, vector<4x256xf32>,
    %c2 = arith.constant 2 : index
    %c0_73 = arith.constant 0 : index
    %c0_74 = arith.constant 0 : index
    %218 = vector.load %arg2[%c2, %c0_73, %c0_74] : memref<4x32x9xf32, #tpu.memory_space<vmem>>, vector<1x24x9xf32>
    %219 = vector.shape_cast %218 : vector<1x24x9xf32> to vector<24x9xf32>
    %c2_75 = arith.constant 2 : index
    %c0_76 = arith.constant 0 : index
    %c0_77 = arith.constant 0 : index
    %220 = vector.load %arg3[%c2_75, %c0_76, %c0_77] : memref<4x4x32xf32, #tpu.memory_space<vmem>>, vector<1x4x24xf32>
    %221 = vector.shape_cast %220 : vector<1x4x24xf32> to vector<4x24xf32>
    %c2_78 = arith.constant 2 : index
    %c0_79 = arith.constant 0 : index
    %c0_80 = arith.constant 0 : index
    %222 = vector.load %arg4[%c2_78, %c0_79, %c0_80] : memref<4x4x4xf32, #tpu.memory_space<vmem>>, vector<1x4x4xf32>
    %223 = vector.shape_cast %222 : vector<1x4x4xf32> to vector<4x4xf32>
    %c8_81 = arith.constant 8 : index
    %c191 = arith.constant 191 : index
    %224 = vector.load %arg6[%c8_81, %c191] : memref<32x768xf32, #tpu.memory_space<vmem>>, vector<24x256xf32>
    %225 = vector.extract_strided_slice %219 {offsets = [0, 0], sizes = [24, 1], strides = [1, 1]} : vector<24x9xf32> to vector<24x1xf32>
    %226 = vector.broadcast %225 : vector<24x1xf32> to vector<24x256xf32>
    %227 = arith.mulf %224, %226 : vector<24x256xf32>
    %c8_82 = arith.constant 8 : index
    %c255_83 = arith.constant 255 : index
    %228 = vector.load %arg6[%c8_82, %c255_83] : memref<32x768xf32, #tpu.memory_space<vmem>>, vector<24x256xf32>
    %229 = vector.extract_strided_slice %219 {offsets = [0, 3], sizes = [24, 1], strides = [1, 1]} : vector<24x9xf32> to vector<24x1xf32>
    %230 = vector.broadcast %229 : vector<24x1xf32> to vector<24x256xf32>
    %231 = arith.mulf %228, %230 : vector<24x256xf32>
    %232 = arith.addf %227, %231 : vector<24x256xf32>
    %c8_84 = arith.constant 8 : index
    %c319 = arith.constant 319 : index
    %233 = vector.load %arg6[%c8_84, %c319] : memref<32x768xf32, #tpu.memory_space<vmem>>, vector<24x256xf32>
    %234 = vector.extract_strided_slice %219 {offsets = [0, 6], sizes = [24, 1], strides = [1, 1]} : vector<24x9xf32> to vector<24x1xf32>
    %235 = vector.broadcast %234 : vector<24x1xf32> to vector<24x256xf32>
    %236 = arith.mulf %233, %235 : vector<24x256xf32>
    %237 = arith.addf %232, %236 : vector<24x256xf32>
    %238 = vector.broadcast %35 : vector<1x256xf32> to vector<24x256xf32>
    %239 = arith.mulf %237, %238 : vector<24x256xf32>
    %c8_85 = arith.constant 8 : index
    %c192 = arith.constant 192 : index
    %240 = vector.load %arg6[%c8_85, %c192] : memref<32x768xf32, #tpu.memory_space<vmem>>, vector<24x256xf32>
    %241 = vector.extract_strided_slice %219 {offsets = [0, 1], sizes = [24, 1], strides = [1, 1]} : vector<24x9xf32> to vector<24x1xf32>
    %242 = vector.broadcast %241 : vector<24x1xf32> to vector<24x256xf32>
    %243 = arith.mulf %240, %242 : vector<24x256xf32>
    %c8_86 = arith.constant 8 : index
    %c256_87 = arith.constant 256 : index
    %244 = vector.load %arg6[%c8_86, %c256_87] : memref<32x768xf32, #tpu.memory_space<vmem>>, vector<24x256xf32>
    %245 = vector.extract_strided_slice %219 {offsets = [0, 4], sizes = [24, 1], strides = [1, 1]} : vector<24x9xf32> to vector<24x1xf32>
    %246 = vector.broadcast %245 : vector<24x1xf32> to vector<24x256xf32>
    %247 = arith.mulf %244, %246 : vector<24x256xf32>
    %248 = arith.addf %243, %247 : vector<24x256xf32>
    %c8_88 = arith.constant 8 : index
    %c320 = arith.constant 320 : index
    %249 = vector.load %arg6[%c8_88, %c320] : memref<32x768xf32, #tpu.memory_space<vmem>>, vector<24x256xf32>
    %250 = vector.extract_strided_slice %219 {offsets = [0, 7], sizes = [24, 1], strides = [1, 1]} : vector<24x9xf32> to vector<24x1xf32>
    %251 = vector.broadcast %250 : vector<24x1xf32> to vector<24x256xf32>
    %252 = arith.mulf %249, %251 : vector<24x256xf32>
    %253 = arith.addf %248, %252 : vector<24x256xf32>
    %254 = arith.addf %239, %253 : vector<24x256xf32>
    %c8_89 = arith.constant 8 : index
    %c193 = arith.constant 193 : index
    %255 = vector.load %arg6[%c8_89, %c193] : memref<32x768xf32, #tpu.memory_space<vmem>>, vector<24x256xf32>
    %256 = vector.extract_strided_slice %219 {offsets = [0, 2], sizes = [24, 1], strides = [1, 1]} : vector<24x9xf32> to vector<24x1xf32>
    %257 = vector.broadcast %256 : vector<24x1xf32> to vector<24x256xf32>
    %258 = arith.mulf %255, %257 : vector<24x256xf32>
    %c8_90 = arith.constant 8 : index
    %c257_91 = arith.constant 257 : index
    %259 = vector.load %arg6[%c8_90, %c257_91] : memref<32x768xf32, #tpu.memory_space<vmem>>, vector<24x256xf32>
    %260 = vector.extract_strided_slice %219 {offsets = [0, 5], sizes = [24, 1], strides = [1, 1]} : vector<24x9xf32> to vector<24x1xf32>
    %261 = vector.broadcast %260 : vector<24x1xf32> to vector<24x256xf32>
    %262 = arith.mulf %259, %261 : vector<24x256xf32>
    %263 = arith.addf %258, %262 : vector<24x256xf32>
    %c8_92 = arith.constant 8 : index
    %c321 = arith.constant 321 : index
    %264 = vector.load %arg6[%c8_92, %c321] : memref<32x768xf32, #tpu.memory_space<vmem>>, vector<24x256xf32>
    %265 = vector.extract_strided_slice %219 {offsets = [0, 8], sizes = [24, 1], strides = [1, 1]} : vector<24x9xf32> to vector<24x1xf32>
    %266 = vector.broadcast %265 : vector<24x1xf32> to vector<24x256xf32>
    %267 = arith.mulf %264, %266 : vector<24x256xf32>
    %268 = arith.addf %263, %267 : vector<24x256xf32>
    %269 = vector.broadcast %39 : vector<1x256xf32> to vector<24x256xf32>
    %270 = arith.mulf %268, %269 : vector<24x256xf32>
    %271 = arith.addf %254, %270 : vector<24x256xf32>
    %cst_93 = arith.constant dense<0.000000e+00> : vector<4x256xf32>
    %272 = tpu.matmul %221, %271, %cst_93 {dimension_numbers = #tpu.dot_dimension_numbers<[1], [0], [0], [1], [0, 0, 1, 1], [], []>, precision = #tpu.contract_precision<fp32>} : vector<4x24xf32>, vector<24x256xf32>, vector<4x256xf32> -> vector<4x256xf32>
    %273 = vector.extract_strided_slice %223 {offsets = [0, 0], sizes = [4, 1], strides = [1, 1]} : vector<4x4xf32> to vector<4x1xf32>
    %274 = vector.broadcast %273 : vector<4x1xf32> to vector<4x256xf32>
    %275 = arith.addf %272, %274 : vector<4x256xf32>
    %cst_94 = arith.constant dense<0.000000e+00> : vector<4xf32>
    %276 = vector.multi_reduction <add>, %275, %cst_94 [1] : vector<4x256xf32> to vector<4xf32>
    %277 = vector.shape_cast %276 : vector<4xf32> to vector<4x1xf32>
    %cst_95 = arith.constant 2.560000e+02 : f32
    %278 = vector.broadcast %cst_95 : f32 to vector<4x1xf32>
    %279 = arith.divf %277, %278 : vector<4x1xf32>
    %280 = arith.mulf %275, %275 : vector<4x256xf32>
    %cst_96 = arith.constant dense<0.000000e+00> : vector<4xf32>
    %281 = vector.multi_reduction <add>, %280, %cst_96 [1] : vector<4x256xf32> to vector<4xf32>
    %282 = vector.shape_cast %281 : vector<4xf32> to vector<4x1xf32>
    %cst_97 = arith.constant 2.560000e+02 : f32
    %283 = vector.broadcast %cst_97 : f32 to vector<4x1xf32>
    %284 = arith.divf %282, %283 : vector<4x1xf32>
    %285 = arith.mulf %279, %279 : vector<4x1xf32>
    %286 = arith.subf %284, %285 : vector<4x1xf32>
    %287 = vector.broadcast %279 : vector<4x1xf32> to vector<4x256xf32>
    %288 = arith.subf %275, %287 : vector<4x256xf32>
    %cst_98 = arith.constant 9.99999974E-6 : f32
    %289 = vector.broadcast %cst_98 : f32 to vector<4x1xf32>
    %290 = arith.addf %286, %289 : vector<4x1xf32>
    %291 = math.rsqrt %290 : vector<4x1xf32>
    %292 = vector.broadcast %291 : vector<4x1xf32> to vector<4x256xf32>
    %293 = arith.mulf %288, %292 : vector<4x256xf32>
    %294 = vector.extract_strided_slice %223 {offsets = [0, 1], sizes = [4, 1], strides = [1, 1]} : vector<4x4xf32> to vector<4x1xf32>
    %295 = vector.broadcast %294 : vector<4x1xf32> to vector<4x256xf32>
    %296 = arith.mulf %293, %295 : vector<4x256xf32>
    %297 = vector.extract_strided_slice %223 {offsets = [0, 2], sizes = [4, 1], strides = [1, 1]} : vector<4x4xf32> to vector<4x1xf32>
    %298 = vector.broadcast %297 : vector<4x1xf32> to vector<4x256xf32>
    %299 = arith.addf %296, %298 : vector<4x256xf32>
    %cst_99 = arith.constant 0.000000e+00 : f32
    %300 = vector.broadcast %cst_99 : f32 to vector<4x256xf32>
    %301 = arith.cmpf oge, %299, %300 : vector<4x256xf32>
    %302 = vector.extract_strided_slice %223 {offsets = [0, 3], sizes = [4, 1], strides = [1, 1]} : vector<4x4xf32> to vector<4x1xf32>
    %303 = vector.broadcast %302 : vector<4x1xf32> to vector<4x256xf32>
    %304 = arith.mulf %303, %299 : vector<4x256xf32>
    %305 = arith.select %301, %299, %304 : vector<4x256xi1>, vector<4x256xf32>
    %c0_100 = arith.constant 0 : index
    %c256_101 = arith.constant 256 : index
    %306 = vector.load %arg6[%c0_100, %c256_101] : memref<32x768xf32, #tpu.memory_space<vmem>>, vector<4x256xf32>
    tpu.vector_store %arg6[%c0_100, %c256_101], %305 {strides = array<i32>} : memref<32x768xf32, #tpu.memory_space<vmem>>, vector<4x256xf32>,
    %c3 = arith.constant 3 : index
    %c0_102 = arith.constant 0 : index
    %c0_103 = arith.constant 0 : index
    %307 = vector.load %arg2[%c3, %c0_102, %c0_103] : memref<4x32x9xf32, #tpu.memory_space<vmem>>, vector<1x32x9xf32>
    %308 = vector.shape_cast %307 : vector<1x32x9xf32> to vector<32x9xf32>
    %c3_104 = arith.constant 3 : index
    %c0_105 = arith.constant 0 : index
    %c0_106 = arith.constant 0 : index
    %309 = vector.load %arg3[%c3_104, %c0_105, %c0_106] : memref<4x4x32xf32, #tpu.memory_space<vmem>>, vector<1x4x32xf32>
    %310 = vector.shape_cast %309 : vector<1x4x32xf32> to vector<4x32xf32>
    %c3_107 = arith.constant 3 : index
    %c0_108 = arith.constant 0 : index
    %c0_109 = arith.constant 0 : index
    %311 = vector.load %arg4[%c3_107, %c0_108, %c0_109] : memref<4x4x4xf32, #tpu.memory_space<vmem>>, vector<1x4x4xf32>
    %312 = vector.shape_cast %311 : vector<1x4x4xf32> to vector<4x4xf32>
    %c0_110 = arith.constant 0 : index
    %c127 = arith.constant 127 : index
    %313 = vector.load %arg6[%c0_110, %c127] : memref<32x768xf32, #tpu.memory_space<vmem>>, vector<32x256xf32>
    %314 = vector.extract_strided_slice %308 {offsets = [0, 0], sizes = [32, 1], strides = [1, 1]} : vector<32x9xf32> to vector<32x1xf32>
    %315 = vector.broadcast %314 : vector<32x1xf32> to vector<32x256xf32>
    %316 = arith.mulf %313, %315 : vector<32x256xf32>
    %c0_111 = arith.constant 0 : index
    %c255_112 = arith.constant 255 : index
    %317 = vector.load %arg6[%c0_111, %c255_112] : memref<32x768xf32, #tpu.memory_space<vmem>>, vector<32x256xf32>
    %318 = vector.extract_strided_slice %308 {offsets = [0, 3], sizes = [32, 1], strides = [1, 1]} : vector<32x9xf32> to vector<32x1xf32>
    %319 = vector.broadcast %318 : vector<32x1xf32> to vector<32x256xf32>
    %320 = arith.mulf %317, %319 : vector<32x256xf32>
    %321 = arith.addf %316, %320 : vector<32x256xf32>
    %c0_113 = arith.constant 0 : index
    %c383 = arith.constant 383 : index
    %322 = vector.load %arg6[%c0_113, %c383] : memref<32x768xf32, #tpu.memory_space<vmem>>, vector<32x256xf32>
    %323 = vector.extract_strided_slice %308 {offsets = [0, 6], sizes = [32, 1], strides = [1, 1]} : vector<32x9xf32> to vector<32x1xf32>
    %324 = vector.broadcast %323 : vector<32x1xf32> to vector<32x256xf32>
    %325 = arith.mulf %322, %324 : vector<32x256xf32>
    %326 = arith.addf %321, %325 : vector<32x256xf32>
    %327 = vector.broadcast %35 : vector<1x256xf32> to vector<32x256xf32>
    %328 = arith.mulf %326, %327 : vector<32x256xf32>
    %c0_114 = arith.constant 0 : index
    %c128 = arith.constant 128 : index
    %329 = vector.load %arg6[%c0_114, %c128] : memref<32x768xf32, #tpu.memory_space<vmem>>, vector<32x256xf32>
    %330 = vector.extract_strided_slice %308 {offsets = [0, 1], sizes = [32, 1], strides = [1, 1]} : vector<32x9xf32> to vector<32x1xf32>
    %331 = vector.broadcast %330 : vector<32x1xf32> to vector<32x256xf32>
    %332 = arith.mulf %329, %331 : vector<32x256xf32>
    %c0_115 = arith.constant 0 : index
    %c256_116 = arith.constant 256 : index
    %333 = vector.load %arg6[%c0_115, %c256_116] : memref<32x768xf32, #tpu.memory_space<vmem>>, vector<32x256xf32>
    %334 = vector.extract_strided_slice %308 {offsets = [0, 4], sizes = [32, 1], strides = [1, 1]} : vector<32x9xf32> to vector<32x1xf32>
    %335 = vector.broadcast %334 : vector<32x1xf32> to vector<32x256xf32>
    %336 = arith.mulf %333, %335 : vector<32x256xf32>
    %337 = arith.addf %332, %336 : vector<32x256xf32>
    %c0_117 = arith.constant 0 : index
    %c384 = arith.constant 384 : index
    %338 = vector.load %arg6[%c0_117, %c384] : memref<32x768xf32, #tpu.memory_space<vmem>>, vector<32x256xf32>
    %339 = vector.extract_strided_slice %308 {offsets = [0, 7], sizes = [32, 1], strides = [1, 1]} : vector<32x9xf32> to vector<32x1xf32>
    %340 = vector.broadcast %339 : vector<32x1xf32> to vector<32x256xf32>
    %341 = arith.mulf %338, %340 : vector<32x256xf32>
    %342 = arith.addf %337, %341 : vector<32x256xf32>
    %343 = arith.addf %328, %342 : vector<32x256xf32>
    %c0_118 = arith.constant 0 : index
    %c129 = arith.constant 129 : index
    %344 = vector.load %arg6[%c0_118, %c129] : memref<32x768xf32, #tpu.memory_space<vmem>>, vector<32x256xf32>
    %345 = vector.extract_strided_slice %308 {offsets = [0, 2], sizes = [32, 1], strides = [1, 1]} : vector<32x9xf32> to vector<32x1xf32>
    %346 = vector.broadcast %345 : vector<32x1xf32> to vector<32x256xf32>
    %347 = arith.mulf %344, %346 : vector<32x256xf32>
    %c0_119 = arith.constant 0 : index
    %c257_120 = arith.constant 257 : index
    %348 = vector.load %arg6[%c0_119, %c257_120] : memref<32x768xf32, #tpu.memory_space<vmem>>, vector<32x256xf32>
    %349 = vector.extract_strided_slice %308 {offsets = [0, 5], sizes = [32, 1], strides = [1, 1]} : vector<32x9xf32> to vector<32x1xf32>
    %350 = vector.broadcast %349 : vector<32x1xf32> to vector<32x256xf32>
    %351 = arith.mulf %348, %350 : vector<32x256xf32>
    %352 = arith.addf %347, %351 : vector<32x256xf32>
    %c0_121 = arith.constant 0 : index
    %c385 = arith.constant 385 : index
    %353 = vector.load %arg6[%c0_121, %c385] : memref<32x768xf32, #tpu.memory_space<vmem>>, vector<32x256xf32>
    %354 = vector.extract_strided_slice %308 {offsets = [0, 8], sizes = [32, 1], strides = [1, 1]} : vector<32x9xf32> to vector<32x1xf32>
    %355 = vector.broadcast %354 : vector<32x1xf32> to vector<32x256xf32>
    %356 = arith.mulf %353, %355 : vector<32x256xf32>
    %357 = arith.addf %352, %356 : vector<32x256xf32>
    %358 = vector.broadcast %39 : vector<1x256xf32> to vector<32x256xf32>
    %359 = arith.mulf %357, %358 : vector<32x256xf32>
    %360 = arith.addf %343, %359 : vector<32x256xf32>
    %cst_122 = arith.constant dense<0.000000e+00> : vector<4x256xf32>
    %361 = tpu.matmul %310, %360, %cst_122 {dimension_numbers = #tpu.dot_dimension_numbers<[1], [0], [0], [1], [0, 0, 1, 1], [], []>, precision = #tpu.contract_precision<fp32>} : vector<4x32xf32>, vector<32x256xf32>, vector<4x256xf32> -> vector<4x256xf32>
    %362 = vector.extract_strided_slice %312 {offsets = [0, 0], sizes = [4, 1], strides = [1, 1]} : vector<4x4xf32> to vector<4x1xf32>
    %363 = vector.broadcast %362 : vector<4x1xf32> to vector<4x256xf32>
    %364 = arith.addf %361, %363 : vector<4x256xf32>
    %cst_123 = arith.constant dense<0.000000e+00> : vector<4xf32>
    %365 = vector.multi_reduction <add>, %364, %cst_123 [1] : vector<4x256xf32> to vector<4xf32>
    %366 = vector.shape_cast %365 : vector<4xf32> to vector<4x1xf32>
    %cst_124 = arith.constant 2.560000e+02 : f32
    %367 = vector.broadcast %cst_124 : f32 to vector<4x1xf32>
    %368 = arith.divf %366, %367 : vector<4x1xf32>
    %369 = arith.mulf %364, %364 : vector<4x256xf32>
    %cst_125 = arith.constant dense<0.000000e+00> : vector<4xf32>
    %370 = vector.multi_reduction <add>, %369, %cst_125 [1] : vector<4x256xf32> to vector<4xf32>
    %371 = vector.shape_cast %370 : vector<4xf32> to vector<4x1xf32>
    %cst_126 = arith.constant 2.560000e+02 : f32
    %372 = vector.broadcast %cst_126 : f32 to vector<4x1xf32>
    %373 = arith.divf %371, %372 : vector<4x1xf32>
    %374 = arith.mulf %368, %368 : vector<4x1xf32>
    %375 = arith.subf %373, %374 : vector<4x1xf32>
    %376 = vector.broadcast %368 : vector<4x1xf32> to vector<4x256xf32>
    %377 = arith.subf %364, %376 : vector<4x256xf32>
    %cst_127 = arith.constant 9.99999974E-6 : f32
    %378 = vector.broadcast %cst_127 : f32 to vector<4x1xf32>
    %379 = arith.addf %375, %378 : vector<4x1xf32>
    %380 = math.rsqrt %379 : vector<4x1xf32>
    %381 = vector.broadcast %380 : vector<4x1xf32> to vector<4x256xf32>
    %382 = arith.mulf %377, %381 : vector<4x256xf32>
    %383 = vector.extract_strided_slice %312 {offsets = [0, 1], sizes = [4, 1], strides = [1, 1]} : vector<4x4xf32> to vector<4x1xf32>
    %384 = vector.broadcast %383 : vector<4x1xf32> to vector<4x256xf32>
    %385 = arith.mulf %382, %384 : vector<4x256xf32>
    %386 = vector.extract_strided_slice %312 {offsets = [0, 2], sizes = [4, 1], strides = [1, 1]} : vector<4x4xf32> to vector<4x1xf32>
    %387 = vector.broadcast %386 : vector<4x1xf32> to vector<4x256xf32>
    %388 = arith.addf %385, %387 : vector<4x256xf32>
    %cst_128 = arith.constant 0.000000e+00 : f32
    %389 = vector.broadcast %cst_128 : f32 to vector<4x256xf32>
    %390 = arith.cmpf oge, %388, %389 : vector<4x256xf32>
    %391 = vector.extract_strided_slice %312 {offsets = [0, 3], sizes = [4, 1], strides = [1, 1]} : vector<4x4xf32> to vector<4x1xf32>
    %392 = vector.broadcast %391 : vector<4x1xf32> to vector<4x256xf32>
    %393 = arith.mulf %392, %388 : vector<4x256xf32>
    %394 = arith.select %390, %388, %393 : vector<4x256xi1>, vector<4x256xf32>
    %c0_129 = arith.constant 0 : index
    %c0_130 = arith.constant 0 : index
    %c0_131 = arith.constant 0 : index
    %395 = vector.load %arg5[%c0_129, %c0_130, %c0_131] : memref<1x4x256xf32, #tpu.memory_space<vmem>>, vector<1x4x256xf32>
    %396 = vector.shape_cast %395 : vector<1x4x256xf32> to vector<4x256xf32>
    %397 = vector.shape_cast %394 : vector<4x256xf32> to vector<1x4x256xf32>
    tpu.vector_store %arg5[%c0_129, %c0_130, %c0_131], %397 {strides = array<i32>} : memref<1x4x256xf32, #tpu.memory_space<vmem>>, vector<1x4x256xf32>,
    return
  }
  func.func @transform_0(%arg0: i32) -> (i32, i32, i32) {
    %c0_i32 = arith.constant 0 : i32
    %c0_i32_0 = arith.constant 0 : i32
    %c0_i32_1 = arith.constant 0 : i32
    return %arg0, %c0_i32, %c0_i32_0 : i32, i32, i32
  }
  func.func @transform_1(%arg0: i32) -> (i32, i32, i32) {
    %c0_i32 = arith.constant 0 : i32
    %c0_i32_0 = arith.constant 0 : i32
    %c0_i32_1 = arith.constant 0 : i32
    %c0_i32_2 = arith.constant 0 : i32
    return %c0_i32, %c0_i32_0, %c0_i32_1 : i32, i32, i32
  }
  func.func @transform_2(%arg0: i32) -> (i32, i32, i32) {
    %c0_i32 = arith.constant 0 : i32
    %c0_i32_0 = arith.constant 0 : i32
    %c0_i32_1 = arith.constant 0 : i32
    %c0_i32_2 = arith.constant 0 : i32
    return %c0_i32, %c0_i32_0, %c0_i32_1 : i32, i32, i32
  }
  func.func @transform_3(%arg0: i32) -> (i32, i32, i32) {
    %c0_i32 = arith.constant 0 : i32
    %c0_i32_0 = arith.constant 0 : i32
    %c0_i32_1 = arith.constant 0 : i32
    %c0_i32_2 = arith.constant 0 : i32
    return %c0_i32, %c0_i32_0, %c0_i32_1 : i32, i32, i32
  }
  func.func @transform_4(%arg0: i32) -> (i32, i32, i32) {
    %c0_i32 = arith.constant 0 : i32
    %c0_i32_0 = arith.constant 0 : i32
    %c0_i32_1 = arith.constant 0 : i32
    return %arg0, %c0_i32, %c0_i32_0 : i32, i32, i32
  }
}

</mosaic_0001>

<llo_original>
// kernel: tpu_custom_call.1
$region0: #{tpu_custom_call.1}
  #allocation0 [shape = 'u32[]', space=smem, size = 0x4, offset = 0x4, fixed_abs, tag = 'smem constant byte address 0x4 - core index']
  #allocation1 [shape = 'u32[144,128]{1,0:T(1,128)}', space=vmem, size = 0x12000, scoped, tag = 'internal scratch']
  #allocation2 [shape = 'f32[32,768]{1,0:T(8,128)}', space=vmem, size = 0x18000, scoped, tag = 'scratch operand']
  %s0 = inlined_call_operand.vmem [shape: f32[2,4,256], index: 0, kind: input, shape index: {}]
  %s1 = inlined_call_operand.vmem [shape: f32[4,32,9], index: 1, kind: input, shape index: {}]
  %s2 = inlined_call_operand.vmem [shape: f32[4,4,32], index: 2, kind: input, shape index: {}]
  %s3 = inlined_call_operand.vmem [shape: f32[4,4,4], index: 3, kind: input, shape index: {}]
  %s4 = inlined_call_operand.hbm [shape: f32[2,4,256], index: 4, kind: output, shape index: {}]
  %s5 = sld [smem:[#allocation0]]
  $region49: #{tpu_custom_call.1} parent=0
    _
  %s7 = ssub.s32 1, %s5
  %s8 = scalar_select 0, %s7, %s5
  $region1: #{tpu_custom_call.1} parent=0
    #allocation3 [shape = 'u8[8192]{0}', space=vmem, size = 0x2000, scoped, tag = 'output window, operand 0']
    #allocation4 [shape = 's32[2]{0}', space=sflag, size = 0x8, scoped, tag = 'scoped memory for tpu_custom_call.1']
    %9 = vsyncpa [#allocation4], 0
    %s10 = scalar_lea.sflag [#allocation4], 1
    %11 = vsyncpa %s10, 0
    loop: start=0, step=1, limit=4
    $region2: #{tpu_custom_call.1} parent=1 // loop_pre_header
      _
    $region3: #{tpu_custom_call.1} parent=1 // loop_header
      %s13 = sphi 0, %s17
      %p14 = scmp.ge.s32.totalorder %s13, 4
      %s23 = sphi 0, %s25
      %s26 = sphi 0, %s23
      %s27 = sphi 0, %s26
      %s43 = sphi 0, %s27
      %s47 = sphi 0, %s47
      %s49 = sphi 0, %s47
      %s50 = sphi 0, %s49
      %s64 = sphi 0, %s50
      %s68 = sphi 0, %s68
      %s70 = sphi 0, %s68
      %s71 = sphi 0, %s70
      %s85 = sphi 0, %s71
      %s89 = sphi 0, %s89
      %s91 = sphi 0, %s89
      %s92 = sphi 0, %s91
      %s106 = sphi 0, %s92
      %s112 = sphi 0, %s114
      %s115 = sphi 0, %s112
      %s116 = sphi 0, %s115
      %s132 = sphi 0, %s116
    $region4: #{tpu_custom_call.1} parent=1 // loop_header_branch
      %16 = sbr.rel (%p14) target = $region8
    $region5: #{tpu_custom_call.1} parent=1 // loop_body
      %s18 = ssub.s32 %s13, 1
      %s19 = ssub.s32 %s13, 2
      %s20 = sadd.s32 %s13, 1
      %s21 = ssub.s32 %s13, %s20
      %p22 = scmp.eq.s32.totalorder %s21, 0
      %s24 = sadd.s32 %s23, 1
      %s25 = scalar_select %p22, %s23, %s24
      %p28 = pneg %p22
      %p29 = scmp.eq.s32.totalorder %s13, 1
      %p30 = por %p28, %p29
      %p31 = scmp.ne.s32.totalorder %s23, %s26
      %p32 = scmp.eq.s32.totalorder %s13, 0
      %p33 = por %p31, %p32
      %p34 = scmp.ne.s32.totalorder %s23, %s26
      %p35 = scmp.eq.s32.totalorder %s18, 1
      %p36 = por %p34, %p35
      %p37 = scmp.ne.s32.totalorder %s26, %s27
      %p38 = scmp.eq.s32.totalorder %s18, 0
      %p39 = por %p37, %p38
      %p40 = scmp.ne.s32.totalorder %s26, %s27
      %p41 = scmp.eq.s32.totalorder %s19, 1
      %p42 = por %p40, %p41
      %p44 = scmp.ne.s32.totalorder %s27, %s43
      %p45 = scmp.eq.s32.totalorder %s19, 0
      %p46 = por %p44, %p45
      %s48 = sadd.s32 %s47, 1
      %p51 = scmp.eq.s32.totalorder %s13, 1
      %p52 = scmp.ne.s32.totalorder %s47, %s49
      %p53 = scmp.eq.s32.totalorder %s13, 0
      %p54 = por %p52, %p53
      %p55 = scmp.ne.s32.totalorder %s47, %s49
      %p56 = scmp.eq.s32.totalorder %s18, 1
      %p57 = por %p55, %p56
      %p58 = scmp.ne.s32.totalorder %s49, %s50
      %p59 = scmp.eq.s32.totalorder %s18, 0
      %p60 = por %p58, %p59
      %p61 = scmp.ne.s32.totalorder %s49, %s50
      %p62 = scmp.eq.s32.totalorder %s19, 1
      %p63 = por %p61, %p62
      %p65 = scmp.ne.s32.totalorder %s50, %s64
      %p66 = scmp.eq.s32.totalorder %s19, 0
      %p67 = por %p65, %p66
      %s69 = sadd.s32 %s68, 1
      %p72 = scmp.eq.s32.totalorder %s13, 1
      %p73 = scmp.ne.s32.totalorder %s68, %s70
      %p74 = scmp.eq.s32.totalorder %s13, 0
      %p75 = por %p73, %p74
      %p76 = scmp.ne.s32.totalorder %s68, %s70
      %p77 = scmp.eq.s32.totalorder %s18, 1
      %p78 = por %p76, %p77
      %p79 = scmp.ne.s32.totalorder %s70, %s71
      %p80 = scmp.eq.s32.totalorder %s18, 0
      %p81 = por %p79, %p80
      %p82 = scmp.ne.s32.totalorder %s70, %s71
      %p83 = scmp.eq.s32.totalorder %s19, 1
      %p84 = por %p82, %p83
      %p86 = scmp.ne.s32.totalorder %s71, %s85
      %p87 = scmp.eq.s32.totalorder %s19, 0
      %p88 = por %p86, %p87
      %s90 = sadd.s32 %s89, 1
      %p93 = scmp.eq.s32.totalorder %s13, 1
      %p94 = scmp.ne.s32.totalorder %s89, %s91
      %p95 = scmp.eq.s32.totalorder %s13, 0
      %p96 = por %p94, %p95
      %p97 = scmp.ne.s32.totalorder %s89, %s91
      %p98 = scmp.eq.s32.totalorder %s18, 1
      %p99 = por %p97, %p98
      %p100 = scmp.ne.s32.totalorder %s91, %s92
      %p101 = scmp.eq.s32.totalorder %s18, 0
      %p102 = por %p100, %p101
      %p103 = scmp.ne.s32.totalorder %s91, %s92
      %p104 = scmp.eq.s32.totalorder %s19, 1
      %p105 = por %p103, %p104
      %p107 = scmp.ne.s32.totalorder %s92, %s106
      %p108 = scmp.eq.s32.totalorder %s19, 0
      %p109 = por %p107, %p108
      %s110 = ssub.s32 %s13, %s20
      %p111 = scmp.eq.s32.totalorder %s110, 0
      %s113 = sadd.s32 %s112, 1
      %s114 = scalar_select %p111, %s112, %s113
      %p117 = pneg %p111
      %p118 = scmp.eq.s32.totalorder %s13, 1
      %p119 = por %p117, %p118
      %p120 = scmp.ne.s32.totalorder %s112, %s115
      %p121 = scmp.eq.s32.totalorder %s13, 0
      %p122 = por %p120, %p121
      %p123 = scmp.ne.s32.totalorder %s112, %s115
      %p124 = scmp.eq.s32.totalorder %s18, 1
      %p125 = por %p123, %p124
      %p126 = scmp.ne.s32.totalorder %s115, %s116
      %p127 = scmp.eq.s32.totalorder %s18, 0
      %p128 = por %p126, %p127
      %p129 = scmp.ne.s32.totalorder %s115, %s116
      %p130 = scmp.eq.s32.totalorder %s19, 1
      %p131 = por %p129, %p130
      %p133 = scmp.ne.s32.totalorder %s116, %s132
      %p134 = scmp.eq.s32.totalorder %s19, 0
      %p135 = por %p133, %p134
      %p136 = scmp.le.s32.totalorder 1, %s13
      %p137 = scmp.lt.s32.totalorder %s13, 3
      %p138 = pnand %p136, %p137
      %p139 = pneg %p138
      // Predicated region
      $region9: #{tpu_custom_call.1} parent=5 // pred_check
        _
      $region10: #{tpu_custom_call.1} parent=5 // pred_check_branch
        %141 = sbr.rel (%p138) target = $region12
      $region11: #{tpu_custom_call.1} parent=5 // pred_region
        %s142 = ssub.s32 %s13, 1
        // Predicated region
        $region13: #{tpu_custom_call.1} parent=11 // pred_check
          %p143 = pneg %p60
        $region14: #{tpu_custom_call.1} parent=11 // pred_check_branch
          %145 = sbr.rel (%p143) target = $region16
        $region15: #{tpu_custom_call.1} parent=11 // pred_region
          _
        $region16: #{tpu_custom_call.1} parent=11 // pred_fallthru
          _
        // Predicated region
        $region17: #{tpu_custom_call.1} parent=11 // pred_check
          %p146 = pneg %p81
        $region18: #{tpu_custom_call.1} parent=11 // pred_check_branch
          %148 = sbr.rel (%p146) target = $region20
        $region19: #{tpu_custom_call.1} parent=11 // pred_region
          _
        $region20: #{tpu_custom_call.1} parent=11 // pred_fallthru
          _
        // Predicated region
        $region21: #{tpu_custom_call.1} parent=11 // pred_check
          %p149 = pneg %p102
        $region22: #{tpu_custom_call.1} parent=11 // pred_check_branch
          %151 = sbr.rel (%p149) target = $region24
        $region23: #{tpu_custom_call.1} parent=11 // pred_region
          _
        $region24: #{tpu_custom_call.1} parent=11 // pred_fallthru
          _
      $region12: #{tpu_custom_call.1} parent=5 // pred_fallthru
        _
      %p152 = scmp.lt.s32.totalorder %s13, 2
      // Predicated region
      $region25: #{tpu_custom_call.1} parent=5 // pred_check
        %p153 = pneg %p152
      $region26: #{tpu_custom_call.1} parent=5 // pred_check_branch
        %155 = sbr.rel (%p153) target = $region28
      $region27: #{tpu_custom_call.1} parent=5 // pred_region
        // Predicated region
        $region29: #{tpu_custom_call.1} parent=27 // pred_check
          %p156 = pneg %p33
        $region30: #{tpu_custom_call.1} parent=27 // pred_check_branch
          %158 = sbr.rel (%p156) target = $region32
        $region31: #{tpu_custom_call.1} parent=27 // pred_region
          %p159 = scmp.lt.s32.totalorder %s13, 1
          %s160 = scalar_select %p159, %s13, 1
          %s161 = smul.addr %s160, 2
          %s162 = smul.addr %s161, 4
          %s163 = scalar_lea.vmem %s0, %s162
        $region32: #{tpu_custom_call.1} parent=27 // pred_fallthru
          _
      $region28: #{tpu_custom_call.1} parent=5 // pred_fallthru
        _
      %p164 = scmp.le.s32.totalorder 1, %s13
      %p165 = scmp.lt.s32.totalorder %s13, 3
      %p166 = pnand %p164, %p165
      %p167 = pneg %p166
      // Predicated region
      $region33: #{tpu_custom_call.1} parent=5 // pred_check
        _
      $region34: #{tpu_custom_call.1} parent=5 // pred_check_branch
        %169 = sbr.rel (%p166) target = $region36
      $region35: #{tpu_custom_call.1} parent=5 // pred_region
        %s170 = ssub.s32 %s13, 1
        %p171 = scmp.lt.s32.totalorder %s18, 1
        %s172 = scalar_select %p171, %s18, 1
        %s173 = smul.addr %s172, 2
        %s174 = smul.addr %s173, 4
        %s175 = scalar_lea.vmem %s0, %s174
        %p176 = pneg %p39
        %p177 = pneg %p36
        %p178 = pneg %p60
        %p179 = pneg %p57
        %p180 = pneg %p81
        %p181 = pneg %p78
        %p182 = pneg %p102
        %p183 = pneg %p99
        %p184 = pneg %p128
        %p185 = pneg %p125
        %s186 = sand.u32 %s115, 1
        %s187 = scalar_lea.sflag [#allocation4], %s186
        %s188 = sand.u32 %s115, 1
        %s189 = smul.addr %s188, 8
        %s190 = scalar_lea.vmem [#allocation3], %s189
        %p191 = scmp.lt.s32.totalorder %s18, 1
        %s192 = scalar_select %p191, %s18, 1
        %s193 = smul.addr %s192, 2
        %s194 = smul.addr %s193, 4
        %s195 = scalar_lea.vmem %s0, %s194
        %196 = vst [vmem:[#allocation2] sm:$0xff] 0.0
        %197 = vst [vmem:[#allocation2 + $0x8] sm:$0xff] 0.0
        %198 = vst [vmem:[#allocation2 + $0x30] sm:$0xff] 0.0
        %199 = vst [vmem:[#allocation2 + $0x38] sm:$0xff] 0.0
        %200 = vst [vmem:[#allocation2 + $0x60] sm:$0xff] 0.0
        %201 = vst [vmem:[#allocation2 + $0x68] sm:$0xff] 0.0
        %202 = vst [vmem:[#allocation2 + $0x90] sm:$0xff] 0.0
        %203 = vst [vmem:[#allocation2 + $0x98] sm:$0xff] 0.0
        %204 = vst [vmem:[#allocation2 + $0x20] sm:$0xff] 0.0
        %205 = vst [vmem:[#allocation2 + $0x28] sm:$0xff] 0.0
        %206 = vst [vmem:[#allocation2 + $0x50] sm:$0xff] 0.0
        %207 = vst [vmem:[#allocation2 + $0x58] sm:$0xff] 0.0
        %208 = vst [vmem:[#allocation2 + $0x80] sm:$0xff] 0.0
        %209 = vst [vmem:[#allocation2 + $0x88] sm:$0xff] 0.0
        %210 = vst [vmem:[#allocation2 + $0xb0] sm:$0xff] 0.0
        %211 = vst [vmem:[#allocation2 + $0xb8] sm:$0xff] 0.0
        %212 = vst [vmem:[#allocation2 + $0x10] sm:$0xf0] 0.0
        %213 = vst [vmem:[#allocation2 + $0x18] sm:$0xf0] 0.0
        %214 = vst [vmem:[#allocation2 + $0x40] sm:$0xf0] 0.0
        %215 = vst [vmem:[#allocation2 + $0x48] sm:$0xf0] 0.0
        %216 = vst [vmem:[#allocation2 + $0x70] sm:$0xf0] 0.0
        %217 = vst [vmem:[#allocation2 + $0x78] sm:$0xf0] 0.0
        %218 = vst [vmem:[#allocation2 + $0xa0] sm:$0xf0] 0.0
        %219 = vst [vmem:[#allocation2 + $0xa8] sm:$0xf0] 0.0
        %v220 = vld [vmem:[%s195] sm:$0xff]
        %v222 = vcombine.high %v220, %v220
        %224 = vst [vmem:[#allocation2 + $0xa0] sm:$0xf] %v220
        %225 = vst [vmem:[#allocation2 + $0xa8] sm:$0xf] %v222
        %v226 = vlaneseq
        %v227 = vand.u32 %v226, 127
        %v228 = vadd.s32 %v227, 128
        %vm229 = vcmp.lt.s32.totalorder %v227, 0
        %v230 = vsub.s32 0, %v227
        %v231 = vsel %vm229, %v230, %v227
        %v232 = vshrl.u32 %v231, 4
        %v233 = vand.u32 %v231, 15
        %v234 = vsub.s32 0, %v233
        %v235 = vsel %vm229, %v234, %v233
        %vm236 = vcmp.lt.s32.totalorder %v228, 0
        %v237 = vsub.s32 0, %v228
        %v238 = vsel %vm236, %v237, %v228
        %v239 = vshrl.u32 %v238, 4
        %v240 = vand.u32 %v238, 15
        %v241 = vsub.s32 0, %v240
        %v242 = vsel %vm236, %v241, %v240
        %vm243 = vcmp.ne.s32.totalorder %v235, 0
        %vm244 = vcmp.ne.s32.totalorder %v242, 0
        %vm245 = vcmp.lt.s32.totalorder %v235, 0
        %vm246 = vcmp.lt.s32.totalorder %v242, 0
        %vm247 = vmand %vm245, %vm243
        %vm248 = vmand %vm246, %vm244
        %v249 = vadd.s32 %v235, 16
        %v250 = vadd.s32 %v242, 16
        %v251 = vsel %vm247, %v249, %v235
        %v252 = vsel %vm248, %v250, %v242
        %vm253 = vcmp.ne.s32.totalorder %v251, 0
        %vm254 = vcmp.ne.s32.totalorder %v252, 0
        %v255 = vsel %vm253, 1, 0
        %v256 = vsel %vm254, 1, 0
        %v257 = vcvt.s32.f32 %v255
        %v258 = vcvt.s32.f32 %v256
        %vm259 = vcmp.ne.s32.totalorder %v251, 15
        %vm260 = vcmp.ne.s32.totalorder %v252, 15
        %v261 = vsel %vm259, 1, 0
        %v262 = vsel %vm260, 1, 0
        %v263 = vcvt.s32.f32 %v261
        %v264 = vcvt.s32.f32 %v262
        %v265 = vld [vmem:[%s1] sm:$0xff]
        %v266 = vld [vmem:[%s2] sm:$0xf]
        %v267 = vld [vmem:[%s3] sm:$0xf]
        %v268 = vld [vmem:[#allocation2 + $0x98] sm:$0xff]
        %v269 = vld [vmem:[#allocation2 + $0xa0] sm:$0xff]
        %v270 = vld [vmem:[#allocation2 + $0xa8] sm:$0xff]
        %272 = vset.pattern.permute.xlu0 0
        %273 = vperm.xlu0 %272, %v265
        %v274 = vpop.permute.xlu0 %273
        %v276 = vmul.f32 %v268, %v274
        %v277 = vmul.f32 %v269, %v274
        %v278 = vmul.f32 %v270, %v274
        %279 = vset.pattern.permute.xlu0 3
        %280 = vperm.xlu0 %279, %v265
        %v281 = vpop.permute.xlu0 %280
        %v283 = vmul.f32 %v268, %v281
        %v284 = vmul.f32 %v269, %v281
        %v285 = vmul.f32 %v270, %v281
        %289 = vrot.lane.b32.xlu0 %v283, 112
        %v290 = vpop.permute.xlu0 %289
        %291 = vrot.lane.b32.xlu0 %v284, 112
        %v292 = vpop.permute.xlu0 %291
        %293 = vrot.lane.b32.xlu0 %v285, 112
        %v294 = vpop.permute.xlu0 %293
        %vm295 = vcmask 916480
        %v296 = vsel %vm295, %v290, %v292
        %v297 = vsel %vm295, %v292, %v294
        %v301 = vadd.f32 %v276, %v296
        %v302 = vadd.f32 %v277, %v297
        %v303 = vadd.f32 %v278, %v294
        %v304 = vld [vmem:[#allocation2 + $0xa0] sm:$0xff]
        %v305 = vld [vmem:[#allocation2 + $0xa8] sm:$0xff]
        %v306 = vld [vmem:[#allocation2 + $0xb0] sm:$0xff]
        %307 = vset.pattern.permute.xlu0 6
        %308 = vperm.xlu0 %307, %v265
        %v309 = vpop.permute.xlu0 %308
        %v311 = vmul.f32 %v304, %v309
        %v312 = vmul.f32 %v305, %v309
        %v313 = vmul.f32 %v306, %v309
        %317 = vrot.lane.b32.xlu0 %v311, 96
        %v318 = vpop.permute.xlu0 %317
        %319 = vrot.lane.b32.xlu0 %v312, 96
        %v320 = vpop.permute.xlu0 %319
        %321 = vrot.lane.b32.xlu0 %v313, 96
        %v322 = vpop.permute.xlu0 %321
        %vm323 = vcmask 785408
        %v324 = vsel %vm323, %v318, %v320
        %v325 = vsel %vm323, %v320, %v322
        %v329 = vadd.f32 %v301, %v318
        %v330 = vadd.f32 %v302, %v324
        %v331 = vadd.f32 %v303, %v325
        %334 = vrot.lane.b32.xlu0 %v257, 111
        %v335 = vpop.permute.xlu0 %334
        %336 = vrot.lane.b32.xlu0 %v258, 111
        %v337 = vpop.permute.xlu0 %336
        %vm338 = vcmask 908288
        %v339 = vsel %vm338, %v335, %v337
        %v343 = vmul.f32 %v329, %v335
        %v344 = vmul.f32 %v330, %v339
        %v345 = vmul.f32 %v331, %v337
        %346 = vset.pattern.permute.xlu0 1
        %347 = vperm.xlu0 %346, %v265
        %v348 = vpop.permute.xlu0 %347
        %v350 = vmul.f32 %v268, %v348
        %v351 = vmul.f32 %v269, %v348
        %v352 = vmul.f32 %v270, %v348
        %353 = vset.pattern.permute.xlu0 4
        %354 = vperm.xlu0 %353, %v265
        %v355 = vpop.permute.xlu0 %354
        %v357 = vmul.f32 %v269, %v355
        %v358 = vmul.f32 %v270, %v355
        %361 = vrot.lane.b32.xlu0 %v357, 112
        %v362 = vpop.permute.xlu0 %361
        %363 = vrot.lane.b32.xlu0 %v358, 112
        %v364 = vpop.permute.xlu0 %363
        %v365 = vsel %vm295, %v362, %v364
        %v369 = vadd.f32 %v350, %v362
        %v370 = vadd.f32 %v351, %v365
        %v371 = vadd.f32 %v352, %v364
        %372 = vset.pattern.permute.xlu0 7
        %373 = vperm.xlu0 %372, %v265
        %v374 = vpop.permute.xlu0 %373
        %v376 = vmul.f32 %v304, %v374
        %v377 = vmul.f32 %v305, %v374
        %v378 = vmul.f32 %v306, %v374
        %382 = vrot.lane.b32.xlu0 %v376, 96
        %v383 = vpop.permute.xlu0 %382
        %384 = vrot.lane.b32.xlu0 %v377, 96
        %v385 = vpop.permute.xlu0 %384
        %386 = vrot.lane.b32.xlu0 %v378, 96
        %v387 = vpop.permute.xlu0 %386
        %v388 = vsel %vm323, %v383, %v385
        %v389 = vsel %vm323, %v385, %v387
        %v393 = vadd.f32 %v369, %v383
        %v394 = vadd.f32 %v370, %v388
        %v395 = vadd.f32 %v371, %v389
        %399 = vrot.lane.b32.xlu0 %v393, 127
        %v400 = vpop.permute.xlu0 %399
        %401 = vrot.lane.b32.xlu0 %v394, 127
        %v402 = vpop.permute.xlu0 %401
        %403 = vrot.lane.b32.xlu0 %v395, 127
        %v404 = vpop.permute.xlu0 %403
        %vm405 = vcmask 1039360
        %v406 = vsel %vm405, %v400, %v402
        %v407 = vsel %vm405, %v402, %v404
        %v411 = vadd.f32 %v343, %v406
        %v412 = vadd.f32 %v344, %v407
        %v413 = vadd.f32 %v345, %v404
        %414 = vset.pattern.permute.xlu0 2
        %415 = vperm.xlu0 %414, %v265
        %v416 = vpop.permute.xlu0 %415
        %v418 = vmul.f32 %v268, %v416
        %v419 = vmul.f32 %v269, %v416
        %v420 = vmul.f32 %v270, %v416
        %421 = vset.pattern.permute.xlu0 5
        %422 = vperm.xlu0 %421, %v265
        %v423 = vpop.permute.xlu0 %422
        %v425 = vmul.f32 %v304, %v423
        %v426 = vmul.f32 %v305, %v423
        %v427 = vmul.f32 %v306, %v423
        %431 = vrot.lane.b32.xlu0 %v425, 112
        %v432 = vpop.permute.xlu0 %431
        %433 = vrot.lane.b32.xlu0 %v426, 112
        %v434 = vpop.permute.xlu0 %433
        %435 = vrot.lane.b32.xlu0 %v427, 112
        %v436 = vpop.permute.xlu0 %435
        %v437 = vsel %vm295, %v432, %v434
        %v438 = vsel %vm295, %v434, %v436
        %v442 = vadd.f32 %v418, %v432
        %v443 = vadd.f32 %v419, %v437
        %v444 = vadd.f32 %v420, %v438
        %445 = vset.pattern.permute.xlu0 8
        %446 = vperm.xlu0 %445, %v265
        %v447 = vpop.permute.xlu0 %446
        %v449 = vmul.f32 %v304, %v447
        %v450 = vmul.f32 %v305, %v447
        %v451 = vmul.f32 %v306, %v447
        %455 = vrot.lane.b32.xlu0 %v449, 96
        %v456 = vpop.permute.xlu0 %455
        %457 = vrot.lane.b32.xlu0 %v450, 96
        %v458 = vpop.permute.xlu0 %457
        %459 = vrot.lane.b32.xlu0 %v451, 96
        %v460 = vpop.permute.xlu0 %459
        %v461 = vsel %vm323, %v456, %v458
        %v462 = vsel %vm323, %v458, %v460
        %v466 = vadd.f32 %v442, %v456
        %v467 = vadd.f32 %v443, %v461
        %v468 = vadd.f32 %v444, %v462
        %471 = vrot.lane.b32.xlu0 %v263, 113
        %v472 = vpop.permute.xlu0 %471
        %473 = vrot.lane.b32.xlu0 %v264, 113
        %v474 = vpop.permute.xlu0 %473
        %vm475 = vcmask 924672
        %v476 = vsel %vm475, %v472, %v474
        %v480 = vmul.f32 %v466, %v472
        %v481 = vmul.f32 %v467, %v476
        %v482 = vmul.f32 %v468, %v474
        %486 = vrot.lane.b32.xlu0 %v480, 126
        %v487 = vpop.permute.xlu0 %486
        %488 = vrot.lane.b32.xlu0 %v481, 126
        %v489 = vpop.permute.xlu0 %488
        %490 = vrot.lane.b32.xlu0 %v482, 126
        %v491 = vpop.permute.xlu0 %490
        %vm492 = vcmask 1031168
        %v493 = vsel %vm492, %v487, %v489
        %v494 = vsel %vm492, %v489, %v491
        %v498 = vadd.f32 %v411, %v493
        %v499 = vadd.f32 %v412, %v494
        %v500 = vadd.f32 %v413, %v491
        %502 = vset.pattern.permute.xlu0 0
        %503 = vperm.xlu0 %502, %v267
        %v504 = vpop.permute.xlu0 %503
        %509 = vrot.lane.b32.xlu0 %v498, 17
        %v510 = vpop.permute.xlu0 %509
        %511 = vrot.lane.b32.xlu0 %v499, 17
        %v512 = vpop.permute.xlu0 %511
        %513 = vrot.lane.b32.xlu0 %v500, 17
        %v514 = vpop.permute.xlu0 %513
        %vm515 = vcmask 138240
        %v516 = vsel %vm515, %v510, %v512
        %v517 = vsel %vm515, %v512, %v514
        %vm520 = vcmask 64512
        %v522 = vsel %vm520, %v266, 0
        %v524 = vand.u32 %v517, 4294901760
        %525 = vmatprep.subr.mxu0 %v524
        %v526 = vand.u32 %v516, 4294901760
        %527 = vmatpush1.msra.mxu0 %v526
        %528 = vmatprep.subr.mxu0 0.0
        %529 = vmatpush1.msra.mxu0 0.0
        %530 = vmatprep.subr.mxu0 0.0
        %531 = vmatpush1.msra.mxu0 0.0
        %532 = vmatprep.subr.mxu0 0.0
        %533 = vmatpush1.msra.mxu0 0.0
        %534 = vmatprep.subr.mxu0 0.0
        %535 = vmatpush1.msra.mxu0 0.0
        %536 = vmatprep.subr.mxu0 0.0
        %537 = vmatpush1.msra.mxu0 0.0
        %538 = vmatprep.subr.mxu0 0.0
        %539 = vmatpush1.msra.mxu0 0.0
        %540 = vmatprep.subr.mxu0 0.0
        %541 = vmatpush1.msra.mxu0 0.0
        %542 = vmatprep.subr.mxu0 0.0
        %543 = vmatpush1.msra.mxu0 0.0
        %544 = vmatprep.subr.mxu0 0.0
        %545 = vmatpush1.msra.mxu0 0.0
        %546 = vmatprep.subr.mxu0 0.0
        %547 = vmatpush1.msra.mxu0 0.0
        %548 = vmatprep.subr.mxu0 0.0
        %549 = vmatpush1.msra.mxu0 0.0
        %550 = vmatprep.subr.mxu0 0.0
        %551 = vmatpush1.msra.mxu0 0.0
        %552 = vmatprep.subr.mxu0 0.0
        %553 = vmatpush1.msra.mxu0 0.0
        %554 = vmatprep.subr.mxu0 0.0
        %555 = vmatpush1.msra.mxu0 0.0
        %556 = vmatprep.subr.mxu0 0.0
        %557 = vmatpush1.msra.mxu0 0.0
        %558 = vmatprep.subr.mxu0 0.0
        %559 = vmatpush1.msra.mxu0 0.0
        %560 = vmatprep.subr.mxu0 0.0
        %561 = vmatpush1.msra.mxu0 0.0
        %562 = vmatprep.subr.mxu0 0.0
        %563 = vmatpush1.msra.mxu0 0.0
        %564 = vmatprep.subr.mxu0 0.0
        %565 = vmatpush1.msra.mxu0 0.0
        %566 = vmatprep.subr.mxu0 0.0
        %567 = vmatpush1.msra.mxu0 0.0
        %568 = vmatprep.subr.mxu0 0.0
        %569 = vmatpush1.msra.mxu0 0.0
        %570 = vmatprep.subr.mxu0 0.0
        %571 = vmatpush1.msra.mxu0 0.0
        %572 = vmatprep.subr.mxu0 0.0
        %573 = vmatpush1.msra.mxu0 0.0
        %574 = vmatprep.subr.mxu0 0.0
        %575 = vmatpush1.msra.mxu0 0.0
        %576 = vmatprep.subr.mxu0 0.0
        %577 = vmatpush1.msra.mxu0 0.0
        %578 = vmatprep.subr.mxu0 0.0
        %579 = vmatpush1.msra.mxu0 0.0
        %580 = vmatprep.subr.mxu0 0.0
        %581 = vmatpush1.msra.mxu0 0.0
        %582 = vmatprep.subr.mxu0 0.0
        %583 = vmatpush1.msra.mxu0 0.0
        %584 = vmatprep.subr.mxu0 0.0
        %585 = vmatpush1.msra.mxu0 0.0
        %586 = vmatprep.subr.mxu0 0.0
        %587 = vmatpush1.msra.mxu0 0.0
        %588 = vmatprep.subr.mxu0 0.0
        %589 = vmatpush1.msra.mxu0 0.0
        %590 = vmatprep.mubr.f32.mxu0 0.0
        %v591 = vand.u32 %v522, 4294901760
        %v592 = vsub.f32 %v522, %v591
        %v593 = vand.u32 %v592, 4294901760
        %v594 = vsub.f32 %v592, %v593
        %v595 = vand.u32 %v594, 4294901760
        %596 = vmatmul.mubr.f32.gmra.mrb[0].mxu0 %v595
        %v597 = vpop.f32.mrb[0].mxu0
        %v598 = vadd.f32 %v504, %v597
        %v599 = vpop.f32.mrb[0].mxu0
        %v600 = vadd.f32 %v504, %v599
        %601 = vdwg.mxu0
        %v602 = vand.u32 %v517, 4294901760
        %v603 = vsub.f32 %v517, %v602
        %v604 = vand.u32 %v603, 4294901760
        %v605 = vsub.f32 %v603, %v604
        %v606 = vand.u32 %v605, 4294901760
        %607 = vmatprep.subr.mxu0 %v606
        %v608 = vand.u32 %v516, 4294901760
        %v609 = vsub.f32 %v516, %v608
        %v610 = vand.u32 %v609, 4294901760
        %v611 = vsub.f32 %v609, %v610
        %v612 = vand.u32 %v611, 4294901760
        %613 = vmatpush1.msra.mxu0 %v612
        %614 = vmatprep.subr.mxu0 0.0
        %615 = vmatpush1.msra.mxu0 0.0
        %616 = vmatprep.subr.mxu0 0.0
        %617 = vmatpush1.msra.mxu0 0.0
        %618 = vmatprep.subr.mxu0 0.0
        %619 = vmatpush1.msra.mxu0 0.0
        %620 = vmatprep.subr.mxu0 0.0
        %621 = vmatpush1.msra.mxu0 0.0
        %622 = vmatprep.subr.mxu0 0.0
        %623 = vmatpush1.msra.mxu0 0.0
        %624 = vmatprep.subr.mxu0 0.0
        %625 = vmatpush1.msra.mxu0 0.0
        %626 = vmatprep.subr.mxu0 0.0
        %627 = vmatpush1.msra.mxu0 0.0
        %628 = vmatprep.subr.mxu0 0.0
        %629 = vmatpush1.msra.mxu0 0.0
        %630 = vmatprep.subr.mxu0 0.0
        %631 = vmatpush1.msra.mxu0 0.0
        %632 = vmatprep.subr.mxu0 0.0
        %633 = vmatpush1.msra.mxu0 0.0
        %634 = vmatprep.subr.mxu0 0.0
        %635 = vmatpush1.msra.mxu0 0.0
        %636 = vmatprep.subr.mxu0 0.0
        %637 = vmatpush1.msra.mxu0 0.0
        %638 = vmatprep.subr.mxu0 0.0
        %639 = vmatpush1.msra.mxu0 0.0
        %640 = vmatprep.subr.mxu0 0.0
        %641 = vmatpush1.msra.mxu0 0.0
        %642 = vmatprep.subr.mxu0 0.0
        %643 = vmatpush1.msra.mxu0 0.0
        %644 = vmatprep.subr.mxu0 0.0
        %645 = vmatpush1.msra.mxu0 0.0
        %646 = vmatprep.subr.mxu0 0.0
        %647 = vmatpush1.msra.mxu0 0.0
        %648 = vmatprep.subr.mxu0 0.0
        %649 = vmatpush1.msra.mxu0 0.0
        %650 = vmatprep.subr.mxu0 0.0
        %651 = vmatpush1.msra.mxu0 0.0
        %652 = vmatprep.subr.mxu0 0.0
        %653 = vmatpush1.msra.mxu0 0.0
        %654 = vmatprep.subr.mxu0 0.0
        %655 = vmatpush1.msra.mxu0 0.0
        %656 = vmatprep.subr.mxu0 0.0
        %657 = vmatpush1.msra.mxu0 0.0
        %658 = vmatprep.subr.mxu0 0.0
        %659 = vmatpush1.msra.mxu0 0.0
        %660 = vmatprep.subr.mxu0 0.0
        %661 = vmatpush1.msra.mxu0 0.0
        %662 = vmatprep.subr.mxu0 0.0
        %663 = vmatpush1.msra.mxu0 0.0
        %664 = vmatprep.subr.mxu0 0.0
        %665 = vmatpush1.msra.mxu0 0.0
        %666 = vmatprep.subr.mxu0 0.0
        %667 = vmatpush1.msra.mxu0 0.0
        %668 = vmatprep.subr.mxu0 0.0
        %669 = vmatpush1.msra.mxu0 0.0
        %670 = vmatprep.subr.mxu0 0.0
        %671 = vmatpush1.msra.mxu0 0.0
        %672 = vmatprep.subr.mxu0 0.0
        %673 = vmatpush1.msra.mxu0 0.0
        %674 = vmatprep.subr.mxu0 0.0
        %675 = vmatpush1.msra.mxu0 0.0
        %676 = vmatprep.mubr.f32.mxu0 0.0
        %v677 = vand.u32 %v522, 4294901760
        %678 = vmatmul.mubr.f32.gmra.mrb[0].mxu0 %v677
        %v679 = vpop.f32.mrb[0].mxu0
        %v680 = vadd.f32 %v598, %v679
        %v681 = vpop.f32.mrb[0].mxu0
        %v682 = vadd.f32 %v600, %v681
        %683 = vdwg.mxu0
        %v684 = vand.u32 %v517, 4294901760
        %v685 = vsub.f32 %v517, %v684
        %686 = vmatprep.subr.mxu0 %v685
        %v687 = vand.u32 %v516, 4294901760
        %v688 = vsub.f32 %v516, %v687
        %689 = vmatpush1.msra.mxu0 %v688
        %690 = vmatprep.subr.mxu0 0.0
        %691 = vmatpush1.msra.mxu0 0.0
        %692 = vmatprep.subr.mxu0 0.0
        %693 = vmatpush1.msra.mxu0 0.0
        %694 = vmatprep.subr.mxu0 0.0
        %695 = vmatpush1.msra.mxu0 0.0
        %696 = vmatprep.subr.mxu0 0.0
        %697 = vmatpush1.msra.mxu0 0.0
        %698 = vmatprep.subr.mxu0 0.0
        %699 = vmatpush1.msra.mxu0 0.0
        %700 = vmatprep.subr.mxu0 0.0
        %701 = vmatpush1.msra.mxu0 0.0
        %702 = vmatprep.subr.mxu0 0.0
        %703 = vmatpush1.msra.mxu0 0.0
        %704 = vmatprep.subr.mxu0 0.0
        %705 = vmatpush1.msra.mxu0 0.0
        %706 = vmatprep.subr.mxu0 0.0
        %707 = vmatpush1.msra.mxu0 0.0
        %708 = vmatprep.subr.mxu0 0.0
        %709 = vmatpush1.msra.mxu0 0.0
        %710 = vmatprep.subr.mxu0 0.0
        %711 = vmatpush1.msra.mxu0 0.0
        %712 = vmatprep.subr.mxu0 0.0
        %713 = vmatpush1.msra.mxu0 0.0
        %714 = vmatprep.subr.mxu0 0.0
        %715 = vmatpush1.msra.mxu0 0.0
        %716 = vmatprep.subr.mxu0 0.0
        %717 = vmatpush1.msra.mxu0 0.0
        %718 = vmatprep.subr.mxu0 0.0
        %719 = vmatpush1.msra.mxu0 0.0
        %720 = vmatprep.subr.mxu0 0.0
        %721 = vmatpush1.msra.mxu0 0.0
        %722 = vmatprep.subr.mxu0 0.0
        %723 = vmatpush1.msra.mxu0 0.0
        %724 = vmatprep.subr.mxu0 0.0
        %725 = vmatpush1.msra.mxu0 0.0
        %726 = vmatprep.subr.mxu0 0.0
        %727 = vmatpush1.msra.mxu0 0.0
        %728 = vmatprep.subr.mxu0 0.0
        %729 = vmatpush1.msra.mxu0 0.0
        %730 = vmatprep.subr.mxu0 0.0
        %731 = vmatpush1.msra.mxu0 0.0
        %732 = vmatprep.subr.mxu0 0.0
        %733 = vmatpush1.msra.mxu0 0.0
        %734 = vmatprep.subr.mxu0 0.0
        %735 = vmatpush1.msra.mxu0 0.0
        %736 = vmatprep.subr.mxu0 0.0
        %737 = vmatpush1.msra.mxu0 0.0
        %738 = vmatprep.subr.mxu0 0.0
        %739 = vmatpush1.msra.mxu0 0.0
        %740 = vmatprep.subr.mxu0 0.0
        %741 = vmatpush1.msra.mxu0 0.0
        %742 = vmatprep.subr.mxu0 0.0
        %743 = vmatpush1.msra.mxu0 0.0
        %744 = vmatprep.subr.mxu0 0.0
        %745 = vmatpush1.msra.mxu0 0.0
        %746 = vmatprep.subr.mxu0 0.0
        %747 = vmatpush1.msra.mxu0 0.0
        %748 = vmatprep.subr.mxu0 0.0
        %749 = vmatpush1.msra.mxu0 0.0
        %750 = vmatprep.subr.mxu0 0.0
        %751 = vmatpush1.msra.mxu0 0.0
        %752 = vmatprep.mubr.f32.mxu0 0.0
        %v753 = vand.u32 %v522, 4294901760
        %v754 = vsub.f32 %v522, %v753
        %755 = vmatmul.mubr.f32.gmra.mrb[0].mxu0 %v754
        %v756 = vpop.f32.mrb[0].mxu0
        %v757 = vadd.f32 %v680, %v756
        %v758 = vpop.f32.mrb[0].mxu0
        %v759 = vadd.f32 %v682, %v758
        %760 = vdwg.mxu0
        %v761 = vand.u32 %v517, 4294901760
        %762 = vmatprep.subr.mxu0 %v761
        %v763 = vand.u32 %v516, 4294901760
        %764 = vmatpush1.msra.mxu0 %v763
        %765 = vmatprep.subr.mxu0 0.0
        %766 = vmatpush1.msra.mxu0 0.0
        %767 = vmatprep.subr.mxu0 0.0
        %768 = vmatpush1.msra.mxu0 0.0
        %769 = vmatprep.subr.mxu0 0.0
        %770 = vmatpush1.msra.mxu0 0.0
        %771 = vmatprep.subr.mxu0 0.0
        %772 = vmatpush1.msra.mxu0 0.0
        %773 = vmatprep.subr.mxu0 0.0
        %774 = vmatpush1.msra.mxu0 0.0
        %775 = vmatprep.subr.mxu0 0.0
        %776 = vmatpush1.msra.mxu0 0.0
        %777 = vmatprep.subr.mxu0 0.0
        %778 = vmatpush1.msra.mxu0 0.0
        %779 = vmatprep.subr.mxu0 0.0
        %780 = vmatpush1.msra.mxu0 0.0
        %781 = vmatprep.subr.mxu0 0.0
        %782 = vmatpush1.msra.mxu0 0.0
        %783 = vmatprep.subr.mxu0 0.0
        %784 = vmatpush1.msra.mxu0 0.0
        %785 = vmatprep.subr.mxu0 0.0
        %786 = vmatpush1.msra.mxu0 0.0
        %787 = vmatprep.subr.mxu0 0.0
        %788 = vmatpush1.msra.mxu0 0.0
        %789 = vmatprep.subr.mxu0 0.0
        %790 = vmatpush1.msra.mxu0 0.0
        %791 = vmatprep.subr.mxu0 0.0
        %792 = vmatpush1.msra.mxu0 0.0
        %793 = vmatprep.subr.mxu0 0.0
        %794 = vmatpush1.msra.mxu0 0.0
        %795 = vmatprep.subr.mxu0 0.0
        %796 = vmatpush1.msra.mxu0 0.0
        %797 = vmatprep.subr.mxu0 0.0
        %798 = vmatpush1.msra.mxu0 0.0
        %799 = vmatprep.subr.mxu0 0.0
        %800 = vmatpush1.msra.mxu0 0.0
        %801 = vmatprep.subr.mxu0 0.0
        %802 = vmatpush1.msra.mxu0 0.0
        %803 = vmatprep.subr.mxu0 0.0
        %804 = vmatpush1.msra.mxu0 0.0
        %805 = vmatprep.subr.mxu0 0.0
        %806 = vmatpush1.msra.mxu0 0.0
        %807 = vmatprep.subr.mxu0 0.0
        %808 = vmatpush1.msra.mxu0 0.0
        %809 = vmatprep.subr.mxu0 0.0
        %810 = vmatpush1.msra.mxu0 0.0
        %811 = vmatprep.subr.mxu0 0.0
        %812 = vmatpush1.msra.mxu0 0.0
        %813 = vmatprep.subr.mxu0 0.0
        %814 = vmatpush1.msra.mxu0 0.0
        %815 = vmatprep.subr.mxu0 0.0
        %816 = vmatpush1.msra.mxu0 0.0
        %817 = vmatprep.subr.mxu0 0.0
        %818 = vmatpush1.msra.mxu0 0.0
        %819 = vmatprep.subr.mxu0 0.0
        %820 = vmatpush1.msra.mxu0 0.0
        %821 = vmatprep.subr.mxu0 0.0
        %822 = vmatpush1.msra.mxu0 0.0
        %823 = vmatprep.subr.mxu0 0.0
        %824 = vmatpush1.msra.mxu0 0.0
        %825 = vmatprep.subr.mxu0 0.0
        %826 = vmatpush1.msra.mxu0 0.0
        %827 = vmatprep.mubr.f32.mxu0 0.0
        %v828 = vand.u32 %v522, 4294901760
        %v829 = vsub.f32 %v522, %v828
        %v830 = vand.u32 %v829, 4294901760
        %831 = vmatmul.mubr.f32.gmra.mrb[0].mxu0 %v830
        %v832 = vpop.f32.mrb[0].mxu0
        %v833 = vadd.f32 %v757, %v832
        %v834 = vpop.f32.mrb[0].mxu0
        %v835 = vadd.f32 %v759, %v834
        %836 = vdwg.mxu0
        %v837 = vand.u32 %v517, 4294901760
        %v838 = vsub.f32 %v517, %v837
        %v839 = vand.u32 %v838, 4294901760
        %840 = vmatprep.subr.mxu0 %v839
        %v841 = vand.u32 %v516, 4294901760
        %v842 = vsub.f32 %v516, %v841
        %v843 = vand.u32 %v842, 4294901760
        %844 = vmatpush1.msra.mxu0 %v843
        %845 = vmatprep.subr.mxu0 0.0
        %846 = vmatpush1.msra.mxu0 0.0
        %847 = vmatprep.subr.mxu0 0.0
        %848 = vmatpush1.msra.mxu0 0.0
        %849 = vmatprep.subr.mxu0 0.0
        %850 = vmatpush1.msra.mxu0 0.0
        %851 = vmatprep.subr.mxu0 0.0
        %852 = vmatpush1.msra.mxu0 0.0
        %853 = vmatprep.subr.mxu0 0.0
        %854 = vmatpush1.msra.mxu0 0.0
        %855 = vmatprep.subr.mxu0 0.0
        %856 = vmatpush1.msra.mxu0 0.0
        %857 = vmatprep.subr.mxu0 0.0
        %858 = vmatpush1.msra.mxu0 0.0
        %859 = vmatprep.subr.mxu0 0.0
        %860 = vmatpush1.msra.mxu0 0.0
        %861 = vmatprep.subr.mxu0 0.0
        %862 = vmatpush1.msra.mxu0 0.0
        %863 = vmatprep.subr.mxu0 0.0
        %864 = vmatpush1.msra.mxu0 0.0
        %865 = vmatprep.subr.mxu0 0.0
        %866 = vmatpush1.msra.mxu0 0.0
        %867 = vmatprep.subr.mxu0 0.0
        %868 = vmatpush1.msra.mxu0 0.0
        %869 = vmatprep.subr.mxu0 0.0
        %870 = vmatpush1.msra.mxu0 0.0
        %871 = vmatprep.subr.mxu0 0.0
        %872 = vmatpush1.msra.mxu0 0.0
        %873 = vmatprep.subr.mxu0 0.0
        %874 = vmatpush1.msra.mxu0 0.0
        %875 = vmatprep.subr.mxu0 0.0
        %876 = vmatpush1.msra.mxu0 0.0
        %877 = vmatprep.subr.mxu0 0.0
        %878 = vmatpush1.msra.mxu0 0.0
        %879 = vmatprep.subr.mxu0 0.0
        %880 = vmatpush1.msra.mxu0 0.0
        %881 = vmatprep.subr.mxu0 0.0
        %882 = vmatpush1.msra.mxu0 0.0
        %883 = vmatprep.subr.mxu0 0.0
        %884 = vmatpush1.msra.mxu0 0.0
        %885 = vmatprep.subr.mxu0 0.0
        %886 = vmatpush1.msra.mxu0 0.0
        %887 = vmatprep.subr.mxu0 0.0
        %888 = vmatpush1.msra.mxu0 0.0
        %889 = vmatprep.subr.mxu0 0.0
        %890 = vmatpush1.msra.mxu0 0.0
        %891 = vmatprep.subr.mxu0 0.0
        %892 = vmatpush1.msra.mxu0 0.0
        %893 = vmatprep.subr.mxu0 0.0
        %894 = vmatpush1.msra.mxu0 0.0
        %895 = vmatprep.subr.mxu0 0.0
        %896 = vmatpush1.msra.mxu0 0.0
        %897 = vmatprep.subr.mxu0 0.0
        %898 = vmatpush1.msra.mxu0 0.0
        %899 = vmatprep.subr.mxu0 0.0
        %900 = vmatpush1.msra.mxu0 0.0
        %901 = vmatprep.subr.mxu0 0.0
        %902 = vmatpush1.msra.mxu0 0.0
        %903 = vmatprep.subr.mxu0 0.0
        %904 = vmatpush1.msra.mxu0 0.0
        %905 = vmatprep.subr.mxu0 0.0
        %906 = vmatpush1.msra.mxu0 0.0
        %907 = vmatprep.mubr.f32.mxu0 0.0
        %v908 = vand.u32 %v522, 4294901760
        %909 = vmatmul.mubr.f32.gmra.mrb[0].mxu0 %v908
        %v910 = vpop.f32.mrb[0].mxu0
        %v911 = vadd.f32 %v833, %v910
        %v912 = vpop.f32.mrb[0].mxu0
        %v913 = vadd.f32 %v835, %v912
        %914 = vdwg.mxu0
        %v915 = vand.u32 %v517, 4294901760
        %916 = vmatprep.subr.mxu0 %v915
        %v917 = vand.u32 %v516, 4294901760
        %918 = vmatpush1.msra.mxu0 %v917
        %919 = vmatprep.subr.mxu0 0.0
        %920 = vmatpush1.msra.mxu0 0.0
        %921 = vmatprep.subr.mxu0 0.0
        %922 = vmatpush1.msra.mxu0 0.0
        %923 = vmatprep.subr.mxu0 0.0
        %924 = vmatpush1.msra.mxu0 0.0
        %925 = vmatprep.subr.mxu0 0.0
        %926 = vmatpush1.msra.mxu0 0.0
        %927 = vmatprep.subr.mxu0 0.0
        %928 = vmatpush1.msra.mxu0 0.0
        %929 = vmatprep.subr.mxu0 0.0
        %930 = vmatpush1.msra.mxu0 0.0
        %931 = vmatprep.subr.mxu0 0.0
        %932 = vmatpush1.msra.mxu0 0.0
        %933 = vmatprep.subr.mxu0 0.0
        %934 = vmatpush1.msra.mxu0 0.0
        %935 = vmatprep.subr.mxu0 0.0
        %936 = vmatpush1.msra.mxu0 0.0
        %937 = vmatprep.subr.mxu0 0.0
        %938 = vmatpush1.msra.mxu0 0.0
        %939 = vmatprep.subr.mxu0 0.0
        %940 = vmatpush1.msra.mxu0 0.0
        %941 = vmatprep.subr.mxu0 0.0
        %942 = vmatpush1.msra.mxu0 0.0
        %943 = vmatprep.subr.mxu0 0.0
        %944 = vmatpush1.msra.mxu0 0.0
        %945 = vmatprep.subr.mxu0 0.0
        %946 = vmatpush1.msra.mxu0 0.0
        %947 = vmatprep.subr.mxu0 0.0
        %948 = vmatpush1.msra.mxu0 0.0
        %949 = vmatprep.subr.mxu0 0.0
        %950 = vmatpush1.msra.mxu0 0.0
        %951 = vmatprep.subr.mxu0 0.0
        %952 = vmatpush1.msra.mxu0 0.0
        %953 = vmatprep.subr.mxu0 0.0
        %954 = vmatpush1.msra.mxu0 0.0
        %955 = vmatprep.subr.mxu0 0.0
        %956 = vmatpush1.msra.mxu0 0.0
        %957 = vmatprep.subr.mxu0 0.0
        %958 = vmatpush1.msra.mxu0 0.0
        %959 = vmatprep.subr.mxu0 0.0
        %960 = vmatpush1.msra.mxu0 0.0
        %961 = vmatprep.subr.mxu0 0.0
        %962 = vmatpush1.msra.mxu0 0.0
        %963 = vmatprep.subr.mxu0 0.0
        %964 = vmatpush1.msra.mxu0 0.0
        %965 = vmatprep.subr.mxu0 0.0
        %966 = vmatpush1.msra.mxu0 0.0
        %967 = vmatprep.subr.mxu0 0.0
        %968 = vmatpush1.msra.mxu0 0.0
        %969 = vmatprep.subr.mxu0 0.0
        %970 = vmatpush1.msra.mxu0 0.0
        %971 = vmatprep.subr.mxu0 0.0
        %972 = vmatpush1.msra.mxu0 0.0
        %973 = vmatprep.subr.mxu0 0.0
        %974 = vmatpush1.msra.mxu0 0.0
        %975 = vmatprep.subr.mxu0 0.0
        %976 = vmatpush1.msra.mxu0 0.0
        %977 = vmatprep.subr.mxu0 0.0
        %978 = vmatpush1.msra.mxu0 0.0
        %979 = vmatprep.subr.mxu0 0.0
        %980 = vmatpush1.msra.mxu0 0.0
        %981 = vmatprep.mubr.f32.mxu0 0.0
        %v982 = vand.u32 %v522, 4294901760
        %983 = vmatmul.mubr.f32.gmra.mrb[0].mxu0 %v982
        %v984 = vpop.f32.mrb[0].mxu0
        %v985 = vadd.f32 %v911, %v984
        %v986 = vpop.f32.mrb[0].mxu0
        %v987 = vadd.f32 %v913, %v986
        %988 = vdwg.mxu0
        %vm989 = vcmask 1043456
        %v990 = vsel %vm989, %v985, 0.0
        %v991 = vsel %vm989, %v987, 0.0
        %v992 = vadd.f32 %v990, %v991
        %993 = vadd.xlane.f32.xlu0 %v992
        %v994 = vpop.xlane.xlu0 %993
        %v995 = vrcp.pop 256.0
        %v996 = vmul.f32 %v994, %v995
        %v997 = vmul.f32 %v985, %v985
        %v998 = vmul.f32 %v987, %v987
        %v999 = vsel %vm989, %v997, 0.0
        %v1000 = vsel %vm989, %v998, 0.0
        %v1001 = vadd.f32 %v999, %v1000
        %1002 = vadd.xlane.f32.xlu0 %v1001
        %v1003 = vpop.xlane.xlu0 %1002
        %v1004 = vmul.f32 %v1003, %v995
        %v1005 = vmul.f32 %v996, %v996
        %v1006 = vsub.f32 %v1004, %v1005
        %v1007 = vsub.f32 %v985, %v996
        %v1008 = vsub.f32 %v987, %v996
        %v1009 = vadd.f32 %v1006, 1e-05
        %v1010 = vrsqrt.pop %v1009
        %v1011 = vmul.f32 %v1007, %v1010
        %v1012 = vmul.f32 %v1008, %v1010
        %1013 = vset.pattern.permute.xlu0 1
        %1014 = vperm.xlu0 %1013, %v267
        %v1015 = vpop.permute.xlu0 %1014
        %v1017 = vmul.f32 %v1011, %v1015
        %v1018 = vmul.f32 %v1012, %v1015
        %1019 = vset.pattern.permute.xlu0 2
        %1020 = vperm.xlu0 %1019, %v267
        %v1021 = vpop.permute.xlu0 %1020
        %v1023 = vadd.f32 %v1017, %v1021
        %v1024 = vadd.f32 %v1018, %v1021
        %vm1025 = vcmp.ge.f32.partialorder %v1023, 0.0
        %vm1026 = vcmp.ge.f32.partialorder %v1024, 0.0
        %1027 = vset.pattern.permute.xlu0 3
        %1028 = vperm.xlu0 %1027, %v267
        %v1029 = vpop.permute.xlu0 %1028
        %v1031 = vmul.f32 %v1029, %v1023
        %v1032 = vmul.f32 %v1029, %v1024
        %v1033 = vsel %vm1025, %v1023, %v1031
        %v1034 = vsel %vm1026, %v1024, %v1032
        %1035 = vst [vmem:[#allocation2 + $0x70] sm:$0xf] %v1033
        %1036 = vst [vmem:[#allocation2 + $0x78] sm:$0xf] %v1034
        %s1037 = scalar_lea.vmem %s1, 32
        %v1038 = vld [vmem:[%s1037] sm:$0xff]
        %v1039 = vld [vmem:[%s1037 + $0x8] sm:$0xff]
        %s1040 = scalar_lea.vmem %s2, 4
        %v1041 = vld [vmem:[%s1040] sm:$0xf]
        %s1042 = scalar_lea.vmem %s3, 4
        %v1043 = vld [vmem:[%s1042] sm:$0xf]
        %v1044 = vld [vmem:[#allocation2 + $0x68] sm:$0xff]
        %v1045 = vld [vmem:[#allocation2 + $0x70] sm:$0xff]
        %v1046 = vld [vmem:[#allocation2 + $0x78] sm:$0xff]
        %v1047 = vld [vmem:[#allocation2 + $0x98] sm:$0xff]
        %v1048 = vld [vmem:[#allocation2 + $0xa0] sm:$0xff]
        %v1049 = vld [vmem:[#allocation2 + $0xa8] sm:$0xff]
        %1051 = vset.pattern.permute.xlu0 0
        %1052 = vperm.xlu0 %1051, %v1038
        %v1053 = vpop.permute.xlu0 %1052
        %1056 = vset.pattern.permute.xlu0 0
        %1057 = vperm.xlu0 %1056, %v1039
        %v1058 = vpop.permute.xlu0 %1057
        %v1060 = vmul.f32 %v1044, %v1053
        %v1061 = vmul.f32 %v1045, %v1053
        %v1062 = vmul.f32 %v1046, %v1053
        %v1063 = vmul.f32 %v1047, %v1058
        %v1064 = vmul.f32 %v1048, %v1058
        %v1065 = vmul.f32 %v1049, %v1058
        %1066 = vset.pattern.permute.xlu0 3
        %1067 = vperm.xlu0 %1066, %v1038
        %v1068 = vpop.permute.xlu0 %1067
        %1070 = vset.pattern.permute.xlu0 3
        %1071 = vperm.xlu0 %1070, %v1039
        %v1072 = vpop.permute.xlu0 %1071
        %v1074 = vmul.f32 %v1044, %v1068
        %v1075 = vmul.f32 %v1045, %v1068
        %v1076 = vmul.f32 %v1046, %v1068
        %v1077 = vmul.f32 %v1047, %v1072
        %v1078 = vmul.f32 %v1048, %v1072
        %v1079 = vmul.f32 %v1049, %v1072
        %1086 = vrot.lane.b32.xlu0 %v1074, 96
        %v1087 = vpop.permute.xlu0 %1086
        %1088 = vrot.lane.b32.xlu0 %v1075, 96
        %v1089 = vpop.permute.xlu0 %1088
        %1090 = vrot.lane.b32.xlu0 %v1076, 96
        %v1091 = vpop.permute.xlu0 %1090
        %1092 = vrot.lane.b32.xlu0 %v1077, 96
        %v1093 = vpop.permute.xlu0 %1092
        %1094 = vrot.lane.b32.xlu0 %v1078, 96
        %v1095 = vpop.permute.xlu0 %1094
        %1096 = vrot.lane.b32.xlu0 %v1079, 96
        %v1097 = vpop.permute.xlu0 %1096
        %v1098 = vsel %vm323, %v1087, %v1089
        %v1099 = vsel %vm323, %v1089, %v1091
        %v1100 = vsel %vm323, %v1093, %v1095
        %v1101 = vsel %vm323, %v1095, %v1097
        %v1108 = vadd.f32 %v1060, %v1098
        %v1109 = vadd.f32 %v1061, %v1099
        %v1110 = vadd.f32 %v1062, %v1091
        %v1111 = vadd.f32 %v1063, %v1100
        %v1112 = vadd.f32 %v1064, %v1101
        %v1113 = vadd.f32 %v1065, %v1097
        %v1114 = vld [vmem:[#allocation2 + $0x70] sm:$0xff]
        %v1115 = vld [vmem:[#allocation2 + $0x78] sm:$0xff]
        %v1116 = vld [vmem:[#allocation2 + $0x80] sm:$0xff]
        %v1117 = vld [vmem:[#allocation2 + $0xa0] sm:$0xff]
        %v1118 = vld [vmem:[#allocation2 + $0xa8] sm:$0xff]
        %v1119 = vld [vmem:[#allocation2 + $0xb0] sm:$0xff]
        %1120 = vset.pattern.permute.xlu0 6
        %1121 = vperm.xlu0 %1120, %v1038
        %v1122 = vpop.permute.xlu0 %1121
        %1124 = vset.pattern.permute.xlu0 6
        %1125 = vperm.xlu0 %1124, %v1039
        %v1126 = vpop.permute.xlu0 %1125
        %v1128 = vmul.f32 %v1114, %v1122
        %v1129 = vmul.f32 %v1115, %v1122
        %v1130 = vmul.f32 %v1116, %v1122
        %v1131 = vmul.f32 %v1117, %v1126
        %v1132 = vmul.f32 %v1118, %v1126
        %v1133 = vmul.f32 %v1119, %v1126
        %1140 = vrot.lane.b32.xlu0 %v1128, 64
        %v1141 = vpop.permute.xlu0 %1140
        %1142 = vrot.lane.b32.xlu0 %v1129, 64
        %v1143 = vpop.permute.xlu0 %1142
        %1144 = vrot.lane.b32.xlu0 %v1130, 64
        %v1145 = vpop.permute.xlu0 %1144
        %1146 = vrot.lane.b32.xlu0 %v1131, 64
        %v1147 = vpop.permute.xlu0 %1146
        %1148 = vrot.lane.b32.xlu0 %v1132, 64
        %v1149 = vpop.permute.xlu0 %1148
        %1150 = vrot.lane.b32.xlu0 %v1133, 64
        %v1151 = vpop.permute.xlu0 %1150
        %vm1152 = vcmask 523264
        %v1153 = vsel %vm1152, %v1141, %v1143
        %v1154 = vsel %vm1152, %v1143, %v1145
        %v1155 = vsel %vm1152, %v1147, %v1149
        %v1156 = vsel %vm1152, %v1149, %v1151
        %v1163 = vadd.f32 %v1108, %v1141
        %v1164 = vadd.f32 %v1109, %v1153
        %v1165 = vadd.f32 %v1110, %v1154
        %v1166 = vadd.f32 %v1111, %v1147
        %v1167 = vadd.f32 %v1112, %v1155
        %v1168 = vadd.f32 %v1113, %v1156
        %1169 = vrot.lane.b32.xlu0 %v257, 95
        %v1170 = vpop.permute.xlu0 %1169
        %1171 = vrot.lane.b32.xlu0 %v258, 95
        %v1172 = vpop.permute.xlu0 %1171
        %vm1173 = vcmask 777216
        %v1174 = vsel %vm1173, %v1170, %v1172
        %v1178 = vmul.f32 %v1163, %v1170
        %v1179 = vmul.f32 %v1164, %v1174
        %v1180 = vmul.f32 %v1165, %v1172
        %v1181 = vmul.f32 %v1166, %v1170
        %v1182 = vmul.f32 %v1167, %v1174
        %v1183 = vmul.f32 %v1168, %v1172
        %1184 = vset.pattern.permute.xlu0 1
        %1185 = vperm.xlu0 %1184, %v1038
        %v1186 = vpop.permute.xlu0 %1185
        %1188 = vset.pattern.permute.xlu0 1
        %1189 = vperm.xlu0 %1188, %v1039
        %v1190 = vpop.permute.xlu0 %1189
        %v1192 = vmul.f32 %v1044, %v1186
        %v1193 = vmul.f32 %v1045, %v1186
        %v1194 = vmul.f32 %v1046, %v1186
        %v1195 = vmul.f32 %v1047, %v1190
        %v1196 = vmul.f32 %v1048, %v1190
        %v1197 = vmul.f32 %v1049, %v1190
        %1198 = vset.pattern.permute.xlu0 4
        %1199 = vperm.xlu0 %1198, %v1038
        %v1200 = vpop.permute.xlu0 %1199
        %1202 = vset.pattern.permute.xlu0 4
        %1203 = vperm.xlu0 %1202, %v1039
        %v1204 = vpop.permute.xlu0 %1203
        %v1206 = vmul.f32 %v1045, %v1200
        %v1207 = vmul.f32 %v1046, %v1200
        %v1208 = vmul.f32 %v1048, %v1204
        %v1209 = vmul.f32 %v1049, %v1204
        %1214 = vrot.lane.b32.xlu0 %v1206, 96
        %v1215 = vpop.permute.xlu0 %1214
        %1216 = vrot.lane.b32.xlu0 %v1207, 96
        %v1217 = vpop.permute.xlu0 %1216
        %1218 = vrot.lane.b32.xlu0 %v1208, 96
        %v1219 = vpop.permute.xlu0 %1218
        %1220 = vrot.lane.b32.xlu0 %v1209, 96
        %v1221 = vpop.permute.xlu0 %1220
        %v1222 = vsel %vm323, %v1215, %v1217
        %v1223 = vsel %vm323, %v1219, %v1221
        %v1230 = vadd.f32 %v1192, %v1215
        %v1231 = vadd.f32 %v1193, %v1222
        %v1232 = vadd.f32 %v1194, %v1217
        %v1233 = vadd.f32 %v1195, %v1219
        %v1234 = vadd.f32 %v1196, %v1223
        %v1235 = vadd.f32 %v1197, %v1221
        %1236 = vset.pattern.permute.xlu0 7
        %1237 = vperm.xlu0 %1236, %v1038
        %v1238 = vpop.permute.xlu0 %1237
        %1240 = vset.pattern.permute.xlu0 7
        %1241 = vperm.xlu0 %1240, %v1039
        %v1242 = vpop.permute.xlu0 %1241
        %v1244 = vmul.f32 %v1114, %v1238
        %v1245 = vmul.f32 %v1115, %v1238
        %v1246 = vmul.f32 %v1116, %v1238
        %v1247 = vmul.f32 %v1117, %v1242
        %v1248 = vmul.f32 %v1118, %v1242
        %v1249 = vmul.f32 %v1119, %v1242
        %1256 = vrot.lane.b32.xlu0 %v1244, 64
        %v1257 = vpop.permute.xlu0 %1256
        %1258 = vrot.lane.b32.xlu0 %v1245, 64
        %v1259 = vpop.permute.xlu0 %1258
        %1260 = vrot.lane.b32.xlu0 %v1246, 64
        %v1261 = vpop.permute.xlu0 %1260
        %1262 = vrot.lane.b32.xlu0 %v1247, 64
        %v1263 = vpop.permute.xlu0 %1262
        %1264 = vrot.lane.b32.xlu0 %v1248, 64
        %v1265 = vpop.permute.xlu0 %1264
        %1266 = vrot.lane.b32.xlu0 %v1249, 64
        %v1267 = vpop.permute.xlu0 %1266
        %v1268 = vsel %vm1152, %v1257, %v1259
        %v1269 = vsel %vm1152, %v1259, %v1261
        %v1270 = vsel %vm1152, %v1263, %v1265
        %v1271 = vsel %vm1152, %v1265, %v1267
        %v1278 = vadd.f32 %v1230, %v1257
        %v1279 = vadd.f32 %v1231, %v1268
        %v1280 = vadd.f32 %v1232, %v1269
        %v1281 = vadd.f32 %v1233, %v1263
        %v1282 = vadd.f32 %v1234, %v1270
        %v1283 = vadd.f32 %v1235, %v1271
        %1290 = vrot.lane.b32.xlu0 %v1278, 127
        %v1291 = vpop.permute.xlu0 %1290
        %1292 = vrot.lane.b32.xlu0 %v1279, 127
        %v1293 = vpop.permute.xlu0 %1292
        %1294 = vrot.lane.b32.xlu0 %v1280, 127
        %v1295 = vpop.permute.xlu0 %1294
        %1296 = vrot.lane.b32.xlu0 %v1281, 127
        %v1297 = vpop.permute.xlu0 %1296
        %1298 = vrot.lane.b32.xlu0 %v1282, 127
        %v1299 = vpop.permute.xlu0 %1298
        %1300 = vrot.lane.b32.xlu0 %v1283, 127
        %v1301 = vpop.permute.xlu0 %1300
        %v1302 = vsel %vm405, %v1291, %v1293
        %v1303 = vsel %vm405, %v1293, %v1295
        %v1304 = vsel %vm405, %v1297, %v1299
        %v1305 = vsel %vm405, %v1299, %v1301
        %v1312 = vadd.f32 %v1178, %v1302
        %v1313 = vadd.f32 %v1179, %v1303
        %v1314 = vadd.f32 %v1180, %v1295
        %v1315 = vadd.f32 %v1181, %v1304
        %v1316 = vadd.f32 %v1182, %v1305
        %v1317 = vadd.f32 %v1183, %v1301
        %1318 = vset.pattern.permute.xlu0 2
        %1319 = vperm.xlu0 %1318, %v1038
        %v1320 = vpop.permute.xlu0 %1319
        %1322 = vset.pattern.permute.xlu0 2
        %1323 = vperm.xlu0 %1322, %v1039
        %v1324 = vpop.permute.xlu0 %1323
        %v1326 = vmul.f32 %v1044, %v1320
        %v1327 = vmul.f32 %v1045, %v1320
        %v1328 = vmul.f32 %v1046, %v1320
        %v1329 = vmul.f32 %v1047, %v1324
        %v1330 = vmul.f32 %v1048, %v1324
        %v1331 = vmul.f32 %v1049, %v1324
        %1332 = vset.pattern.permute.xlu0 5
        %1333 = vperm.xlu0 %1332, %v1038
        %v1334 = vpop.permute.xlu0 %1333
        %1336 = vset.pattern.permute.xlu0 5
        %1337 = vperm.xlu0 %1336, %v1039
        %v1338 = vpop.permute.xlu0 %1337
        %v1340 = vmul.f32 %v1114, %v1334
        %v1341 = vmul.f32 %v1115, %v1334
        %v1342 = vmul.f32 %v1116, %v1334
        %v1343 = vmul.f32 %v1117, %v1338
        %v1344 = vmul.f32 %v1118, %v1338
        %v1345 = vmul.f32 %v1119, %v1338
        %1352 = vrot.lane.b32.xlu0 %v1340, 96
        %v1353 = vpop.permute.xlu0 %1352
        %1354 = vrot.lane.b32.xlu0 %v1341, 96
        %v1355 = vpop.permute.xlu0 %1354
        %1356 = vrot.lane.b32.xlu0 %v1342, 96
        %v1357 = vpop.permute.xlu0 %1356
        %1358 = vrot.lane.b32.xlu0 %v1343, 96
        %v1359 = vpop.permute.xlu0 %1358
        %1360 = vrot.lane.b32.xlu0 %v1344, 96
        %v1361 = vpop.permute.xlu0 %1360
        %1362 = vrot.lane.b32.xlu0 %v1345, 96
        %v1363 = vpop.permute.xlu0 %1362
        %v1364 = vsel %vm323, %v1353, %v1355
        %v1365 = vsel %vm323, %v1355, %v1357
        %v1366 = vsel %vm323, %v1359, %v1361
        %v1367 = vsel %vm323, %v1361, %v1363
        %v1374 = vadd.f32 %v1326, %v1353
        %v1375 = vadd.f32 %v1327, %v1364
        %v1376 = vadd.f32 %v1328, %v1365
        %v1377 = vadd.f32 %v1329, %v1359
        %v1378 = vadd.f32 %v1330, %v1366
        %v1379 = vadd.f32 %v1331, %v1367
        %1380 = vset.pattern.permute.xlu0 8
        %1381 = vperm.xlu0 %1380, %v1038
        %v1382 = vpop.permute.xlu0 %1381
        %1384 = vset.pattern.permute.xlu0 8
        %1385 = vperm.xlu0 %1384, %v1039
        %v1386 = vpop.permute.xlu0 %1385
        %v1388 = vmul.f32 %v1114, %v1382
        %v1389 = vmul.f32 %v1115, %v1382
        %v1390 = vmul.f32 %v1116, %v1382
        %v1391 = vmul.f32 %v1117, %v1386
        %v1392 = vmul.f32 %v1118, %v1386
        %v1393 = vmul.f32 %v1119, %v1386
        %1400 = vrot.lane.b32.xlu0 %v1388, 64
        %v1401 = vpop.permute.xlu0 %1400
        %1402 = vrot.lane.b32.xlu0 %v1389, 64
        %v1403 = vpop.permute.xlu0 %1402
        %1404 = vrot.lane.b32.xlu0 %v1390, 64
        %v1405 = vpop.permute.xlu0 %1404
        %1406 = vrot.lane.b32.xlu0 %v1391, 64
        %v1407 = vpop.permute.xlu0 %1406
        %1408 = vrot.lane.b32.xlu0 %v1392, 64
        %v1409 = vpop.permute.xlu0 %1408
        %1410 = vrot.lane.b32.xlu0 %v1393, 64
        %v1411 = vpop.permute.xlu0 %1410
        %v1412 = vsel %vm1152, %v1401, %v1403
        %v1413 = vsel %vm1152, %v1403, %v1405
        %v1414 = vsel %vm1152, %v1407, %v1409
        %v1415 = vsel %vm1152, %v1409, %v1411
        %v1422 = vadd.f32 %v1374, %v1401
        %v1423 = vadd.f32 %v1375, %v1412
        %v1424 = vadd.f32 %v1376, %v1413
        %v1425 = vadd.f32 %v1377, %v1407
        %v1426 = vadd.f32 %v1378, %v1414
        %v1427 = vadd.f32 %v1379, %v1415
        %1428 = vrot.lane.b32.xlu0 %v263, 97
        %v1429 = vpop.permute.xlu0 %1428
        %1430 = vrot.lane.b32.xlu0 %v264, 97
        %v1431 = vpop.permute.xlu0 %1430
        %vm1432 = vcmask 793600
        %v1433 = vsel %vm1432, %v1429, %v1431
        %v1437 = vmul.f32 %v1422, %v1429
        %v1438 = vmul.f32 %v1423, %v1433
        %v1439 = vmul.f32 %v1424, %v1431
        %v1440 = vmul.f32 %v1425, %v1429
        %v1441 = vmul.f32 %v1426, %v1433
        %v1442 = vmul.f32 %v1427, %v1431
        %1449 = vrot.lane.b32.xlu0 %v1437, 126
        %v1450 = vpop.permute.xlu0 %1449
        %1451 = vrot.lane.b32.xlu0 %v1438, 126
        %v1452 = vpop.permute.xlu0 %1451
        %1453 = vrot.lane.b32.xlu0 %v1439, 126
        %v1454 = vpop.permute.xlu0 %1453
        %1455 = vrot.lane.b32.xlu0 %v1440, 126
        %v1456 = vpop.permute.xlu0 %1455
        %1457 = vrot.lane.b32.xlu0 %v1441, 126
        %v1458 = vpop.permute.xlu0 %1457
        %1459 = vrot.lane.b32.xlu0 %v1442, 126
        %v1460 = vpop.permute.xlu0 %1459
        %v1461 = vsel %vm492, %v1450, %v1452
        %v1462 = vsel %vm492, %v1452, %v1454
        %v1463 = vsel %vm492, %v1456, %v1458
        %v1464 = vsel %vm492, %v1458, %v1460
        %v1471 = vadd.f32 %v1312, %v1461
        %v1472 = vadd.f32 %v1313, %v1462
        %v1473 = vadd.f32 %v1314, %v1454
        %v1474 = vadd.f32 %v1315, %v1463
        %v1475 = vadd.f32 %v1316, %v1464
        %v1476 = vadd.f32 %v1317, %v1460
        %1478 = vset.pattern.permute.xlu0 0
        %1479 = vperm.xlu0 %1478, %v1043
        %v1480 = vpop.permute.xlu0 %1479
        %1488 = vrot.lane.b32.xlu0 %v1471, 33
        %v1489 = vpop.permute.xlu0 %1488
        %1490 = vrot.lane.b32.xlu0 %v1472, 33
        %v1491 = vpop.permute.xlu0 %1490
        %1492 = vrot.lane.b32.xlu0 %v1473, 33
        %v1493 = vpop.permute.xlu0 %1492
        %1494 = vrot.lane.b32.xlu0 %v1474, 33
        %v1495 = vpop.permute.xlu0 %1494
        %1496 = vrot.lane.b32.xlu0 %v1475, 33
        %v1497 = vpop.permute.xlu0 %1496
        %1498 = vrot.lane.b32.xlu0 %v1476, 33
        %v1499 = vpop.permute.xlu0 %1498
        %vm1500 = vcmask 269312
        %v1501 = vsel %vm1500, %v1489, %v1491
        %v1502 = vsel %vm1500, %v1491, %v1493
        %v1503 = vsel %vm1500, %v1495, %v1497
        %v1504 = vsel %vm1500, %v1497, %v1499
        %vm1509 = vcmask 130048
        %v1511 = vsel %vm1509, %v1041, 0
        %v1513 = vand.u32 %v1502, 4294901760
        %1514 = vmatprep.subr.mxu0 %v1513
        %v1515 = vand.u32 %v1501, 4294901760
        %1516 = vmatpush1.msra.mxu0 %v1515
        %v1517 = vand.u32 %v1504, 4294901760
        %1518 = vmatprep.subr.mxu0 %v1517
        %v1519 = vand.u32 %v1503, 4294901760
        %1520 = vmatpush1.msra.mxu0 %v1519
        %1521 = vmatprep.subr.mxu0 0.0
        %1522 = vmatpush1.msra.mxu0 0.0
        %1523 = vmatprep.subr.mxu0 0.0
        %1524 = vmatpush1.msra.mxu0 0.0
        %1525 = vmatprep.subr.mxu0 0.0
        %1526 = vmatpush1.msra.mxu0 0.0
        %1527 = vmatprep.subr.mxu0 0.0
        %1528 = vmatpush1.msra.mxu0 0.0
        %1529 = vmatprep.subr.mxu0 0.0
        %1530 = vmatpush1.msra.mxu0 0.0
        %1531 = vmatprep.subr.mxu0 0.0
        %1532 = vmatpush1.msra.mxu0 0.0
        %1533 = vmatprep.subr.mxu0 0.0
        %1534 = vmatpush1.msra.mxu0 0.0
        %1535 = vmatprep.subr.mxu0 0.0
        %1536 = vmatpush1.msra.mxu0 0.0
        %1537 = vmatprep.subr.mxu0 0.0
        %1538 = vmatpush1.msra.mxu0 0.0
        %1539 = vmatprep.subr.mxu0 0.0
        %1540 = vmatpush1.msra.mxu0 0.0
        %1541 = vmatprep.subr.mxu0 0.0
        %1542 = vmatpush1.msra.mxu0 0.0
        %1543 = vmatprep.subr.mxu0 0.0
        %1544 = vmatpush1.msra.mxu0 0.0
        %1545 = vmatprep.subr.mxu0 0.0
        %1546 = vmatpush1.msra.mxu0 0.0
        %1547 = vmatprep.subr.mxu0 0.0
        %1548 = vmatpush1.msra.mxu0 0.0
        %1549 = vmatprep.subr.mxu0 0.0
        %1550 = vmatpush1.msra.mxu0 0.0
        %1551 = vmatprep.subr.mxu0 0.0
        %1552 = vmatpush1.msra.mxu0 0.0
        %1553 = vmatprep.subr.mxu0 0.0
        %1554 = vmatpush1.msra.mxu0 0.0
        %1555 = vmatprep.subr.mxu0 0.0
        %1556 = vmatpush1.msra.mxu0 0.0
        %1557 = vmatprep.subr.mxu0 0.0
        %1558 = vmatpush1.msra.mxu0 0.0
        %1559 = vmatprep.subr.mxu0 0.0
        %1560 = vmatpush1.msra.mxu0 0.0
        %1561 = vmatprep.subr.mxu0 0.0
        %1562 = vmatpush1.msra.mxu0 0.0
        %1563 = vmatprep.subr.mxu0 0.0
        %1564 = vmatpush1.msra.mxu0 0.0
        %1565 = vmatprep.subr.mxu0 0.0
        %1566 = vmatpush1.msra.mxu0 0.0
        %1567 = vmatprep.subr.mxu0 0.0
        %1568 = vmatpush1.msra.mxu0 0.0
        %1569 = vmatprep.subr.mxu0 0.0
        %1570 = vmatpush1.msra.mxu0 0.0
        %1571 = vmatprep.subr.mxu0 0.0
        %1572 = vmatpush1.msra.mxu0 0.0
        %1573 = vmatprep.subr.mxu0 0.0
        %1574 = vmatpush1.msra.mxu0 0.0
        %1575 = vmatprep.subr.mxu0 0.0
        %1576 = vmatpush1.msra.mxu0 0.0
        %1577 = vmatprep.subr.mxu0 0.0
        %1578 = vmatpush1.msra.mxu0 0.0
        %1579 = vmatprep.subr.mxu0 0.0
        %1580 = vmatpush1.msra.mxu0 0.0
        %1581 = vmatprep.mubr.f32.mxu0 0.0
        %v1582 = vand.u32 %v1511, 4294901760
        %v1583 = vsub.f32 %v1511, %v1582
        %v1584 = vand.u32 %v1583, 4294901760
        %v1585 = vsub.f32 %v1583, %v1584
        %v1586 = vand.u32 %v1585, 4294901760
        %1587 = vmatmul.mubr.f32.gmra.mrb[0].mxu0 %v1586
        %v1588 = vpop.f32.mrb[0].mxu0
        %v1589 = vadd.f32 %v1480, %v1588
        %v1590 = vpop.f32.mrb[0].mxu0
        %v1591 = vadd.f32 %v1480, %v1590
        %1592 = vdwg.mxu0
        %v1593 = vand.u32 %v1502, 4294901760
        %v1594 = vsub.f32 %v1502, %v1593
        %v1595 = vand.u32 %v1594, 4294901760
        %v1596 = vsub.f32 %v1594, %v1595
        %v1597 = vand.u32 %v1596, 4294901760
        %1598 = vmatprep.subr.mxu0 %v1597
        %v1599 = vand.u32 %v1501, 4294901760
        %v1600 = vsub.f32 %v1501, %v1599
        %v1601 = vand.u32 %v1600, 4294901760
        %v1602 = vsub.f32 %v1600, %v1601
        %v1603 = vand.u32 %v1602, 4294901760
        %1604 = vmatpush1.msra.mxu0 %v1603
        %v1605 = vand.u32 %v1504, 4294901760
        %v1606 = vsub.f32 %v1504, %v1605
        %v1607 = vand.u32 %v1606, 4294901760
        %v1608 = vsub.f32 %v1606, %v1607
        %v1609 = vand.u32 %v1608, 4294901760
        %1610 = vmatprep.subr.mxu0 %v1609
        %v1611 = vand.u32 %v1503, 4294901760
        %v1612 = vsub.f32 %v1503, %v1611
        %v1613 = vand.u32 %v1612, 4294901760
        %v1614 = vsub.f32 %v1612, %v1613
        %v1615 = vand.u32 %v1614, 4294901760
        %1616 = vmatpush1.msra.mxu0 %v1615
        %1617 = vmatprep.subr.mxu0 0.0
        %1618 = vmatpush1.msra.mxu0 0.0
        %1619 = vmatprep.subr.mxu0 0.0
        %1620 = vmatpush1.msra.mxu0 0.0
        %1621 = vmatprep.subr.mxu0 0.0
        %1622 = vmatpush1.msra.mxu0 0.0
        %1623 = vmatprep.subr.mxu0 0.0
        %1624 = vmatpush1.msra.mxu0 0.0
        %1625 = vmatprep.subr.mxu0 0.0
        %1626 = vmatpush1.msra.mxu0 0.0
        %1627 = vmatprep.subr.mxu0 0.0
        %1628 = vmatpush1.msra.mxu0 0.0
        %1629 = vmatprep.subr.mxu0 0.0
        %1630 = vmatpush1.msra.mxu0 0.0
        %1631 = vmatprep.subr.mxu0 0.0
        %1632 = vmatpush1.msra.mxu0 0.0
        %1633 = vmatprep.subr.mxu0 0.0
        %1634 = vmatpush1.msra.mxu0 0.0
        %1635 = vmatprep.subr.mxu0 0.0
        %1636 = vmatpush1.msra.mxu0 0.0
        %1637 = vmatprep.subr.mxu0 0.0
        %1638 = vmatpush1.msra.mxu0 0.0
        %1639 = vmatprep.subr.mxu0 0.0
        %1640 = vmatpush1.msra.mxu0 0.0
        %1641 = vmatprep.subr.mxu0 0.0
        %1642 = vmatpush1.msra.mxu0 0.0
        %1643 = vmatprep.subr.mxu0 0.0
        %1644 = vmatpush1.msra.mxu0 0.0
        %1645 = vmatprep.subr.mxu0 0.0
        %1646 = vmatpush1.msra.mxu0 0.0
        %1647 = vmatprep.subr.mxu0 0.0
        %1648 = vmatpush1.msra.mxu0 0.0
        %1649 = vmatprep.subr.mxu0 0.0
        %1650 = vmatpush1.msra.mxu0 0.0
        %1651 = vmatprep.subr.mxu0 0.0
        %1652 = vmatpush1.msra.mxu0 0.0
        %1653 = vmatprep.subr.mxu0 0.0
        %1654 = vmatpush1.msra.mxu0 0.0
        %1655 = vmatprep.subr.mxu0 0.0
        %1656 = vmatpush1.msra.mxu0 0.0
        %1657 = vmatprep.subr.mxu0 0.0
        %1658 = vmatpush1.msra.mxu0 0.0
        %1659 = vmatprep.subr.mxu0 0.0
        %1660 = vmatpush1.msra.mxu0 0.0
        %1661 = vmatprep.subr.mxu0 0.0
        %1662 = vmatpush1.msra.mxu0 0.0
        %1663 = vmatprep.subr.mxu0 0.0
        %1664 = vmatpush1.msra.mxu0 0.0
        %1665 = vmatprep.subr.mxu0 0.0
        %1666 = vmatpush1.msra.mxu0 0.0
        %1667 = vmatprep.subr.mxu0 0.0
        %1668 = vmatpush1.msra.mxu0 0.0
        %1669 = vmatprep.subr.mxu0 0.0
        %1670 = vmatpush1.msra.mxu0 0.0
        %1671 = vmatprep.subr.mxu0 0.0
        %1672 = vmatpush1.msra.mxu0 0.0
        %1673 = vmatprep.subr.mxu0 0.0
        %1674 = vmatpush1.msra.mxu0 0.0
        %1675 = vmatprep.subr.mxu0 0.0
        %1676 = vmatpush1.msra.mxu0 0.0
        %1677 = vmatprep.mubr.f32.mxu0 0.0
        %v1678 = vand.u32 %v1511, 4294901760
        %1679 = vmatmul.mubr.f32.gmra.mrb[0].mxu0 %v1678
        %v1680 = vpop.f32.mrb[0].mxu0
        %v1681 = vadd.f32 %v1589, %v1680
        %v1682 = vpop.f32.mrb[0].mxu0
        %v1683 = vadd.f32 %v1591, %v1682
        %1684 = vdwg.mxu0
        %v1685 = vand.u32 %v1502, 4294901760
        %v1686 = vsub.f32 %v1502, %v1685
        %1687 = vmatprep.subr.mxu0 %v1686
        %v1688 = vand.u32 %v1501, 4294901760
        %v1689 = vsub.f32 %v1501, %v1688
        %1690 = vmatpush1.msra.mxu0 %v1689
        %v1691 = vand.u32 %v1504, 4294901760
        %v1692 = vsub.f32 %v1504, %v1691
        %1693 = vmatprep.subr.mxu0 %v1692
        %v1694 = vand.u32 %v1503, 4294901760
        %v1695 = vsub.f32 %v1503, %v1694
        %1696 = vmatpush1.msra.mxu0 %v1695
        %1697 = vmatprep.subr.mxu0 0.0
        %1698 = vmatpush1.msra.mxu0 0.0
        %1699 = vmatprep.subr.mxu0 0.0
        %1700 = vmatpush1.msra.mxu0 0.0
        %1701 = vmatprep.subr.mxu0 0.0
        %1702 = vmatpush1.msra.mxu0 0.0
        %1703 = vmatprep.subr.mxu0 0.0
        %1704 = vmatpush1.msra.mxu0 0.0
        %1705 = vmatprep.subr.mxu0 0.0
        %1706 = vmatpush1.msra.mxu0 0.0
        %1707 = vmatprep.subr.mxu0 0.0
        %1708 = vmatpush1.msra.mxu0 0.0
        %1709 = vmatprep.subr.mxu0 0.0
        %1710 = vmatpush1.msra.mxu0 0.0
        %1711 = vmatprep.subr.mxu0 0.0
        %1712 = vmatpush1.msra.mxu0 0.0
        %1713 = vmatprep.subr.mxu0 0.0
        %1714 = vmatpush1.msra.mxu0 0.0
        %1715 = vmatprep.subr.mxu0 0.0
        %1716 = vmatpush1.msra.mxu0 0.0
        %1717 = vmatprep.subr.mxu0 0.0
        %1718 = vmatpush1.msra.mxu0 0.0
        %1719 = vmatprep.subr.mxu0 0.0
        %1720 = vmatpush1.msra.mxu0 0.0
        %1721 = vmatprep.subr.mxu0 0.0
        %1722 = vmatpush1.msra.mxu0 0.0
        %1723 = vmatprep.subr.mxu0 0.0
        %1724 = vmatpush1.msra.mxu0 0.0
        %1725 = vmatprep.subr.mxu0 0.0
        %1726 = vmatpush1.msra.mxu0 0.0
        %1727 = vmatprep.subr.mxu0 0.0
        %1728 = vmatpush1.msra.mxu0 0.0
        %1729 = vmatprep.subr.mxu0 0.0
        %1730 = vmatpush1.msra.mxu0 0.0
        %1731 = vmatprep.subr.mxu0 0.0
        %1732 = vmatpush1.msra.mxu0 0.0
        %1733 = vmatprep.subr.mxu0 0.0
        %1734 = vmatpush1.msra.mxu0 0.0
        %1735 = vmatprep.subr.mxu0 0.0
        %1736 = vmatpush1.msra.mxu0 0.0
        %1737 = vmatprep.subr.mxu0 0.0
        %1738 = vmatpush1.msra.mxu0 0.0
        %1739 = vmatprep.subr.mxu0 0.0
        %1740 = vmatpush1.msra.mxu0 0.0
        %1741 = vmatprep.subr.mxu0 0.0
        %1742 = vmatpush1.msra.mxu0 0.0
        %1743 = vmatprep.subr.mxu0 0.0
        %1744 = vmatpush1.msra.mxu0 0.0
        %1745 = vmatprep.subr.mxu0 0.0
        %1746 = vmatpush1.msra.mxu0 0.0
        %1747 = vmatprep.subr.mxu0 0.0
        %1748 = vmatpush1.msra.mxu0 0.0
        %1749 = vmatprep.subr.mxu0 0.0
        %1750 = vmatpush1.msra.mxu0 0.0
        %1751 = vmatprep.subr.mxu0 0.0
        %1752 = vmatpush1.msra.mxu0 0.0
        %1753 = vmatprep.subr.mxu0 0.0
        %1754 = vmatpush1.msra.mxu0 0.0
        %1755 = vmatprep.subr.mxu0 0.0
        %1756 = vmatpush1.msra.mxu0 0.0
        %1757 = vmatprep.mubr.f32.mxu0 0.0
        %v1758 = vand.u32 %v1511, 4294901760
        %v1759 = vsub.f32 %v1511, %v1758
        %1760 = vmatmul.mubr.f32.gmra.mrb[0].mxu0 %v1759
        %v1761 = vpop.f32.mrb[0].mxu0
        %v1762 = vadd.f32 %v1681, %v1761
        %v1763 = vpop.f32.mrb[0].mxu0
        %v1764 = vadd.f32 %v1683, %v1763
        %1765 = vdwg.mxu0
        %v1766 = vand.u32 %v1502, 4294901760
        %1767 = vmatprep.subr.mxu0 %v1766
        %v1768 = vand.u32 %v1501, 4294901760
        %1769 = vmatpush1.msra.mxu0 %v1768
        %v1770 = vand.u32 %v1504, 4294901760
        %1771 = vmatprep.subr.mxu0 %v1770
        %v1772 = vand.u32 %v1503, 4294901760
        %1773 = vmatpush1.msra.mxu0 %v1772
        %1774 = vmatprep.subr.mxu0 0.0
        %1775 = vmatpush1.msra.mxu0 0.0
        %1776 = vmatprep.subr.mxu0 0.0
        %1777 = vmatpush1.msra.mxu0 0.0
        %1778 = vmatprep.subr.mxu0 0.0
        %1779 = vmatpush1.msra.mxu0 0.0
        %1780 = vmatprep.subr.mxu0 0.0
        %1781 = vmatpush1.msra.mxu0 0.0
        %1782 = vmatprep.subr.mxu0 0.0
        %1783 = vmatpush1.msra.mxu0 0.0
        %1784 = vmatprep.subr.mxu0 0.0
        %1785 = vmatpush1.msra.mxu0 0.0
        %1786 = vmatprep.subr.mxu0 0.0
        %1787 = vmatpush1.msra.mxu0 0.0
        %1788 = vmatprep.subr.mxu0 0.0
        %1789 = vmatpush1.msra.mxu0 0.0
        %1790 = vmatprep.subr.mxu0 0.0
        %1791 = vmatpush1.msra.mxu0 0.0
        %1792 = vmatprep.subr.mxu0 0.0
        %1793 = vmatpush1.msra.mxu0 0.0
        %1794 = vmatprep.subr.mxu0 0.0
        %1795 = vmatpush1.msra.mxu0 0.0
        %1796 = vmatprep.subr.mxu0 0.0
        %1797 = vmatpush1.msra.mxu0 0.0
        %1798 = vmatprep.subr.mxu0 0.0
        %1799 = vmatpush1.msra.mxu0 0.0
        %1800 = vmatprep.subr.mxu0 0.0
        %1801 = vmatpush1.msra.mxu0 0.0
        %1802 = vmatprep.subr.mxu0 0.0
        %1803 = vmatpush1.msra.mxu0 0.0
        %1804 = vmatprep.subr.mxu0 0.0
        %1805 = vmatpush1.msra.mxu0 0.0
        %1806 = vmatprep.subr.mxu0 0.0
        %1807 = vmatpush1.msra.mxu0 0.0
        %1808 = vmatprep.subr.mxu0 0.0
        %1809 = vmatpush1.msra.mxu0 0.0
        %1810 = vmatprep.subr.mxu0 0.0
        %1811 = vmatpush1.msra.mxu0 0.0
        %1812 = vmatprep.subr.mxu0 0.0
        %1813 = vmatpush1.msra.mxu0 0.0
        %1814 = vmatprep.subr.mxu0 0.0
        %1815 = vmatpush1.msra.mxu0 0.0
        %1816 = vmatprep.subr.mxu0 0.0
        %1817 = vmatpush1.msra.mxu0 0.0
        %1818 = vmatprep.subr.mxu0 0.0
        %1819 = vmatpush1.msra.mxu0 0.0
        %1820 = vmatprep.subr.mxu0 0.0
        %1821 = vmatpush1.msra.mxu0 0.0
        %1822 = vmatprep.subr.mxu0 0.0
        %1823 = vmatpush1.msra.mxu0 0.0
        %1824 = vmatprep.subr.mxu0 0.0
        %1825 = vmatpush1.msra.mxu0 0.0
        %1826 = vmatprep.subr.mxu0 0.0
        %1827 = vmatpush1.msra.mxu0 0.0
        %1828 = vmatprep.subr.mxu0 0.0
        %1829 = vmatpush1.msra.mxu0 0.0
        %1830 = vmatprep.subr.mxu0 0.0
        %1831 = vmatpush1.msra.mxu0 0.0
        %1832 = vmatprep.subr.mxu0 0.0
        %1833 = vmatpush1.msra.mxu0 0.0
        %1834 = vmatprep.mubr.f32.mxu0 0.0
        %v1835 = vand.u32 %v1511, 4294901760
        %v1836 = vsub.f32 %v1511, %v1835
        %v1837 = vand.u32 %v1836, 4294901760
        %1838 = vmatmul.mubr.f32.gmra.mrb[0].mxu0 %v1837
        %v1839 = vpop.f32.mrb[0].mxu0
        %v1840 = vadd.f32 %v1762, %v1839
        %v1841 = vpop.f32.mrb[0].mxu0
        %v1842 = vadd.f32 %v1764, %v1841
        %1843 = vdwg.mxu0
        %v1844 = vand.u32 %v1502, 4294901760
        %v1845 = vsub.f32 %v1502, %v1844
        %v1846 = vand.u32 %v1845, 4294901760
        %1847 = vmatprep.subr.mxu0 %v1846
        %v1848 = vand.u32 %v1501, 4294901760
        %v1849 = vsub.f32 %v1501, %v1848
        %v1850 = vand.u32 %v1849, 4294901760
        %1851 = vmatpush1.msra.mxu0 %v1850
        %v1852 = vand.u32 %v1504, 4294901760
        %v1853 = vsub.f32 %v1504, %v1852
        %v1854 = vand.u32 %v1853, 4294901760
        %1855 = vmatprep.subr.mxu0 %v1854
        %v1856 = vand.u32 %v1503, 4294901760
        %v1857 = vsub.f32 %v1503, %v1856
        %v1858 = vand.u32 %v1857, 4294901760
        %1859 = vmatpush1.msra.mxu0 %v1858
        %1860 = vmatprep.subr.mxu0 0.0
        %1861 = vmatpush1.msra.mxu0 0.0
        %1862 = vmatprep.subr.mxu0 0.0
        %1863 = vmatpush1.msra.mxu0 0.0
        %1864 = vmatprep.subr.mxu0 0.0
        %1865 = vmatpush1.msra.mxu0 0.0
        %1866 = vmatprep.subr.mxu0 0.0
        %1867 = vmatpush1.msra.mxu0 0.0
        %1868 = vmatprep.subr.mxu0 0.0
        %1869 = vmatpush1.msra.mxu0 0.0
        %1870 = vmatprep.subr.mxu0 0.0
        %1871 = vmatpush1.msra.mxu0 0.0
        %1872 = vmatprep.subr.mxu0 0.0
        %1873 = vmatpush1.msra.mxu0 0.0
        %1874 = vmatprep.subr.mxu0 0.0
        %1875 = vmatpush1.msra.mxu0 0.0
        %1876 = vmatprep.subr.mxu0 0.0
        %1877 = vmatpush1.msra.mxu0 0.0
        %1878 = vmatprep.subr.mxu0 0.0
        %1879 = vmatpush1.msra.mxu0 0.0
        %1880 = vmatprep.subr.mxu0 0.0
        %1881 = vmatpush1.msra.mxu0 0.0
        %1882 = vmatprep.subr.mxu0 0.0
        %1883 = vmatpush1.msra.mxu0 0.0
        %1884 = vmatprep.subr.mxu0 0.0
        %1885 = vmatpush1.msra.mxu0 0.0
        %1886 = vmatprep.subr.mxu0 0.0
        %1887 = vmatpush1.msra.mxu0 0.0
        %1888 = vmatprep.subr.mxu0 0.0
        %1889 = vmatpush1.msra.mxu0 0.0
        %1890 = vmatprep.subr.mxu0 0.0
        %1891 = vmatpush1.msra.mxu0 0.0
        %1892 = vmatprep.subr.mxu0 0.0
        %1893 = vmatpush1.msra.mxu0 0.0
        %1894 = vmatprep.subr.mxu0 0.0
        %1895 = vmatpush1.msra.mxu0 0.0
        %1896 = vmatprep.subr.mxu0 0.0
        %1897 = vmatpush1.msra.mxu0 0.0
        %1898 = vmatprep.subr.mxu0 0.0
        %1899 = vmatpush1.msra.mxu0 0.0
        %1900 = vmatprep.subr.mxu0 0.0
        %1901 = vmatpush1.msra.mxu0 0.0
        %1902 = vmatprep.subr.mxu0 0.0
        %1903 = vmatpush1.msra.mxu0 0.0
        %1904 = vmatprep.subr.mxu0 0.0
        %1905 = vmatpush1.msra.mxu0 0.0
        %1906 = vmatprep.subr.mxu0 0.0
        %1907 = vmatpush1.msra.mxu0 0.0
        %1908 = vmatprep.subr.mxu0 0.0
        %1909 = vmatpush1.msra.mxu0 0.0
        %1910 = vmatprep.subr.mxu0 0.0
        %1911 = vmatpush1.msra.mxu0 0.0
        %1912 = vmatprep.subr.mxu0 0.0
        %1913 = vmatpush1.msra.mxu0 0.0
        %1914 = vmatprep.subr.mxu0 0.0
        %1915 = vmatpush1.msra.mxu0 0.0
        %1916 = vmatprep.subr.mxu0 0.0
        %1917 = vmatpush1.msra.mxu0 0.0
        %1918 = vmatprep.subr.mxu0 0.0
        %1919 = vmatpush1.msra.mxu0 0.0
        %1920 = vmatprep.mubr.f32.mxu0 0.0
        %v1921 = vand.u32 %v1511, 4294901760
        %1922 = vmatmul.mubr.f32.gmra.mrb[0].mxu0 %v1921
        %v1923 = vpop.f32.mrb[0].mxu0
        %v1924 = vadd.f32 %v1840, %v1923
        %v1925 = vpop.f32.mrb[0].mxu0
        %v1926 = vadd.f32 %v1842, %v1925
        %1927 = vdwg.mxu0
        %v1928 = vand.u32 %v1502, 4294901760
        %1929 = vmatprep.subr.mxu0 %v1928
        %v1930 = vand.u32 %v1501, 4294901760
        %1931 = vmatpush1.msra.mxu0 %v1930
        %v1932 = vand.u32 %v1504, 4294901760
        %1933 = vmatprep.subr.mxu0 %v1932
        %v1934 = vand.u32 %v1503, 4294901760
        %1935 = vmatpush1.msra.mxu0 %v1934
        %1936 = vmatprep.subr.mxu0 0.0
        %1937 = vmatpush1.msra.mxu0 0.0
        %1938 = vmatprep.subr.mxu0 0.0
        %1939 = vmatpush1.msra.mxu0 0.0
        %1940 = vmatprep.subr.mxu0 0.0
        %1941 = vmatpush1.msra.mxu0 0.0
        %1942 = vmatprep.subr.mxu0 0.0
        %1943 = vmatpush1.msra.mxu0 0.0
        %1944 = vmatprep.subr.mxu0 0.0
        %1945 = vmatpush1.msra.mxu0 0.0
        %1946 = vmatprep.subr.mxu0 0.0
        %1947 = vmatpush1.msra.mxu0 0.0
        %1948 = vmatprep.subr.mxu0 0.0
        %1949 = vmatpush1.msra.mxu0 0.0
        %1950 = vmatprep.subr.mxu0 0.0
        %1951 = vmatpush1.msra.mxu0 0.0
        %1952 = vmatprep.subr.mxu0 0.0
        %1953 = vmatpush1.msra.mxu0 0.0
        %1954 = vmatprep.subr.mxu0 0.0
        %1955 = vmatpush1.msra.mxu0 0.0
        %1956 = vmatprep.subr.mxu0 0.0
        %1957 = vmatpush1.msra.mxu0 0.0
        %1958 = vmatprep.subr.mxu0 0.0
        %1959 = vmatpush1.msra.mxu0 0.0
        %1960 = vmatprep.subr.mxu0 0.0
        %1961 = vmatpush1.msra.mxu0 0.0
        %1962 = vmatprep.subr.mxu0 0.0
        %1963 = vmatpush1.msra.mxu0 0.0
        %1964 = vmatprep.subr.mxu0 0.0
        %1965 = vmatpush1.msra.mxu0 0.0
        %1966 = vmatprep.subr.mxu0 0.0
        %1967 = vmatpush1.msra.mxu0 0.0
        %1968 = vmatprep.subr.mxu0 0.0
        %1969 = vmatpush1.msra.mxu0 0.0
        %1970 = vmatprep.subr.mxu0 0.0
        %1971 = vmatpush1.msra.mxu0 0.0
        %1972 = vmatprep.subr.mxu0 0.0
        %1973 = vmatpush1.msra.mxu0 0.0
        %1974 = vmatprep.subr.mxu0 0.0
        %1975 = vmatpush1.msra.mxu0 0.0
        %1976 = vmatprep.subr.mxu0 0.0
        %1977 = vmatpush1.msra.mxu0 0.0
        %1978 = vmatprep.subr.mxu0 0.0
        %1979 = vmatpush1.msra.mxu0 0.0
        %1980 = vmatprep.subr.mxu0 0.0
        %1981 = vmatpush1.msra.mxu0 0.0
        %1982 = vmatprep.subr.mxu0 0.0
        %1983 = vmatpush1.msra.mxu0 0.0
        %1984 = vmatprep.subr.mxu0 0.0
        %1985 = vmatpush1.msra.mxu0 0.0
        %1986 = vmatprep.subr.mxu0 0.0
        %1987 = vmatpush1.msra.mxu0 0.0
        %1988 = vmatprep.subr.mxu0 0.0
        %1989 = vmatpush1.msra.mxu0 0.0
        %1990 = vmatprep.subr.mxu0 0.0
        %1991 = vmatpush1.msra.mxu0 0.0
        %1992 = vmatprep.subr.mxu0 0.0
        %1993 = vmatpush1.msra.mxu0 0.0
        %1994 = vmatprep.subr.mxu0 0.0
        %1995 = vmatpush1.msra.mxu0 0.0
        %1996 = vmatprep.mubr.f32.mxu0 0.0
        %v1997 = vand.u32 %v1511, 4294901760
        %1998 = vmatmul.mubr.f32.gmra.mrb[0].mxu0 %v1997
        %v1999 = vpop.f32.mrb[0].mxu0
        %v2000 = vadd.f32 %v1924, %v1999
        %v2001 = vpop.f32.mrb[0].mxu0
        %v2002 = vadd.f32 %v1926, %v2001
        %2003 = vdwg.mxu0
        %v2004 = vsel %vm989, %v2000, 0.0
        %v2005 = vsel %vm989, %v2002, 0.0
        %v2006 = vadd.f32 %v2004, %v2005
        %2007 = vadd.xlane.f32.xlu0 %v2006
        %v2008 = vpop.xlane.xlu0 %2007
        %v2009 = vmul.f32 %v2008, %v995
        %v2010 = vmul.f32 %v2000, %v2000
        %v2011 = vmul.f32 %v2002, %v2002
        %v2012 = vsel %vm989, %v2010, 0.0
        %v2013 = vsel %vm989, %v2011, 0.0
        %v2014 = vadd.f32 %v2012, %v2013
        %2015 = vadd.xlane.f32.xlu0 %v2014
        %v2016 = vpop.xlane.xlu0 %2015
        %v2017 = vmul.f32 %v2016, %v995
        %v2018 = vmul.f32 %v2009, %v2009
        %v2019 = vsub.f32 %v2017, %v2018
        %v2020 = vsub.f32 %v2000, %v2009
        %v2021 = vsub.f32 %v2002, %v2009
        %v2022 = vadd.f32 %v2019, 1e-05
        %v2023 = vrsqrt.pop %v2022
        %v2024 = vmul.f32 %v2020, %v2023
        %v2025 = vmul.f32 %v2021, %v2023
        %2026 = vset.pattern.permute.xlu0 1
        %2027 = vperm.xlu0 %2026, %v1043
        %v2028 = vpop.permute.xlu0 %2027
        %v2030 = vmul.f32 %v2024, %v2028
        %v2031 = vmul.f32 %v2025, %v2028
        %2032 = vset.pattern.permute.xlu0 2
        %2033 = vperm.xlu0 %2032, %v1043
        %v2034 = vpop.permute.xlu0 %2033
        %v2036 = vadd.f32 %v2030, %v2034
        %v2037 = vadd.f32 %v2031, %v2034
        %vm2038 = vcmp.ge.f32.partialorder %v2036, 0.0
        %vm2039 = vcmp.ge.f32.partialorder %v2037, 0.0
        %2040 = vset.pattern.permute.xlu0 3
        %2041 = vperm.xlu0 %2040, %v1043
        %v2042 = vpop.permute.xlu0 %2041
        %v2044 = vmul.f32 %v2042, %v2036
        %v2045 = vmul.f32 %v2042, %v2037
        %v2046 = vsel %vm2038, %v2036, %v2044
        %v2047 = vsel %vm2039, %v2037, %v2045
        %2048 = vst [vmem:[#allocation2 + $0x40] sm:$0xf] %v2046
        %2049 = vst [vmem:[#allocation2 + $0x48] sm:$0xf] %v2047
        %s2050 = scalar_lea.vmem %s1, 64
        %v2051 = vld [vmem:[%s2050] sm:$0xff]
        %v2052 = vld [vmem:[%s2050 + $0x8] sm:$0xff]
        %v2053 = vld [vmem:[%s2050 + $0x10] sm:$0xff]
        %s2054 = scalar_lea.vmem %s2, 8
        %v2055 = vld [vmem:[%s2054] sm:$0xf]
        %s2056 = scalar_lea.vmem %s3, 8
        %v2057 = vld [vmem:[%s2056] sm:$0xf]
        %v2058 = vld [vmem:[#allocation2 + $0x38] sm:$0xff]
        %v2059 = vld [vmem:[#allocation2 + $0x40] sm:$0xff]
        %v2060 = vld [vmem:[#allocation2 + $0x48] sm:$0xff]
        %v2061 = vld [vmem:[#allocation2 + $0x68] sm:$0xff]
        %v2062 = vld [vmem:[#allocation2 + $0x70] sm:$0xff]
        %v2063 = vld [vmem:[#allocation2 + $0x78] sm:$0xff]
        %v2064 = vld [vmem:[#allocation2 + $0x98] sm:$0xff]
        %v2065 = vld [vmem:[#allocation2 + $0xa0] sm:$0xff]
        %v2066 = vld [vmem:[#allocation2 + $0xa8] sm:$0xff]
        %2068 = vset.pattern.permute.xlu0 0
        %2069 = vperm.xlu0 %2068, %v2051
        %v2070 = vpop.permute.xlu0 %2069
        %2073 = vset.pattern.permute.xlu0 0
        %2074 = vperm.xlu0 %2073, %v2052
        %v2075 = vpop.permute.xlu0 %2074
        %2078 = vset.pattern.permute.xlu0 0
        %2079 = vperm.xlu0 %2078, %v2053
        %v2080 = vpop.permute.xlu0 %2079
        %v2082 = vmul.f32 %v2058, %v2070
        %v2083 = vmul.f32 %v2059, %v2070
        %v2084 = vmul.f32 %v2060, %v2070
        %v2085 = vmul.f32 %v2061, %v2075
        %v2086 = vmul.f32 %v2062, %v2075
        %v2087 = vmul.f32 %v2063, %v2075
        %v2088 = vmul.f32 %v2064, %v2080
        %v2089 = vmul.f32 %v2065, %v2080
        %v2090 = vmul.f32 %v2066, %v2080
        %2091 = vset.pattern.permute.xlu0 3
        %2092 = vperm.xlu0 %2091, %v2051
        %v2093 = vpop.permute.xlu0 %2092
        %2095 = vset.pattern.permute.xlu0 3
        %2096 = vperm.xlu0 %2095, %v2052
        %v2097 = vpop.permute.xlu0 %2096
        %2099 = vset.pattern.permute.xlu0 3
        %2100 = vperm.xlu0 %2099, %v2053
        %v2101 = vpop.permute.xlu0 %2100
        %v2103 = vmul.f32 %v2058, %v2093
        %v2104 = vmul.f32 %v2059, %v2093
        %v2105 = vmul.f32 %v2060, %v2093
        %v2106 = vmul.f32 %v2061, %v2097
        %v2107 = vmul.f32 %v2062, %v2097
        %v2108 = vmul.f32 %v2063, %v2097
        %v2109 = vmul.f32 %v2064, %v2101
        %v2110 = vmul.f32 %v2065, %v2101
        %v2111 = vmul.f32 %v2066, %v2101
        %2121 = vrot.lane.b32.xlu0 %v2103, 64
        %v2122 = vpop.permute.xlu0 %2121
        %2123 = vrot.lane.b32.xlu0 %v2104, 64
        %v2124 = vpop.permute.xlu0 %2123
        %2125 = vrot.lane.b32.xlu0 %v2105, 64
        %v2126 = vpop.permute.xlu0 %2125
        %2127 = vrot.lane.b32.xlu0 %v2106, 64
        %v2128 = vpop.permute.xlu0 %2127
        %2129 = vrot.lane.b32.xlu0 %v2107, 64
        %v2130 = vpop.permute.xlu0 %2129
        %2131 = vrot.lane.b32.xlu0 %v2108, 64
        %v2132 = vpop.permute.xlu0 %2131
        %2133 = vrot.lane.b32.xlu0 %v2109, 64
        %v2134 = vpop.permute.xlu0 %2133
        %2135 = vrot.lane.b32.xlu0 %v2110, 64
        %v2136 = vpop.permute.xlu0 %2135
        %2137 = vrot.lane.b32.xlu0 %v2111, 64
        %v2138 = vpop.permute.xlu0 %2137
        %v2139 = vsel %vm1152, %v2122, %v2124
        %v2140 = vsel %vm1152, %v2124, %v2126
        %v2141 = vsel %vm1152, %v2128, %v2130
        %v2142 = vsel %vm1152, %v2130, %v2132
        %v2143 = vsel %vm1152, %v2134, %v2136
        %v2144 = vsel %vm1152, %v2136, %v2138
        %v2154 = vadd.f32 %v2082, %v2139
        %v2155 = vadd.f32 %v2083, %v2140
        %v2156 = vadd.f32 %v2084, %v2126
        %v2157 = vadd.f32 %v2085, %v2141
        %v2158 = vadd.f32 %v2086, %v2142
        %v2159 = vadd.f32 %v2087, %v2132
        %v2160 = vadd.f32 %v2088, %v2143
        %v2161 = vadd.f32 %v2089, %v2144
        %v2162 = vadd.f32 %v2090, %v2138
        %v2163 = vld [vmem:[#allocation2 + $0x40] sm:$0xff]
        %v2164 = vld [vmem:[#allocation2 + $0x48] sm:$0xff]
        %v2165 = vld [vmem:[#allocation2 + $0x50] sm:$0xff]
        %v2166 = vld [vmem:[#allocation2 + $0x70] sm:$0xff]
        %v2167 = vld [vmem:[#allocation2 + $0x78] sm:$0xff]
        %v2168 = vld [vmem:[#allocation2 + $0x80] sm:$0xff]
        %v2169 = vld [vmem:[#allocation2 + $0xa0] sm:$0xff]
        %v2170 = vld [vmem:[#allocation2 + $0xa8] sm:$0xff]
        %v2171 = vld [vmem:[#allocation2 + $0xb0] sm:$0xff]
        %2172 = vset.pattern.permute.xlu0 6
        %2173 = vperm.xlu0 %2172, %v2051
        %v2174 = vpop.permute.xlu0 %2173
        %2176 = vset.pattern.permute.xlu0 6
        %2177 = vperm.xlu0 %2176, %v2052
        %v2178 = vpop.permute.xlu0 %2177
        %2180 = vset.pattern.permute.xlu0 6
        %2181 = vperm.xlu0 %2180, %v2053
        %v2182 = vpop.permute.xlu0 %2181
        %v2184 = vmul.f32 %v2163, %v2174
        %v2185 = vmul.f32 %v2164, %v2174
        %v2186 = vmul.f32 %v2165, %v2174
        %v2187 = vmul.f32 %v2166, %v2178
        %v2188 = vmul.f32 %v2167, %v2178
        %v2189 = vmul.f32 %v2168, %v2178
        %v2190 = vmul.f32 %v2169, %v2182
        %v2191 = vmul.f32 %v2170, %v2182
        %v2192 = vmul.f32 %v2171, %v2182
        %v2193 = vadd.f32 %v2154, %v2184
        %v2194 = vadd.f32 %v2155, %v2185
        %v2195 = vadd.f32 %v2156, %v2186
        %v2196 = vadd.f32 %v2157, %v2187
        %v2197 = vadd.f32 %v2158, %v2188
        %v2198 = vadd.f32 %v2159, %v2189
        %v2199 = vadd.f32 %v2160, %v2190
        %v2200 = vadd.f32 %v2161, %v2191
        %v2201 = vadd.f32 %v2162, %v2192
        %2202 = vrot.lane.b32.xlu0 %v257, 63
        %v2203 = vpop.permute.xlu0 %2202
        %2204 = vrot.lane.b32.xlu0 %v258, 63
        %v2205 = vpop.permute.xlu0 %2204
        %vm2206 = vcmask 515072
        %v2207 = vsel %vm2206, %v2203, %v2205
        %v2211 = vmul.f32 %v2193, %v2203
        %v2212 = vmul.f32 %v2194, %v2207
        %v2213 = vmul.f32 %v2195, %v2205
        %v2214 = vmul.f32 %v2196, %v2203
        %v2215 = vmul.f32 %v2197, %v2207
        %v2216 = vmul.f32 %v2198, %v2205
        %v2217 = vmul.f32 %v2199, %v2203
        %v2218 = vmul.f32 %v2200, %v2207
        %v2219 = vmul.f32 %v2201, %v2205
        %2220 = vset.pattern.permute.xlu0 1
        %2221 = vperm.xlu0 %2220, %v2051
        %v2222 = vpop.permute.xlu0 %2221
        %2224 = vset.pattern.permute.xlu0 1
        %2225 = vperm.xlu0 %2224, %v2052
        %v2226 = vpop.permute.xlu0 %2225
        %2228 = vset.pattern.permute.xlu0 1
        %2229 = vperm.xlu0 %2228, %v2053
        %v2230 = vpop.permute.xlu0 %2229
        %v2232 = vmul.f32 %v2058, %v2222
        %v2233 = vmul.f32 %v2059, %v2222
        %v2234 = vmul.f32 %v2060, %v2222
        %v2235 = vmul.f32 %v2061, %v2226
        %v2236 = vmul.f32 %v2062, %v2226
        %v2237 = vmul.f32 %v2063, %v2226
        %v2238 = vmul.f32 %v2064, %v2230
        %v2239 = vmul.f32 %v2065, %v2230
        %v2240 = vmul.f32 %v2066, %v2230
        %2241 = vset.pattern.permute.xlu0 4
        %2242 = vperm.xlu0 %2241, %v2051
        %v2243 = vpop.permute.xlu0 %2242
        %2245 = vset.pattern.permute.xlu0 4
        %2246 = vperm.xlu0 %2245, %v2052
        %v2247 = vpop.permute.xlu0 %2246
        %2249 = vset.pattern.permute.xlu0 4
        %2250 = vperm.xlu0 %2249, %v2053
        %v2251 = vpop.permute.xlu0 %2250
        %v2253 = vmul.f32 %v2059, %v2243
        %v2254 = vmul.f32 %v2060, %v2243
        %v2255 = vmul.f32 %v2062, %v2247
        %v2256 = vmul.f32 %v2063, %v2247
        %v2257 = vmul.f32 %v2065, %v2251
        %v2258 = vmul.f32 %v2066, %v2251
        %2265 = vrot.lane.b32.xlu0 %v2253, 64
        %v2266 = vpop.permute.xlu0 %2265
        %2267 = vrot.lane.b32.xlu0 %v2254, 64
        %v2268 = vpop.permute.xlu0 %2267
        %2269 = vrot.lane.b32.xlu0 %v2255, 64
        %v2270 = vpop.permute.xlu0 %2269
        %2271 = vrot.lane.b32.xlu0 %v2256, 64
        %v2272 = vpop.permute.xlu0 %2271
        %2273 = vrot.lane.b32.xlu0 %v2257, 64
        %v2274 = vpop.permute.xlu0 %2273
        %2275 = vrot.lane.b32.xlu0 %v2258, 64
        %v2276 = vpop.permute.xlu0 %2275
        %v2277 = vsel %vm1152, %v2266, %v2268
        %v2278 = vsel %vm1152, %v2270, %v2272
        %v2279 = vsel %vm1152, %v2274, %v2276
        %v2289 = vadd.f32 %v2232, %v2266
        %v2290 = vadd.f32 %v2233, %v2277
        %v2291 = vadd.f32 %v2234, %v2268
        %v2292 = vadd.f32 %v2235, %v2270
        %v2293 = vadd.f32 %v2236, %v2278
        %v2294 = vadd.f32 %v2237, %v2272
        %v2295 = vadd.f32 %v2238, %v2274
        %v2296 = vadd.f32 %v2239, %v2279
        %v2297 = vadd.f32 %v2240, %v2276
        %2298 = vset.pattern.permute.xlu0 7
        %2299 = vperm.xlu0 %2298, %v2051
        %v2300 = vpop.permute.xlu0 %2299
        %2302 = vset.pattern.permute.xlu0 7
        %2303 = vperm.xlu0 %2302, %v2052
        %v2304 = vpop.permute.xlu0 %2303
        %2306 = vset.pattern.permute.xlu0 7
        %2307 = vperm.xlu0 %2306, %v2053
        %v2308 = vpop.permute.xlu0 %2307
        %v2310 = vmul.f32 %v2163, %v2300
        %v2311 = vmul.f32 %v2164, %v2300
        %v2312 = vmul.f32 %v2165, %v2300
        %v2313 = vmul.f32 %v2166, %v2304
        %v2314 = vmul.f32 %v2167, %v2304
        %v2315 = vmul.f32 %v2168, %v2304
        %v2316 = vmul.f32 %v2169, %v2308
        %v2317 = vmul.f32 %v2170, %v2308
        %v2318 = vmul.f32 %v2171, %v2308
        %v2319 = vadd.f32 %v2289, %v2310
        %v2320 = vadd.f32 %v2290, %v2311
        %v2321 = vadd.f32 %v2291, %v2312
        %v2322 = vadd.f32 %v2292, %v2313
        %v2323 = vadd.f32 %v2293, %v2314
        %v2324 = vadd.f32 %v2294, %v2315
        %v2325 = vadd.f32 %v2295, %v2316
        %v2326 = vadd.f32 %v2296, %v2317
        %v2327 = vadd.f32 %v2297, %v2318
        %2337 = vrot.lane.b32.xlu0 %v2319, 127
        %v2338 = vpop.permute.xlu0 %2337
        %2339 = vrot.lane.b32.xlu0 %v2320, 127
        %v2340 = vpop.permute.xlu0 %2339
        %2341 = vrot.lane.b32.xlu0 %v2321, 127
        %v2342 = vpop.permute.xlu0 %2341
        %2343 = vrot.lane.b32.xlu0 %v2322, 127
        %v2344 = vpop.permute.xlu0 %2343
        %2345 = vrot.lane.b32.xlu0 %v2323, 127
        %v2346 = vpop.permute.xlu0 %2345
        %2347 = vrot.lane.b32.xlu0 %v2324, 127
        %v2348 = vpop.permute.xlu0 %2347
        %2349 = vrot.lane.b32.xlu0 %v2325, 127
        %v2350 = vpop.permute.xlu0 %2349
        %2351 = vrot.lane.b32.xlu0 %v2326, 127
        %v2352 = vpop.permute.xlu0 %2351
        %2353 = vrot.lane.b32.xlu0 %v2327, 127
        %v2354 = vpop.permute.xlu0 %2353
        %v2355 = vsel %vm405, %v2338, %v2340
        %v2356 = vsel %vm405, %v2340, %v2342
        %v2357 = vsel %vm405, %v2344, %v2346
        %v2358 = vsel %vm405, %v2346, %v2348
        %v2359 = vsel %vm405, %v2350, %v2352
        %v2360 = vsel %vm405, %v2352, %v2354
        %v2370 = vadd.f32 %v2211, %v2355
        %v2371 = vadd.f32 %v2212, %v2356
        %v2372 = vadd.f32 %v2213, %v2342
        %v2373 = vadd.f32 %v2214, %v2357
        %v2374 = vadd.f32 %v2215, %v2358
        %v2375 = vadd.f32 %v2216, %v2348
        %v2376 = vadd.f32 %v2217, %v2359
        %v2377 = vadd.f32 %v2218, %v2360
        %v2378 = vadd.f32 %v2219, %v2354
        %2379 = vset.pattern.permute.xlu0 2
        %2380 = vperm.xlu0 %2379, %v2051
        %v2381 = vpop.permute.xlu0 %2380
        %2383 = vset.pattern.permute.xlu0 2
        %2384 = vperm.xlu0 %2383, %v2052
        %v2385 = vpop.permute.xlu0 %2384
        %2387 = vset.pattern.permute.xlu0 2
        %2388 = vperm.xlu0 %2387, %v2053
        %v2389 = vpop.permute.xlu0 %2388
        %v2391 = vmul.f32 %v2058, %v2381
        %v2392 = vmul.f32 %v2059, %v2381
        %v2393 = vmul.f32 %v2060, %v2381
        %v2394 = vmul.f32 %v2061, %v2385
        %v2395 = vmul.f32 %v2062, %v2385
        %v2396 = vmul.f32 %v2063, %v2385
        %v2397 = vmul.f32 %v2064, %v2389
        %v2398 = vmul.f32 %v2065, %v2389
        %v2399 = vmul.f32 %v2066, %v2389
        %2400 = vset.pattern.permute.xlu0 5
        %2401 = vperm.xlu0 %2400, %v2051
        %v2402 = vpop.permute.xlu0 %2401
        %2404 = vset.pattern.permute.xlu0 5
        %2405 = vperm.xlu0 %2404, %v2052
        %v2406 = vpop.permute.xlu0 %2405
        %2408 = vset.pattern.permute.xlu0 5
        %2409 = vperm.xlu0 %2408, %v2053
        %v2410 = vpop.permute.xlu0 %2409
        %v2412 = vmul.f32 %v2163, %v2402
        %v2413 = vmul.f32 %v2164, %v2402
        %v2414 = vmul.f32 %v2165, %v2402
        %v2415 = vmul.f32 %v2166, %v2406
        %v2416 = vmul.f32 %v2167, %v2406
        %v2417 = vmul.f32 %v2168, %v2406
        %v2418 = vmul.f32 %v2169, %v2410
        %v2419 = vmul.f32 %v2170, %v2410
        %v2420 = vmul.f32 %v2171, %v2410
        %2430 = vrot.lane.b32.xlu0 %v2412, 64
        %v2431 = vpop.permute.xlu0 %2430
        %2432 = vrot.lane.b32.xlu0 %v2413, 64
        %v2433 = vpop.permute.xlu0 %2432
        %2434 = vrot.lane.b32.xlu0 %v2414, 64
        %v2435 = vpop.permute.xlu0 %2434
        %2436 = vrot.lane.b32.xlu0 %v2415, 64
        %v2437 = vpop.permute.xlu0 %2436
        %2438 = vrot.lane.b32.xlu0 %v2416, 64
        %v2439 = vpop.permute.xlu0 %2438
        %2440 = vrot.lane.b32.xlu0 %v2417, 64
        %v2441 = vpop.permute.xlu0 %2440
        %2442 = vrot.lane.b32.xlu0 %v2418, 64
        %v2443 = vpop.permute.xlu0 %2442
        %2444 = vrot.lane.b32.xlu0 %v2419, 64
        %v2445 = vpop.permute.xlu0 %2444
        %2446 = vrot.lane.b32.xlu0 %v2420, 64
        %v2447 = vpop.permute.xlu0 %2446
        %v2448 = vsel %vm1152, %v2431, %v2433
        %v2449 = vsel %vm1152, %v2433, %v2435
        %v2450 = vsel %vm1152, %v2437, %v2439
        %v2451 = vsel %vm1152, %v2439, %v2441
        %v2452 = vsel %vm1152, %v2443, %v2445
        %v2453 = vsel %vm1152, %v2445, %v2447
        %v2463 = vadd.f32 %v2391, %v2431
        %v2464 = vadd.f32 %v2392, %v2448
        %v2465 = vadd.f32 %v2393, %v2449
        %v2466 = vadd.f32 %v2394, %v2437
        %v2467 = vadd.f32 %v2395, %v2450
        %v2468 = vadd.f32 %v2396, %v2451
        %v2469 = vadd.f32 %v2397, %v2443
        %v2470 = vadd.f32 %v2398, %v2452
        %v2471 = vadd.f32 %v2399, %v2453
        %2472 = vset.pattern.permute.xlu0 8
        %2473 = vperm.xlu0 %2472, %v2051
        %v2474 = vpop.permute.xlu0 %2473
        %2476 = vset.pattern.permute.xlu0 8
        %2477 = vperm.xlu0 %2476, %v2052
        %v2478 = vpop.permute.xlu0 %2477
        %2480 = vset.pattern.permute.xlu0 8
        %2481 = vperm.xlu0 %2480, %v2053
        %v2482 = vpop.permute.xlu0 %2481
        %v2484 = vmul.f32 %v2163, %v2474
        %v2485 = vmul.f32 %v2164, %v2474
        %v2486 = vmul.f32 %v2165, %v2474
        %v2487 = vmul.f32 %v2166, %v2478
        %v2488 = vmul.f32 %v2167, %v2478
        %v2489 = vmul.f32 %v2168, %v2478
        %v2490 = vmul.f32 %v2169, %v2482
        %v2491 = vmul.f32 %v2170, %v2482
        %v2492 = vmul.f32 %v2171, %v2482
        %v2493 = vadd.f32 %v2463, %v2484
        %v2494 = vadd.f32 %v2464, %v2485
        %v2495 = vadd.f32 %v2465, %v2486
        %v2496 = vadd.f32 %v2466, %v2487
        %v2497 = vadd.f32 %v2467, %v2488
        %v2498 = vadd.f32 %v2468, %v2489
        %v2499 = vadd.f32 %v2469, %v2490
        %v2500 = vadd.f32 %v2470, %v2491
        %v2501 = vadd.f32 %v2471, %v2492
        %2502 = vrot.lane.b32.xlu0 %v263, 65
        %v2503 = vpop.permute.xlu0 %2502
        %2504 = vrot.lane.b32.xlu0 %v264, 65
        %v2505 = vpop.permute.xlu0 %2504
        %vm2506 = vcmask 531456
        %v2507 = vsel %vm2506, %v2503, %v2505
        %v2511 = vmul.f32 %v2493, %v2503
        %v2512 = vmul.f32 %v2494, %v2507
        %v2513 = vmul.f32 %v2495, %v2505
        %v2514 = vmul.f32 %v2496, %v2503
        %v2515 = vmul.f32 %v2497, %v2507
        %v2516 = vmul.f32 %v2498, %v2505
        %v2517 = vmul.f32 %v2499, %v2503
        %v2518 = vmul.f32 %v2500, %v2507
        %v2519 = vmul.f32 %v2501, %v2505
        %2529 = vrot.lane.b32.xlu0 %v2511, 126
        %v2530 = vpop.permute.xlu0 %2529
        %2531 = vrot.lane.b32.xlu0 %v2512, 126
        %v2532 = vpop.permute.xlu0 %2531
        %2533 = vrot.lane.b32.xlu0 %v2513, 126
        %v2534 = vpop.permute.xlu0 %2533
        %2535 = vrot.lane.b32.xlu0 %v2514, 126
        %v2536 = vpop.permute.xlu0 %2535
        %2537 = vrot.lane.b32.xlu0 %v2515, 126
        %v2538 = vpop.permute.xlu0 %2537
        %2539 = vrot.lane.b32.xlu0 %v2516, 126
        %v2540 = vpop.permute.xlu0 %2539
        %2541 = vrot.lane.b32.xlu0 %v2517, 126
        %v2542 = vpop.permute.xlu0 %2541
        %2543 = vrot.lane.b32.xlu0 %v2518, 126
        %v2544 = vpop.permute.xlu0 %2543
        %2545 = vrot.lane.b32.xlu0 %v2519, 126
        %v2546 = vpop.permute.xlu0 %2545
        %v2547 = vsel %vm492, %v2530, %v2532
        %v2548 = vsel %vm492, %v2532, %v2534
        %v2549 = vsel %vm492, %v2536, %v2538
        %v2550 = vsel %vm492, %v2538, %v2540
        %v2551 = vsel %vm492, %v2542, %v2544
        %v2552 = vsel %vm492, %v2544, %v2546
        %v2562 = vadd.f32 %v2370, %v2547
        %v2563 = vadd.f32 %v2371, %v2548
        %v2564 = vadd.f32 %v2372, %v2534
        %v2565 = vadd.f32 %v2373, %v2549
        %v2566 = vadd.f32 %v2374, %v2550
        %v2567 = vadd.f32 %v2375, %v2540
        %v2568 = vadd.f32 %v2376, %v2551
        %v2569 = vadd.f32 %v2377, %v2552
        %v2570 = vadd.f32 %v2378, %v2546
        %2572 = vset.pattern.permute.xlu0 0
        %2573 = vperm.xlu0 %2572, %v2057
        %v2574 = vpop.permute.xlu0 %2573
        %2585 = vrot.lane.b32.xlu0 %v2562, 65
        %v2586 = vpop.permute.xlu0 %2585
        %2587 = vrot.lane.b32.xlu0 %v2563, 65
        %v2588 = vpop.permute.xlu0 %2587
        %2589 = vrot.lane.b32.xlu0 %v2564, 65
        %v2590 = vpop.permute.xlu0 %2589
        %2591 = vrot.lane.b32.xlu0 %v2565, 65
        %v2592 = vpop.permute.xlu0 %2591
        %2593 = vrot.lane.b32.xlu0 %v2566, 65
        %v2594 = vpop.permute.xlu0 %2593
        %2595 = vrot.lane.b32.xlu0 %v2567, 65
        %v2596 = vpop.permute.xlu0 %2595
        %2597 = vrot.lane.b32.xlu0 %v2568, 65
        %v2598 = vpop.permute.xlu0 %2597
        %2599 = vrot.lane.b32.xlu0 %v2569, 65
        %v2600 = vpop.permute.xlu0 %2599
        %2601 = vrot.lane.b32.xlu0 %v2570, 65
        %v2602 = vpop.permute.xlu0 %2601
        %v2603 = vsel %vm2506, %v2586, %v2588
        %v2604 = vsel %vm2506, %v2588, %v2590
        %v2605 = vsel %vm2506, %v2592, %v2594
        %v2606 = vsel %vm2506, %v2594, %v2596
        %v2607 = vsel %vm2506, %v2598, %v2600
        %v2608 = vsel %vm2506, %v2600, %v2602
        %vm2615 = vcmask 195584
        %v2617 = vsel %vm2615, %v2055, 0
        %v2619 = vand.u32 %v2604, 4294901760
        %2620 = vmatprep.subr.mxu0 %v2619
        %v2621 = vand.u32 %v2603, 4294901760
        %2622 = vmatpush1.msra.mxu0 %v2621
        %v2623 = vand.u32 %v2606, 4294901760
        %2624 = vmatprep.subr.mxu0 %v2623
        %v2625 = vand.u32 %v2605, 4294901760
        %2626 = vmatpush1.msra.mxu0 %v2625
        %v2627 = vand.u32 %v2608, 4294901760
        %2628 = vmatprep.subr.mxu0 %v2627
        %v2629 = vand.u32 %v2607, 4294901760
        %2630 = vmatpush1.msra.mxu0 %v2629
        %2631 = vmatprep.subr.mxu0 0.0
        %2632 = vmatpush1.msra.mxu0 0.0
        %2633 = vmatprep.subr.mxu0 0.0
        %2634 = vmatpush1.msra.mxu0 0.0
        %2635 = vmatprep.subr.mxu0 0.0
        %2636 = vmatpush1.msra.mxu0 0.0
        %2637 = vmatprep.subr.mxu0 0.0
        %2638 = vmatpush1.msra.mxu0 0.0
        %2639 = vmatprep.subr.mxu0 0.0
        %2640 = vmatpush1.msra.mxu0 0.0
        %2641 = vmatprep.subr.mxu0 0.0
        %2642 = vmatpush1.msra.mxu0 0.0
        %2643 = vmatprep.subr.mxu0 0.0
        %2644 = vmatpush1.msra.mxu0 0.0
        %2645 = vmatprep.subr.mxu0 0.0
        %2646 = vmatpush1.msra.mxu0 0.0
        %2647 = vmatprep.subr.mxu0 0.0
        %2648 = vmatpush1.msra.mxu0 0.0
        %2649 = vmatprep.subr.mxu0 0.0
        %2650 = vmatpush1.msra.mxu0 0.0
        %2651 = vmatprep.subr.mxu0 0.0
        %2652 = vmatpush1.msra.mxu0 0.0
        %2653 = vmatprep.subr.mxu0 0.0
        %2654 = vmatpush1.msra.mxu0 0.0
        %2655 = vmatprep.subr.mxu0 0.0
        %2656 = vmatpush1.msra.mxu0 0.0
        %2657 = vmatprep.subr.mxu0 0.0
        %2658 = vmatpush1.msra.mxu0 0.0
        %2659 = vmatprep.subr.mxu0 0.0
        %2660 = vmatpush1.msra.mxu0 0.0
        %2661 = vmatprep.subr.mxu0 0.0
        %2662 = vmatpush1.msra.mxu0 0.0
        %2663 = vmatprep.subr.mxu0 0.0
        %2664 = vmatpush1.msra.mxu0 0.0
        %2665 = vmatprep.subr.mxu0 0.0
        %2666 = vmatpush1.msra.mxu0 0.0
        %2667 = vmatprep.subr.mxu0 0.0
        %2668 = vmatpush1.msra.mxu0 0.0
        %2669 = vmatprep.subr.mxu0 0.0
        %2670 = vmatpush1.msra.mxu0 0.0
        %2671 = vmatprep.subr.mxu0 0.0
        %2672 = vmatpush1.msra.mxu0 0.0
        %2673 = vmatprep.subr.mxu0 0.0
        %2674 = vmatpush1.msra.mxu0 0.0
        %2675 = vmatprep.subr.mxu0 0.0
        %2676 = vmatpush1.msra.mxu0 0.0
        %2677 = vmatprep.subr.mxu0 0.0
        %2678 = vmatpush1.msra.mxu0 0.0
        %2679 = vmatprep.subr.mxu0 0.0
        %2680 = vmatpush1.msra.mxu0 0.0
        %2681 = vmatprep.subr.mxu0 0.0
        %2682 = vmatpush1.msra.mxu0 0.0
        %2683 = vmatprep.subr.mxu0 0.0
        %2684 = vmatpush1.msra.mxu0 0.0
        %2685 = vmatprep.subr.mxu0 0.0
        %2686 = vmatpush1.msra.mxu0 0.0
        %2687 = vmatprep.subr.mxu0 0.0
        %2688 = vmatpush1.msra.mxu0 0.0
        %2689 = vmatprep.mubr.f32.mxu0 0.0
        %v2690 = vand.u32 %v2617, 4294901760
        %v2691 = vsub.f32 %v2617, %v2690
        %v2692 = vand.u32 %v2691, 4294901760
        %v2693 = vsub.f32 %v2691, %v2692
        %v2694 = vand.u32 %v2693, 4294901760
        %2695 = vmatmul.mubr.f32.gmra.mrb[0].mxu0 %v2694
        %v2696 = vpop.f32.mrb[0].mxu0
        %v2697 = vadd.f32 %v2574, %v2696
        %v2698 = vpop.f32.mrb[0].mxu0
        %v2699 = vadd.f32 %v2574, %v2698
        %2700 = vdwg.mxu0
        %v2701 = vand.u32 %v2604, 4294901760
        %v2702 = vsub.f32 %v2604, %v2701
        %v2703 = vand.u32 %v2702, 4294901760
        %v2704 = vsub.f32 %v2702, %v2703
        %v2705 = vand.u32 %v2704, 4294901760
        %2706 = vmatprep.subr.mxu0 %v2705
        %v2707 = vand.u32 %v2603, 4294901760
        %v2708 = vsub.f32 %v2603, %v2707
        %v2709 = vand.u32 %v2708, 4294901760
        %v2710 = vsub.f32 %v2708, %v2709
        %v2711 = vand.u32 %v2710, 4294901760
        %2712 = vmatpush1.msra.mxu0 %v2711
        %v2713 = vand.u32 %v2606, 4294901760
        %v2714 = vsub.f32 %v2606, %v2713
        %v2715 = vand.u32 %v2714, 4294901760
        %v2716 = vsub.f32 %v2714, %v2715
        %v2717 = vand.u32 %v2716, 4294901760
        %2718 = vmatprep.subr.mxu0 %v2717
        %v2719 = vand.u32 %v2605, 4294901760
        %v2720 = vsub.f32 %v2605, %v2719
        %v2721 = vand.u32 %v2720, 4294901760
        %v2722 = vsub.f32 %v2720, %v2721
        %v2723 = vand.u32 %v2722, 4294901760
        %2724 = vmatpush1.msra.mxu0 %v2723
        %v2725 = vand.u32 %v2608, 4294901760
        %v2726 = vsub.f32 %v2608, %v2725
        %v2727 = vand.u32 %v2726, 4294901760
        %v2728 = vsub.f32 %v2726, %v2727
        %v2729 = vand.u32 %v2728, 4294901760
        %2730 = vmatprep.subr.mxu0 %v2729
        %v2731 = vand.u32 %v2607, 4294901760
        %v2732 = vsub.f32 %v2607, %v2731
        %v2733 = vand.u32 %v2732, 4294901760
        %v2734 = vsub.f32 %v2732, %v2733
        %v2735 = vand.u32 %v2734, 4294901760
        %2736 = vmatpush1.msra.mxu0 %v2735
        %2737 = vmatprep.subr.mxu0 0.0
        %2738 = vmatpush1.msra.mxu0 0.0
        %2739 = vmatprep.subr.mxu0 0.0
        %2740 = vmatpush1.msra.mxu0 0.0
        %2741 = vmatprep.subr.mxu0 0.0
        %2742 = vmatpush1.msra.mxu0 0.0
        %2743 = vmatprep.subr.mxu0 0.0
        %2744 = vmatpush1.msra.mxu0 0.0
        %2745 = vmatprep.subr.mxu0 0.0
        %2746 = vmatpush1.msra.mxu0 0.0
        %2747 = vmatprep.subr.mxu0 0.0
        %2748 = vmatpush1.msra.mxu0 0.0
        %2749 = vmatprep.subr.mxu0 0.0
        %2750 = vmatpush1.msra.mxu0 0.0
        %2751 = vmatprep.subr.mxu0 0.0
        %2752 = vmatpush1.msra.mxu0 0.0
        %2753 = vmatprep.subr.mxu0 0.0
        %2754 = vmatpush1.msra.mxu0 0.0
        %2755 = vmatprep.subr.mxu0 0.0
        %2756 = vmatpush1.msra.mxu0 0.0
        %2757 = vmatprep.subr.mxu0 0.0
        %2758 = vmatpush1.msra.mxu0 0.0
        %2759 = vmatprep.subr.mxu0 0.0
        %2760 = vmatpush1.msra.mxu0 0.0
        %2761 = vmatprep.subr.mxu0 0.0
        %2762 = vmatpush1.msra.mxu0 0.0
        %2763 = vmatprep.subr.mxu0 0.0
        %2764 = vmatpush1.msra.mxu0 0.0
        %2765 = vmatprep.subr.mxu0 0.0
        %2766 = vmatpush1.msra.mxu0 0.0
        %2767 = vmatprep.subr.mxu0 0.0
        %2768 = vmatpush1.msra.mxu0 0.0
        %2769 = vmatprep.subr.mxu0 0.0
        %2770 = vmatpush1.msra.mxu0 0.0
        %2771 = vmatprep.subr.mxu0 0.0
        %2772 = vmatpush1.msra.mxu0 0.0
        %2773 = vmatprep.subr.mxu0 0.0
        %2774 = vmatpush1.msra.mxu0 0.0
        %2775 = vmatprep.subr.mxu0 0.0
        %2776 = vmatpush1.msra.mxu0 0.0
        %2777 = vmatprep.subr.mxu0 0.0
        %2778 = vmatpush1.msra.mxu0 0.0
        %2779 = vmatprep.subr.mxu0 0.0
        %2780 = vmatpush1.msra.mxu0 0.0
        %2781 = vmatprep.subr.mxu0 0.0
        %2782 = vmatpush1.msra.mxu0 0.0
        %2783 = vmatprep.subr.mxu0 0.0
        %2784 = vmatpush1.msra.mxu0 0.0
        %2785 = vmatprep.subr.mxu0 0.0
        %2786 = vmatpush1.msra.mxu0 0.0
        %2787 = vmatprep.subr.mxu0 0.0
        %2788 = vmatpush1.msra.mxu0 0.0
        %2789 = vmatprep.subr.mxu0 0.0
        %2790 = vmatpush1.msra.mxu0 0.0
        %2791 = vmatprep.subr.mxu0 0.0
        %2792 = vmatpush1.msra.mxu0 0.0
        %2793 = vmatprep.subr.mxu0 0.0
        %2794 = vmatpush1.msra.mxu0 0.0
        %2795 = vmatprep.mubr.f32.mxu0 0.0
        %v2796 = vand.u32 %v2617, 4294901760
        %2797 = vmatmul.mubr.f32.gmra.mrb[0].mxu0 %v2796
        %v2798 = vpop.f32.mrb[0].mxu0
        %v2799 = vadd.f32 %v2697, %v2798
        %v2800 = vpop.f32.mrb[0].mxu0
        %v2801 = vadd.f32 %v2699, %v2800
        %2802 = vdwg.mxu0
        %v2803 = vand.u32 %v2604, 4294901760
        %v2804 = vsub.f32 %v2604, %v2803
        %2805 = vmatprep.subr.mxu0 %v2804
        %v2806 = vand.u32 %v2603, 4294901760
        %v2807 = vsub.f32 %v2603, %v2806
        %2808 = vmatpush1.msra.mxu0 %v2807
        %v2809 = vand.u32 %v2606, 4294901760
        %v2810 = vsub.f32 %v2606, %v2809
        %2811 = vmatprep.subr.mxu0 %v2810
        %v2812 = vand.u32 %v2605, 4294901760
        %v2813 = vsub.f32 %v2605, %v2812
        %2814 = vmatpush1.msra.mxu0 %v2813
        %v2815 = vand.u32 %v2608, 4294901760
        %v2816 = vsub.f32 %v2608, %v2815
        %2817 = vmatprep.subr.mxu0 %v2816
        %v2818 = vand.u32 %v2607, 4294901760
        %v2819 = vsub.f32 %v2607, %v2818
        %2820 = vmatpush1.msra.mxu0 %v2819
        %2821 = vmatprep.subr.mxu0 0.0
        %2822 = vmatpush1.msra.mxu0 0.0
        %2823 = vmatprep.subr.mxu0 0.0
        %2824 = vmatpush1.msra.mxu0 0.0
        %2825 = vmatprep.subr.mxu0 0.0
        %2826 = vmatpush1.msra.mxu0 0.0
        %2827 = vmatprep.subr.mxu0 0.0
        %2828 = vmatpush1.msra.mxu0 0.0
        %2829 = vmatprep.subr.mxu0 0.0
        %2830 = vmatpush1.msra.mxu0 0.0
        %2831 = vmatprep.subr.mxu0 0.0
        %2832 = vmatpush1.msra.mxu0 0.0
        %2833 = vmatprep.subr.mxu0 0.0
        %2834 = vmatpush1.msra.mxu0 0.0
        %2835 = vmatprep.subr.mxu0 0.0
        %2836 = vmatpush1.msra.mxu0 0.0
        %2837 = vmatprep.subr.mxu0 0.0
        %2838 = vmatpush1.msra.mxu0 0.0
        %2839 = vmatprep.subr.mxu0 0.0
        %2840 = vmatpush1.msra.mxu0 0.0
        %2841 = vmatprep.subr.mxu0 0.0
        %2842 = vmatpush1.msra.mxu0 0.0
        %2843 = vmatprep.subr.mxu0 0.0
        %2844 = vmatpush1.msra.mxu0 0.0
        %2845 = vmatprep.subr.mxu0 0.0
        %2846 = vmatpush1.msra.mxu0 0.0
        %2847 = vmatprep.subr.mxu0 0.0
        %2848 = vmatpush1.msra.mxu0 0.0
        %2849 = vmatprep.subr.mxu0 0.0
        %2850 = vmatpush1.msra.mxu0 0.0
        %2851 = vmatprep.subr.mxu0 0.0
        %2852 = vmatpush1.msra.mxu0 0.0
        %2853 = vmatprep.subr.mxu0 0.0
        %2854 = vmatpush1.msra.mxu0 0.0
        %2855 = vmatprep.subr.mxu0 0.0
        %2856 = vmatpush1.msra.mxu0 0.0
        %2857 = vmatprep.subr.mxu0 0.0
        %2858 = vmatpush1.msra.mxu0 0.0
        %2859 = vmatprep.subr.mxu0 0.0
        %2860 = vmatpush1.msra.mxu0 0.0
        %2861 = vmatprep.subr.mxu0 0.0
        %2862 = vmatpush1.msra.mxu0 0.0
        %2863 = vmatprep.subr.mxu0 0.0
        %2864 = vmatpush1.msra.mxu0 0.0
        %2865 = vmatprep.subr.mxu0 0.0
        %2866 = vmatpush1.msra.mxu0 0.0
        %2867 = vmatprep.subr.mxu0 0.0
        %2868 = vmatpush1.msra.mxu0 0.0
        %2869 = vmatprep.subr.mxu0 0.0
        %2870 = vmatpush1.msra.mxu0 0.0
        %2871 = vmatprep.subr.mxu0 0.0
        %2872 = vmatpush1.msra.mxu0 0.0
        %2873 = vmatprep.subr.mxu0 0.0
        %2874 = vmatpush1.msra.mxu0 0.0
        %2875 = vmatprep.subr.mxu0 0.0
        %2876 = vmatpush1.msra.mxu0 0.0
        %2877 = vmatprep.subr.mxu0 0.0
        %2878 = vmatpush1.msra.mxu0 0.0
        %2879 = vmatprep.mubr.f32.mxu0 0.0
        %v2880 = vand.u32 %v2617, 4294901760
        %v2881 = vsub.f32 %v2617, %v2880
        %2882 = vmatmul.mubr.f32.gmra.mrb[0].mxu0 %v2881
        %v2883 = vpop.f32.mrb[0].mxu0
        %v2884 = vadd.f32 %v2799, %v2883
        %v2885 = vpop.f32.mrb[0].mxu0
        %v2886 = vadd.f32 %v2801, %v2885
        %2887 = vdwg.mxu0
        %v2888 = vand.u32 %v2604, 4294901760
        %2889 = vmatprep.subr.mxu0 %v2888
        %v2890 = vand.u32 %v2603, 4294901760
        %2891 = vmatpush1.msra.mxu0 %v2890
        %v2892 = vand.u32 %v2606, 4294901760
        %2893 = vmatprep.subr.mxu0 %v2892
        %v2894 = vand.u32 %v2605, 4294901760
        %2895 = vmatpush1.msra.mxu0 %v2894
        %v2896 = vand.u32 %v2608, 4294901760
        %2897 = vmatprep.subr.mxu0 %v2896
        %v2898 = vand.u32 %v2607, 4294901760
        %2899 = vmatpush1.msra.mxu0 %v2898
        %2900 = vmatprep.subr.mxu0 0.0
        %2901 = vmatpush1.msra.mxu0 0.0
        %2902 = vmatprep.subr.mxu0 0.0
        %2903 = vmatpush1.msra.mxu0 0.0
        %2904 = vmatprep.subr.mxu0 0.0
        %2905 = vmatpush1.msra.mxu0 0.0
        %2906 = vmatprep.subr.mxu0 0.0
        %2907 = vmatpush1.msra.mxu0 0.0
        %2908 = vmatprep.subr.mxu0 0.0
        %2909 = vmatpush1.msra.mxu0 0.0
        %2910 = vmatprep.subr.mxu0 0.0
        %2911 = vmatpush1.msra.mxu0 0.0
        %2912 = vmatprep.subr.mxu0 0.0
        %2913 = vmatpush1.msra.mxu0 0.0
        %2914 = vmatprep.subr.mxu0 0.0
        %2915 = vmatpush1.msra.mxu0 0.0
        %2916 = vmatprep.subr.mxu0 0.0
        %2917 = vmatpush1.msra.mxu0 0.0
        %2918 = vmatprep.subr.mxu0 0.0
        %2919 = vmatpush1.msra.mxu0 0.0
        %2920 = vmatprep.subr.mxu0 0.0
        %2921 = vmatpush1.msra.mxu0 0.0
        %2922 = vmatprep.subr.mxu0 0.0
        %2923 = vmatpush1.msra.mxu0 0.0
        %2924 = vmatprep.subr.mxu0 0.0
        %2925 = vmatpush1.msra.mxu0 0.0
        %2926 = vmatprep.subr.mxu0 0.0
        %2927 = vmatpush1.msra.mxu0 0.0
        %2928 = vmatprep.subr.mxu0 0.0
        %2929 = vmatpush1.msra.mxu0 0.0
        %2930 = vmatprep.subr.mxu0 0.0
        %2931 = vmatpush1.msra.mxu0 0.0
        %2932 = vmatprep.subr.mxu0 0.0
        %2933 = vmatpush1.msra.mxu0 0.0
        %2934 = vmatprep.subr.mxu0 0.0
        %2935 = vmatpush1.msra.mxu0 0.0
        %2936 = vmatprep.subr.mxu0 0.0
        %2937 = vmatpush1.msra.mxu0 0.0
        %2938 = vmatprep.subr.mxu0 0.0
        %2939 = vmatpush1.msra.mxu0 0.0
        %2940 = vmatprep.subr.mxu0 0.0
        %2941 = vmatpush1.msra.mxu0 0.0
        %2942 = vmatprep.subr.mxu0 0.0
        %2943 = vmatpush1.msra.mxu0 0.0
        %2944 = vmatprep.subr.mxu0 0.0
        %2945 = vmatpush1.msra.mxu0 0.0
        %2946 = vmatprep.subr.mxu0 0.0
        %2947 = vmatpush1.msra.mxu0 0.0
        %2948 = vmatprep.subr.mxu0 0.0
        %2949 = vmatpush1.msra.mxu0 0.0
        %2950 = vmatprep.subr.mxu0 0.0
        %2951 = vmatpush1.msra.mxu0 0.0
        %2952 = vmatprep.subr.mxu0 0.0
        %2953 = vmatpush1.msra.mxu0 0.0
        %2954 = vmatprep.subr.mxu0 0.0
        %2955 = vmatpush1.msra.mxu0 0.0
        %2956 = vmatprep.subr.mxu0 0.0
        %2957 = vmatpush1.msra.mxu0 0.0
        %2958 = vmatprep.mubr.f32.mxu0 0.0
        %v2959 = vand.u32 %v2617, 4294901760
        %v2960 = vsub.f32 %v2617, %v2959
        %v2961 = vand.u32 %v2960, 4294901760
        %2962 = vmatmul.mubr.f32.gmra.mrb[0].mxu0 %v2961
        %v2963 = vpop.f32.mrb[0].mxu0
        %v2964 = vadd.f32 %v2884, %v2963
        %v2965 = vpop.f32.mrb[0].mxu0
        %v2966 = vadd.f32 %v2886, %v2965
        %2967 = vdwg.mxu0
        %v2968 = vand.u32 %v2604, 4294901760
        %v2969 = vsub.f32 %v2604, %v2968
        %v2970 = vand.u32 %v2969, 4294901760
        %2971 = vmatprep.subr.mxu0 %v2970
        %v2972 = vand.u32 %v2603, 4294901760
        %v2973 = vsub.f32 %v2603, %v2972
        %v2974 = vand.u32 %v2973, 4294901760
        %2975 = vmatpush1.msra.mxu0 %v2974
        %v2976 = vand.u32 %v2606, 4294901760
        %v2977 = vsub.f32 %v2606, %v2976
        %v2978 = vand.u32 %v2977, 4294901760
        %2979 = vmatprep.subr.mxu0 %v2978
        %v2980 = vand.u32 %v2605, 4294901760
        %v2981 = vsub.f32 %v2605, %v2980
        %v2982 = vand.u32 %v2981, 4294901760
        %2983 = vmatpush1.msra.mxu0 %v2982
        %v2984 = vand.u32 %v2608, 4294901760
        %v2985 = vsub.f32 %v2608, %v2984
        %v2986 = vand.u32 %v2985, 4294901760
        %2987 = vmatprep.subr.mxu0 %v2986
        %v2988 = vand.u32 %v2607, 4294901760
        %v2989 = vsub.f32 %v2607, %v2988
        %v2990 = vand.u32 %v2989, 4294901760
        %2991 = vmatpush1.msra.mxu0 %v2990
        %2992 = vmatprep.subr.mxu0 0.0
        %2993 = vmatpush1.msra.mxu0 0.0
        %2994 = vmatprep.subr.mxu0 0.0
        %2995 = vmatpush1.msra.mxu0 0.0
        %2996 = vmatprep.subr.mxu0 0.0
        %2997 = vmatpush1.msra.mxu0 0.0
        %2998 = vmatprep.subr.mxu0 0.0
        %2999 = vmatpush1.msra.mxu0 0.0
        %3000 = vmatprep.subr.mxu0 0.0
        %3001 = vmatpush1.msra.mxu0 0.0
        %3002 = vmatprep.subr.mxu0 0.0
        %3003 = vmatpush1.msra.mxu0 0.0
        %3004 = vmatprep.subr.mxu0 0.0
        %3005 = vmatpush1.msra.mxu0 0.0
        %3006 = vmatprep.subr.mxu0 0.0
        %3007 = vmatpush1.msra.mxu0 0.0
        %3008 = vmatprep.subr.mxu0 0.0
        %3009 = vmatpush1.msra.mxu0 0.0
        %3010 = vmatprep.subr.mxu0 0.0
        %3011 = vmatpush1.msra.mxu0 0.0
        %3012 = vmatprep.subr.mxu0 0.0
        %3013 = vmatpush1.msra.mxu0 0.0
        %3014 = vmatprep.subr.mxu0 0.0
        %3015 = vmatpush1.msra.mxu0 0.0
        %3016 = vmatprep.subr.mxu0 0.0
        %3017 = vmatpush1.msra.mxu0 0.0
        %3018 = vmatprep.subr.mxu0 0.0
        %3019 = vmatpush1.msra.mxu0 0.0
        %3020 = vmatprep.subr.mxu0 0.0
        %3021 = vmatpush1.msra.mxu0 0.0
        %3022 = vmatprep.subr.mxu0 0.0
        %3023 = vmatpush1.msra.mxu0 0.0
        %3024 = vmatprep.subr.mxu0 0.0
        %3025 = vmatpush1.msra.mxu0 0.0
        %3026 = vmatprep.subr.mxu0 0.0
        %3027 = vmatpush1.msra.mxu0 0.0
        %3028 = vmatprep.subr.mxu0 0.0
        %3029 = vmatpush1.msra.mxu0 0.0
        %3030 = vmatprep.subr.mxu0 0.0
        %3031 = vmatpush1.msra.mxu0 0.0
        %3032 = vmatprep.subr.mxu0 0.0
        %3033 = vmatpush1.msra.mxu0 0.0
        %3034 = vmatprep.subr.mxu0 0.0
        %3035 = vmatpush1.msra.mxu0 0.0
        %3036 = vmatprep.subr.mxu0 0.0
        %3037 = vmatpush1.msra.mxu0 0.0
        %3038 = vmatprep.subr.mxu0 0.0
        %3039 = vmatpush1.msra.mxu0 0.0
        %3040 = vmatprep.subr.mxu0 0.0
        %3041 = vmatpush1.msra.mxu0 0.0
        %3042 = vmatprep.subr.mxu0 0.0
        %3043 = vmatpush1.msra.mxu0 0.0
        %3044 = vmatprep.subr.mxu0 0.0
        %3045 = vmatpush1.msra.mxu0 0.0
        %3046 = vmatprep.subr.mxu0 0.0
        %3047 = vmatpush1.msra.mxu0 0.0
        %3048 = vmatprep.subr.mxu0 0.0
        %3049 = vmatpush1.msra.mxu0 0.0
        %3050 = vmatprep.mubr.f32.mxu0 0.0
        %v3051 = vand.u32 %v2617, 4294901760
        %3052 = vmatmul.mubr.f32.gmra.mrb[0].mxu0 %v3051
        %v3053 = vpop.f32.mrb[0].mxu0
        %v3054 = vadd.f32 %v2964, %v3053
        %v3055 = vpop.f32.mrb[0].mxu0
        %v3056 = vadd.f32 %v2966, %v3055
        %3057 = vdwg.mxu0
        %v3058 = vand.u32 %v2604, 4294901760
        %3059 = vmatprep.subr.mxu0 %v3058
        %v3060 = vand.u32 %v2603, 4294901760
        %3061 = vmatpush1.msra.mxu0 %v3060
        %v3062 = vand.u32 %v2606, 4294901760
        %3063 = vmatprep.subr.mxu0 %v3062
        %v3064 = vand.u32 %v2605, 4294901760
        %3065 = vmatpush1.msra.mxu0 %v3064
        %v3066 = vand.u32 %v2608, 4294901760
        %3067 = vmatprep.subr.mxu0 %v3066
        %v3068 = vand.u32 %v2607, 4294901760
        %3069 = vmatpush1.msra.mxu0 %v3068
        %3070 = vmatprep.subr.mxu0 0.0
        %3071 = vmatpush1.msra.mxu0 0.0
        %3072 = vmatprep.subr.mxu0 0.0
        %3073 = vmatpush1.msra.mxu0 0.0
        %3074 = vmatprep.subr.mxu0 0.0
        %3075 = vmatpush1.msra.mxu0 0.0
        %3076 = vmatprep.subr.mxu0 0.0
        %3077 = vmatpush1.msra.mxu0 0.0
        %3078 = vmatprep.subr.mxu0 0.0
        %3079 = vmatpush1.msra.mxu0 0.0
        %3080 = vmatprep.subr.mxu0 0.0
        %3081 = vmatpush1.msra.mxu0 0.0
        %3082 = vmatprep.subr.mxu0 0.0
        %3083 = vmatpush1.msra.mxu0 0.0
        %3084 = vmatprep.subr.mxu0 0.0
        %3085 = vmatpush1.msra.mxu0 0.0
        %3086 = vmatprep.subr.mxu0 0.0
        %3087 = vmatpush1.msra.mxu0 0.0
        %3088 = vmatprep.subr.mxu0 0.0
        %3089 = vmatpush1.msra.mxu0 0.0
        %3090 = vmatprep.subr.mxu0 0.0
        %3091 = vmatpush1.msra.mxu0 0.0
        %3092 = vmatprep.subr.mxu0 0.0
        %3093 = vmatpush1.msra.mxu0 0.0
        %3094 = vmatprep.subr.mxu0 0.0
        %3095 = vmatpush1.msra.mxu0 0.0
        %3096 = vmatprep.subr.mxu0 0.0
        %3097 = vmatpush1.msra.mxu0 0.0
        %3098 = vmatprep.subr.mxu0 0.0
        %3099 = vmatpush1.msra.mxu0 0.0
        %3100 = vmatprep.subr.mxu0 0.0
        %3101 = vmatpush1.msra.mxu0 0.0
        %3102 = vmatprep.subr.mxu0 0.0
        %3103 = vmatpush1.msra.mxu0 0.0
        %3104 = vmatprep.subr.mxu0 0.0
        %3105 = vmatpush1.msra.mxu0 0.0
        %3106 = vmatprep.subr.mxu0 0.0
        %3107 = vmatpush1.msra.mxu0 0.0
        %3108 = vmatprep.subr.mxu0 0.0
        %3109 = vmatpush1.msra.mxu0 0.0
        %3110 = vmatprep.subr.mxu0 0.0
        %3111 = vmatpush1.msra.mxu0 0.0
        %3112 = vmatprep.subr.mxu0 0.0
        %3113 = vmatpush1.msra.mxu0 0.0
        %3114 = vmatprep.subr.mxu0 0.0
        %3115 = vmatpush1.msra.mxu0 0.0
        %3116 = vmatprep.subr.mxu0 0.0
        %3117 = vmatpush1.msra.mxu0 0.0
        %3118 = vmatprep.subr.mxu0 0.0
        %3119 = vmatpush1.msra.mxu0 0.0
        %3120 = vmatprep.subr.mxu0 0.0
        %3121 = vmatpush1.msra.mxu0 0.0
        %3122 = vmatprep.subr.mxu0 0.0
        %3123 = vmatpush1.msra.mxu0 0.0
        %3124 = vmatprep.subr.mxu0 0.0
        %3125 = vmatpush1.msra.mxu0 0.0
        %3126 = vmatprep.subr.mxu0 0.0
        %3127 = vmatpush1.msra.mxu0 0.0
        %3128 = vmatprep.mubr.f32.mxu0 0.0
        %v3129 = vand.u32 %v2617, 4294901760
        %3130 = vmatmul.mubr.f32.gmra.mrb[0].mxu0 %v3129
        %v3131 = vpop.f32.mrb[0].mxu0
        %v3132 = vadd.f32 %v3054, %v3131
        %v3133 = vpop.f32.mrb[0].mxu0
        %v3134 = vadd.f32 %v3056, %v3133
        %3135 = vdwg.mxu0
        %v3136 = vsel %vm989, %v3132, 0.0
        %v3137 = vsel %vm989, %v3134, 0.0
        %v3138 = vadd.f32 %v3136, %v3137
        %3139 = vadd.xlane.f32.xlu0 %v3138
        %v3140 = vpop.xlane.xlu0 %3139
        %v3141 = vmul.f32 %v3140, %v995
        %v3142 = vmul.f32 %v3132, %v3132
        %v3143 = vmul.f32 %v3134, %v3134
        %v3144 = vsel %vm989, %v3142, 0.0
        %v3145 = vsel %vm989, %v3143, 0.0
        %v3146 = vadd.f32 %v3144, %v3145
        %3147 = vadd.xlane.f32.xlu0 %v3146
        %v3148 = vpop.xlane.xlu0 %3147
        %v3149 = vmul.f32 %v3148, %v995
        %v3150 = vmul.f32 %v3141, %v3141
        %v3151 = vsub.f32 %v3149, %v3150
        %v3152 = vsub.f32 %v3132, %v3141
        %v3153 = vsub.f32 %v3134, %v3141
        %v3154 = vadd.f32 %v3151, 1e-05
        %v3155 = vrsqrt.pop %v3154
        %v3156 = vmul.f32 %v3152, %v3155
        %v3157 = vmul.f32 %v3153, %v3155
        %3158 = vset.pattern.permute.xlu0 1
        %3159 = vperm.xlu0 %3158, %v2057
        %v3160 = vpop.permute.xlu0 %3159
        %v3162 = vmul.f32 %v3156, %v3160
        %v3163 = vmul.f32 %v3157, %v3160
        %3164 = vset.pattern.permute.xlu0 2
        %3165 = vperm.xlu0 %3164, %v2057
        %v3166 = vpop.permute.xlu0 %3165
        %v3168 = vadd.f32 %v3162, %v3166
        %v3169 = vadd.f32 %v3163, %v3166
        %vm3170 = vcmp.ge.f32.partialorder %v3168, 0.0
        %vm3171 = vcmp.ge.f32.partialorder %v3169, 0.0
        %3172 = vset.pattern.permute.xlu0 3
        %3173 = vperm.xlu0 %3172, %v2057
        %v3174 = vpop.permute.xlu0 %3173
        %v3176 = vmul.f32 %v3174, %v3168
        %v3177 = vmul.f32 %v3174, %v3169
        %v3178 = vsel %vm3170, %v3168, %v3176
        %v3179 = vsel %vm3171, %v3169, %v3177
        %3180 = vst [vmem:[#allocation2 + $0x10] sm:$0xf] %v3178
        %3181 = vst [vmem:[#allocation2 + $0x18] sm:$0xf] %v3179
        %s3182 = scalar_lea.vmem %s1, 96
        %v3183 = vld [vmem:[%s3182] sm:$0xff]
        %v3184 = vld [vmem:[%s3182 + $0x8] sm:$0xff]
        %v3185 = vld [vmem:[%s3182 + $0x10] sm:$0xff]
        %v3186 = vld [vmem:[%s3182 + $0x18] sm:$0xff]
        %s3187 = scalar_lea.vmem %s2, 12
        %v3188 = vld [vmem:[%s3187] sm:$0xf]
        %s3189 = scalar_lea.vmem %s3, 12
        %v3190 = vld [vmem:[%s3189] sm:$0xf]
        %v3191 = vld [vmem:[#allocation2] sm:$0xff]
        %v3192 = vld [vmem:[#allocation2 + $0x8] sm:$0xff]
        %v3193 = vld [vmem:[#allocation2 + $0x10] sm:$0xff]
        %v3194 = vld [vmem:[#allocation2 + $0x30] sm:$0xff]
        %v3195 = vld [vmem:[#allocation2 + $0x38] sm:$0xff]
        %v3196 = vld [vmem:[#allocation2 + $0x40] sm:$0xff]
        %v3197 = vld [vmem:[#allocation2 + $0x60] sm:$0xff]
        %v3198 = vld [vmem:[#allocation2 + $0x68] sm:$0xff]
        %v3199 = vld [vmem:[#allocation2 + $0x70] sm:$0xff]
        %v3200 = vld [vmem:[#allocation2 + $0x90] sm:$0xff]
        %v3201 = vld [vmem:[#allocation2 + $0x98] sm:$0xff]
        %v3202 = vld [vmem:[#allocation2 + $0xa0] sm:$0xff]
        %3204 = vset.pattern.permute.xlu0 0
        %3205 = vperm.xlu0 %3204, %v3183
        %v3206 = vpop.permute.xlu0 %3205
        %3209 = vset.pattern.permute.xlu0 0
        %3210 = vperm.xlu0 %3209, %v3184
        %v3211 = vpop.permute.xlu0 %3210
        %3214 = vset.pattern.permute.xlu0 0
        %3215 = vperm.xlu0 %3214, %v3185
        %v3216 = vpop.permute.xlu0 %3215
        %3219 = vset.pattern.permute.xlu0 0
        %3220 = vperm.xlu0 %3219, %v3186
        %v3221 = vpop.permute.xlu0 %3220
        %v3223 = vmul.f32 %v3191, %v3206
        %v3224 = vmul.f32 %v3192, %v3206
        %v3225 = vmul.f32 %v3193, %v3206
        %v3226 = vmul.f32 %v3194, %v3211
        %v3227 = vmul.f32 %v3195, %v3211
        %v3228 = vmul.f32 %v3196, %v3211
        %v3229 = vmul.f32 %v3197, %v3216
        %v3230 = vmul.f32 %v3198, %v3216
        %v3231 = vmul.f32 %v3199, %v3216
        %v3232 = vmul.f32 %v3200, %v3221
        %v3233 = vmul.f32 %v3201, %v3221
        %v3234 = vmul.f32 %v3202, %v3221
        %v3235 = vld [vmem:[#allocation2 + $0x8] sm:$0xff]
        %v3236 = vld [vmem:[#allocation2 + $0x10] sm:$0xff]
        %v3237 = vld [vmem:[#allocation2 + $0x18] sm:$0xff]
        %v3238 = vld [vmem:[#allocation2 + $0x38] sm:$0xff]
        %v3239 = vld [vmem:[#allocation2 + $0x40] sm:$0xff]
        %v3240 = vld [vmem:[#allocation2 + $0x48] sm:$0xff]
        %v3241 = vld [vmem:[#allocation2 + $0x68] sm:$0xff]
        %v3242 = vld [vmem:[#allocation2 + $0x70] sm:$0xff]
        %v3243 = vld [vmem:[#allocation2 + $0x78] sm:$0xff]
        %v3244 = vld [vmem:[#allocation2 + $0x98] sm:$0xff]
        %v3245 = vld [vmem:[#allocation2 + $0xa0] sm:$0xff]
        %v3246 = vld [vmem:[#allocation2 + $0xa8] sm:$0xff]
        %3247 = vset.pattern.permute.xlu0 3
        %3248 = vperm.xlu0 %3247, %v3183
        %v3249 = vpop.permute.xlu0 %3248
        %3251 = vset.pattern.permute.xlu0 3
        %3252 = vperm.xlu0 %3251, %v3184
        %v3253 = vpop.permute.xlu0 %3252
        %3255 = vset.pattern.permute.xlu0 3
        %3256 = vperm.xlu0 %3255, %v3185
        %v3257 = vpop.permute.xlu0 %3256
        %3259 = vset.pattern.permute.xlu0 3
        %3260 = vperm.xlu0 %3259, %v3186
        %v3261 = vpop.permute.xlu0 %3260
        %v3263 = vmul.f32 %v3235, %v3249
        %v3264 = vmul.f32 %v3236, %v3249
        %v3265 = vmul.f32 %v3237, %v3249
        %v3266 = vmul.f32 %v3238, %v3253
        %v3267 = vmul.f32 %v3239, %v3253
        %v3268 = vmul.f32 %v3240, %v3253
        %v3269 = vmul.f32 %v3241, %v3257
        %v3270 = vmul.f32 %v3242, %v3257
        %v3271 = vmul.f32 %v3243, %v3257
        %v3272 = vmul.f32 %v3244, %v3261
        %v3273 = vmul.f32 %v3245, %v3261
        %v3274 = vmul.f32 %v3246, %v3261
        %v3275 = vadd.f32 %v3223, %v3263
        %v3276 = vadd.f32 %v3224, %v3264
        %v3277 = vadd.f32 %v3225, %v3265
        %v3278 = vadd.f32 %v3226, %v3266
        %v3279 = vadd.f32 %v3227, %v3267
        %v3280 = vadd.f32 %v3228, %v3268
        %v3281 = vadd.f32 %v3229, %v3269
        %v3282 = vadd.f32 %v3230, %v3270
        %v3283 = vadd.f32 %v3231, %v3271
        %v3284 = vadd.f32 %v3232, %v3272
        %v3285 = vadd.f32 %v3233, %v3273
        %v3286 = vadd.f32 %v3234, %v3274
        %v3287 = vld [vmem:[#allocation2 + $0x10] sm:$0xff]
        %v3288 = vld [vmem:[#allocation2 + $0x18] sm:$0xff]
        %v3289 = vld [vmem:[#allocation2 + $0x20] sm:$0xff]
        %v3290 = vld [vmem:[#allocation2 + $0x40] sm:$0xff]
        %v3291 = vld [vmem:[#allocation2 + $0x48] sm:$0xff]
        %v3292 = vld [vmem:[#allocation2 + $0x50] sm:$0xff]
        %v3293 = vld [vmem:[#allocation2 + $0x70] sm:$0xff]
        %v3294 = vld [vmem:[#allocation2 + $0x78] sm:$0xff]
        %v3295 = vld [vmem:[#allocation2 + $0x80] sm:$0xff]
        %v3296 = vld [vmem:[#allocation2 + $0xa0] sm:$0xff]
        %v3297 = vld [vmem:[#allocation2 + $0xa8] sm:$0xff]
        %v3298 = vld [vmem:[#allocation2 + $0xb0] sm:$0xff]
        %3299 = vset.pattern.permute.xlu0 6
        %3300 = vperm.xlu0 %3299, %v3183
        %v3301 = vpop.permute.xlu0 %3300
        %3303 = vset.pattern.permute.xlu0 6
        %3304 = vperm.xlu0 %3303, %v3184
        %v3305 = vpop.permute.xlu0 %3304
        %3307 = vset.pattern.permute.xlu0 6
        %3308 = vperm.xlu0 %3307, %v3185
        %v3309 = vpop.permute.xlu0 %3308
        %3311 = vset.pattern.permute.xlu0 6
        %3312 = vperm.xlu0 %3311, %v3186
        %v3313 = vpop.permute.xlu0 %3312
        %v3315 = vmul.f32 %v3287, %v3301
        %v3316 = vmul.f32 %v3288, %v3301
        %v3317 = vmul.f32 %v3289, %v3301
        %v3318 = vmul.f32 %v3290, %v3305
        %v3319 = vmul.f32 %v3291, %v3305
        %v3320 = vmul.f32 %v3292, %v3305
        %v3321 = vmul.f32 %v3293, %v3309
        %v3322 = vmul.f32 %v3294, %v3309
        %v3323 = vmul.f32 %v3295, %v3309
        %v3324 = vmul.f32 %v3296, %v3313
        %v3325 = vmul.f32 %v3297, %v3313
        %v3326 = vmul.f32 %v3298, %v3313
        %v3327 = vadd.f32 %v3275, %v3315
        %v3328 = vadd.f32 %v3276, %v3316
        %v3329 = vadd.f32 %v3277, %v3317
        %v3330 = vadd.f32 %v3278, %v3318
        %v3331 = vadd.f32 %v3279, %v3319
        %v3332 = vadd.f32 %v3280, %v3320
        %v3333 = vadd.f32 %v3281, %v3321
        %v3334 = vadd.f32 %v3282, %v3322
        %v3335 = vadd.f32 %v3283, %v3323
        %v3336 = vadd.f32 %v3284, %v3324
        %v3337 = vadd.f32 %v3285, %v3325
        %v3338 = vadd.f32 %v3286, %v3326
        %3339 = vrot.lane.b32.xlu0 %v257, 127
        %v3340 = vpop.permute.xlu0 %3339
        %3341 = vrot.lane.b32.xlu0 %v258, 127
        %v3342 = vpop.permute.xlu0 %3341
        %v3343 = vsel %vm405, %v3340, %v3342
        %v3347 = vmul.f32 %v3327, %v3340
        %v3348 = vmul.f32 %v3328, %v3343
        %v3349 = vmul.f32 %v3329, %v3342
        %v3350 = vmul.f32 %v3330, %v3340
        %v3351 = vmul.f32 %v3331, %v3343
        %v3352 = vmul.f32 %v3332, %v3342
        %v3353 = vmul.f32 %v3333, %v3340
        %v3354 = vmul.f32 %v3334, %v3343
        %v3355 = vmul.f32 %v3335, %v3342
        %v3356 = vmul.f32 %v3336, %v3340
        %v3357 = vmul.f32 %v3337, %v3343
        %v3358 = vmul.f32 %v3338, %v3342
        %3359 = vset.pattern.permute.xlu0 1
        %3360 = vperm.xlu0 %3359, %v3183
        %v3361 = vpop.permute.xlu0 %3360
        %3363 = vset.pattern.permute.xlu0 1
        %3364 = vperm.xlu0 %3363, %v3184
        %v3365 = vpop.permute.xlu0 %3364
        %3367 = vset.pattern.permute.xlu0 1
        %3368 = vperm.xlu0 %3367, %v3185
        %v3369 = vpop.permute.xlu0 %3368
        %3371 = vset.pattern.permute.xlu0 1
        %3372 = vperm.xlu0 %3371, %v3186
        %v3373 = vpop.permute.xlu0 %3372
        %v3375 = vmul.f32 %v3192, %v3361
        %v3376 = vmul.f32 %v3193, %v3361
        %v3377 = vmul.f32 %v3195, %v3365
        %v3378 = vmul.f32 %v3196, %v3365
        %v3379 = vmul.f32 %v3198, %v3369
        %v3380 = vmul.f32 %v3199, %v3369
        %v3381 = vmul.f32 %v3201, %v3373
        %v3382 = vmul.f32 %v3202, %v3373
        %3383 = vset.pattern.permute.xlu0 4
        %3384 = vperm.xlu0 %3383, %v3183
        %v3385 = vpop.permute.xlu0 %3384
        %3387 = vset.pattern.permute.xlu0 4
        %3388 = vperm.xlu0 %3387, %v3184
        %v3389 = vpop.permute.xlu0 %3388
        %3391 = vset.pattern.permute.xlu0 4
        %3392 = vperm.xlu0 %3391, %v3185
        %v3393 = vpop.permute.xlu0 %3392
        %3395 = vset.pattern.permute.xlu0 4
        %3396 = vperm.xlu0 %3395, %v3186
        %v3397 = vpop.permute.xlu0 %3396
        %v3399 = vmul.f32 %v3236, %v3385
        %v3400 = vmul.f32 %v3237, %v3385
        %v3401 = vmul.f32 %v3239, %v3389
        %v3402 = vmul.f32 %v3240, %v3389
        %v3403 = vmul.f32 %v3242, %v3393
        %v3404 = vmul.f32 %v3243, %v3393
        %v3405 = vmul.f32 %v3245, %v3397
        %v3406 = vmul.f32 %v3246, %v3397
        %v3407 = vadd.f32 %v3375, %v3399
        %v3408 = vadd.f32 %v3376, %v3400
        %v3409 = vadd.f32 %v3377, %v3401
        %v3410 = vadd.f32 %v3378, %v3402
        %v3411 = vadd.f32 %v3379, %v3403
        %v3412 = vadd.f32 %v3380, %v3404
        %v3413 = vadd.f32 %v3381, %v3405
        %v3414 = vadd.f32 %v3382, %v3406
        %3415 = vset.pattern.permute.xlu0 7
        %3416 = vperm.xlu0 %3415, %v3183
        %v3417 = vpop.permute.xlu0 %3416
        %3419 = vset.pattern.permute.xlu0 7
        %3420 = vperm.xlu0 %3419, %v3184
        %v3421 = vpop.permute.xlu0 %3420
        %3423 = vset.pattern.permute.xlu0 7
        %3424 = vperm.xlu0 %3423, %v3185
        %v3425 = vpop.permute.xlu0 %3424
        %3427 = vset.pattern.permute.xlu0 7
        %3428 = vperm.xlu0 %3427, %v3186
        %v3429 = vpop.permute.xlu0 %3428
        %v3431 = vmul.f32 %v3288, %v3417
        %v3432 = vmul.f32 %v3289, %v3417
        %v3433 = vmul.f32 %v3291, %v3421
        %v3434 = vmul.f32 %v3292, %v3421
        %v3435 = vmul.f32 %v3294, %v3425
        %v3436 = vmul.f32 %v3295, %v3425
        %v3437 = vmul.f32 %v3297, %v3429
        %v3438 = vmul.f32 %v3298, %v3429
        %v3439 = vadd.f32 %v3407, %v3431
        %v3440 = vadd.f32 %v3408, %v3432
        %v3441 = vadd.f32 %v3409, %v3433
        %v3442 = vadd.f32 %v3410, %v3434
        %v3443 = vadd.f32 %v3411, %v3435
        %v3444 = vadd.f32 %v3412, %v3436
        %v3445 = vadd.f32 %v3413, %v3437
        %v3446 = vadd.f32 %v3414, %v3438
        %3455 = vrot.lane.b32.xlu0 %v3439, 127
        %v3456 = vpop.permute.xlu0 %3455
        %3457 = vrot.lane.b32.xlu0 %v3440, 127
        %v3458 = vpop.permute.xlu0 %3457
        %3459 = vrot.lane.b32.xlu0 %v3441, 127
        %v3460 = vpop.permute.xlu0 %3459
        %3461 = vrot.lane.b32.xlu0 %v3442, 127
        %v3462 = vpop.permute.xlu0 %3461
        %3463 = vrot.lane.b32.xlu0 %v3443, 127
        %v3464 = vpop.permute.xlu0 %3463
        %3465 = vrot.lane.b32.xlu0 %v3444, 127
        %v3466 = vpop.permute.xlu0 %3465
        %3467 = vrot.lane.b32.xlu0 %v3445, 127
        %v3468 = vpop.permute.xlu0 %3467
        %3469 = vrot.lane.b32.xlu0 %v3446, 127
        %v3470 = vpop.permute.xlu0 %3469
        %v3471 = vsel %vm405, %v3456, %v3458
        %v3472 = vsel %vm405, %v3460, %v3462
        %v3473 = vsel %vm405, %v3464, %v3466
        %v3474 = vsel %vm405, %v3468, %v3470
        %v3487 = vadd.f32 %v3347, %v3456
        %v3488 = vadd.f32 %v3348, %v3471
        %v3489 = vadd.f32 %v3349, %v3458
        %v3490 = vadd.f32 %v3350, %v3460
        %v3491 = vadd.f32 %v3351, %v3472
        %v3492 = vadd.f32 %v3352, %v3462
        %v3493 = vadd.f32 %v3353, %v3464
        %v3494 = vadd.f32 %v3354, %v3473
        %v3495 = vadd.f32 %v3355, %v3466
        %v3496 = vadd.f32 %v3356, %v3468
        %v3497 = vadd.f32 %v3357, %v3474
        %v3498 = vadd.f32 %v3358, %v3470
        %3499 = vset.pattern.permute.xlu0 2
        %3500 = vperm.xlu0 %3499, %v3183
        %v3501 = vpop.permute.xlu0 %3500
        %3503 = vset.pattern.permute.xlu0 2
        %3504 = vperm.xlu0 %3503, %v3184
        %v3505 = vpop.permute.xlu0 %3504
        %3507 = vset.pattern.permute.xlu0 2
        %3508 = vperm.xlu0 %3507, %v3185
        %v3509 = vpop.permute.xlu0 %3508
        %3511 = vset.pattern.permute.xlu0 2
        %3512 = vperm.xlu0 %3511, %v3186
        %v3513 = vpop.permute.xlu0 %3512
        %v3515 = vmul.f32 %v3235, %v3501
        %v3516 = vmul.f32 %v3236, %v3501
        %v3517 = vmul.f32 %v3237, %v3501
        %v3518 = vmul.f32 %v3238, %v3505
        %v3519 = vmul.f32 %v3239, %v3505
        %v3520 = vmul.f32 %v3240, %v3505
        %v3521 = vmul.f32 %v3241, %v3509
        %v3522 = vmul.f32 %v3242, %v3509
        %v3523 = vmul.f32 %v3243, %v3509
        %v3524 = vmul.f32 %v3244, %v3513
        %v3525 = vmul.f32 %v3245, %v3513
        %v3526 = vmul.f32 %v3246, %v3513
        %3527 = vset.pattern.permute.xlu0 5
        %3528 = vperm.xlu0 %3527, %v3183
        %v3529 = vpop.permute.xlu0 %3528
        %3531 = vset.pattern.permute.xlu0 5
        %3532 = vperm.xlu0 %3531, %v3184
        %v3533 = vpop.permute.xlu0 %3532
        %3535 = vset.pattern.permute.xlu0 5
        %3536 = vperm.xlu0 %3535, %v3185
        %v3537 = vpop.permute.xlu0 %3536
        %3539 = vset.pattern.permute.xlu0 5
        %3540 = vperm.xlu0 %3539, %v3186
        %v3541 = vpop.permute.xlu0 %3540
        %v3543 = vmul.f32 %v3287, %v3529
        %v3544 = vmul.f32 %v3288, %v3529
        %v3545 = vmul.f32 %v3289, %v3529
        %v3546 = vmul.f32 %v3290, %v3533
        %v3547 = vmul.f32 %v3291, %v3533
        %v3548 = vmul.f32 %v3292, %v3533
        %v3549 = vmul.f32 %v3293, %v3537
        %v3550 = vmul.f32 %v3294, %v3537
        %v3551 = vmul.f32 %v3295, %v3537
        %v3552 = vmul.f32 %v3296, %v3541
        %v3553 = vmul.f32 %v3297, %v3541
        %v3554 = vmul.f32 %v3298, %v3541
        %v3555 = vadd.f32 %v3515, %v3543
        %v3556 = vadd.f32 %v3516, %v3544
        %v3557 = vadd.f32 %v3517, %v3545
        %v3558 = vadd.f32 %v3518, %v3546
        %v3559 = vadd.f32 %v3519, %v3547
        %v3560 = vadd.f32 %v3520, %v3548
        %v3561 = vadd.f32 %v3521, %v3549
        %v3562 = vadd.f32 %v3522, %v3550
        %v3563 = vadd.f32 %v3523, %v3551
        %v3564 = vadd.f32 %v3524, %v3552
        %v3565 = vadd.f32 %v3525, %v3553
        %v3566 = vadd.f32 %v3526, %v3554
        %v3567 = vld [vmem:[#allocation2 + $0x18] sm:$0xff]
        %v3568 = vld [vmem:[#allocation2 + $0x20] sm:$0xff]
        %v3569 = vld [vmem:[#allocation2 + $0x28] sm:$0xff]
        %v3570 = vld [vmem:[#allocation2 + $0x48] sm:$0xff]
        %v3571 = vld [vmem:[#allocation2 + $0x50] sm:$0xff]
        %v3572 = vld [vmem:[#allocation2 + $0x58] sm:$0xff]
        %v3573 = vld [vmem:[#allocation2 + $0x78] sm:$0xff]
        %v3574 = vld [vmem:[#allocation2 + $0x80] sm:$0xff]
        %v3575 = vld [vmem:[#allocation2 + $0x88] sm:$0xff]
        %v3576 = vld [vmem:[#allocation2 + $0xa8] sm:$0xff]
        %v3577 = vld [vmem:[#allocation2 + $0xb0] sm:$0xff]
        %v3578 = vld [vmem:[#allocation2 + $0xb8] sm:$0xff]
        %3579 = vset.pattern.permute.xlu0 8
        %3580 = vperm.xlu0 %3579, %v3183
        %v3581 = vpop.permute.xlu0 %3580
        %3583 = vset.pattern.permute.xlu0 8
        %3584 = vperm.xlu0 %3583, %v3184
        %v3585 = vpop.permute.xlu0 %3584
        %3587 = vset.pattern.permute.xlu0 8
        %3588 = vperm.xlu0 %3587, %v3185
        %v3589 = vpop.permute.xlu0 %3588
        %3591 = vset.pattern.permute.xlu0 8
        %3592 = vperm.xlu0 %3591, %v3186
        %v3593 = vpop.permute.xlu0 %3592
        %v3595 = vmul.f32 %v3567, %v3581
        %v3596 = vmul.f32 %v3568, %v3581
        %v3597 = vmul.f32 %v3569, %v3581
        %v3598 = vmul.f32 %v3570, %v3585
        %v3599 = vmul.f32 %v3571, %v3585
        %v3600 = vmul.f32 %v3572, %v3585
        %v3601 = vmul.f32 %v3573, %v3589
        %v3602 = vmul.f32 %v3574, %v3589
        %v3603 = vmul.f32 %v3575, %v3589
        %v3604 = vmul.f32 %v3576, %v3593
        %v3605 = vmul.f32 %v3577, %v3593
        %v3606 = vmul.f32 %v3578, %v3593
        %v3607 = vadd.f32 %v3555, %v3595
        %v3608 = vadd.f32 %v3556, %v3596
        %v3609 = vadd.f32 %v3557, %v3597
        %v3610 = vadd.f32 %v3558, %v3598
        %v3611 = vadd.f32 %v3559, %v3599
        %v3612 = vadd.f32 %v3560, %v3600
        %v3613 = vadd.f32 %v3561, %v3601
        %v3614 = vadd.f32 %v3562, %v3602
        %v3615 = vadd.f32 %v3563, %v3603
        %v3616 = vadd.f32 %v3564, %v3604
        %v3617 = vadd.f32 %v3565, %v3605
        %v3618 = vadd.f32 %v3566, %v3606
        %3619 = vrot.lane.b32.xlu0 %v263, 1
        %v3620 = vpop.permute.xlu0 %3619
        %3621 = vrot.lane.b32.xlu0 %v264, 1
        %v3622 = vpop.permute.xlu0 %3621
        %vm3623 = vcmask 7168
        %v3624 = vsel %vm3623, %v3620, %v3622
        %v3628 = vmul.f32 %v3607, %v3620
        %v3629 = vmul.f32 %v3608, %v3624
        %v3630 = vmul.f32 %v3609, %v3622
        %v3631 = vmul.f32 %v3610, %v3620
        %v3632 = vmul.f32 %v3611, %v3624
        %v3633 = vmul.f32 %v3612, %v3622
        %v3634 = vmul.f32 %v3613, %v3620
        %v3635 = vmul.f32 %v3614, %v3624
        %v3636 = vmul.f32 %v3615, %v3622
        %v3637 = vmul.f32 %v3616, %v3620
        %v3638 = vmul.f32 %v3617, %v3624
        %v3639 = vmul.f32 %v3618, %v3622
        %3652 = vrot.lane.b32.xlu0 %v3628, 126
        %v3653 = vpop.permute.xlu0 %3652
        %3654 = vrot.lane.b32.xlu0 %v3629, 126
        %v3655 = vpop.permute.xlu0 %3654
        %3656 = vrot.lane.b32.xlu0 %v3630, 126
        %v3657 = vpop.permute.xlu0 %3656
        %3658 = vrot.lane.b32.xlu0 %v3631, 126
        %v3659 = vpop.permute.xlu0 %3658
        %3660 = vrot.lane.b32.xlu0 %v3632, 126
        %v3661 = vpop.permute.xlu0 %3660
        %3662 = vrot.lane.b32.xlu0 %v3633, 126
        %v3663 = vpop.permute.xlu0 %3662
        %3664 = vrot.lane.b32.xlu0 %v3634, 126
        %v3665 = vpop.permute.xlu0 %3664
        %3666 = vrot.lane.b32.xlu0 %v3635, 126
        %v3667 = vpop.permute.xlu0 %3666
        %3668 = vrot.lane.b32.xlu0 %v3636, 126
        %v3669 = vpop.permute.xlu0 %3668
        %3670 = vrot.lane.b32.xlu0 %v3637, 126
        %v3671 = vpop.permute.xlu0 %3670
        %3672 = vrot.lane.b32.xlu0 %v3638, 126
        %v3673 = vpop.permute.xlu0 %3672
        %3674 = vrot.lane.b32.xlu0 %v3639, 126
        %v3675 = vpop.permute.xlu0 %3674
        %v3676 = vsel %vm492, %v3653, %v3655
        %v3677 = vsel %vm492, %v3655, %v3657
        %v3678 = vsel %vm492, %v3659, %v3661
        %v3679 = vsel %vm492, %v3661, %v3663
        %v3680 = vsel %vm492, %v3665, %v3667
        %v3681 = vsel %vm492, %v3667, %v3669
        %v3682 = vsel %vm492, %v3671, %v3673
        %v3683 = vsel %vm492, %v3673, %v3675
        %v3696 = vadd.f32 %v3487, %v3653
        %v3697 = vadd.f32 %v3488, %v3676
        %v3698 = vadd.f32 %v3489, %v3677
        %v3699 = vadd.f32 %v3490, %v3659
        %v3700 = vadd.f32 %v3491, %v3678
        %v3701 = vadd.f32 %v3492, %v3679
        %v3702 = vadd.f32 %v3493, %v3665
        %v3703 = vadd.f32 %v3494, %v3680
        %v3704 = vadd.f32 %v3495, %v3681
        %v3705 = vadd.f32 %v3496, %v3671
        %v3706 = vadd.f32 %v3497, %v3682
        %v3707 = vadd.f32 %v3498, %v3683
        %3709 = vset.pattern.permute.xlu0 0
        %3710 = vperm.xlu0 %3709, %v3190
        %v3711 = vpop.permute.xlu0 %3710
        %3725 = vrot.lane.b32.xlu0 %v3696, 1
        %v3726 = vpop.permute.xlu0 %3725
        %3727 = vrot.lane.b32.xlu0 %v3697, 1
        %v3728 = vpop.permute.xlu0 %3727
        %3729 = vrot.lane.b32.xlu0 %v3698, 1
        %v3730 = vpop.permute.xlu0 %3729
        %3731 = vrot.lane.b32.xlu0 %v3699, 1
        %v3732 = vpop.permute.xlu0 %3731
        %3733 = vrot.lane.b32.xlu0 %v3700, 1
        %v3734 = vpop.permute.xlu0 %3733
        %3735 = vrot.lane.b32.xlu0 %v3701, 1
        %v3736 = vpop.permute.xlu0 %3735
        %3737 = vrot.lane.b32.xlu0 %v3702, 1
        %v3738 = vpop.permute.xlu0 %3737
        %3739 = vrot.lane.b32.xlu0 %v3703, 1
        %v3740 = vpop.permute.xlu0 %3739
        %3741 = vrot.lane.b32.xlu0 %v3704, 1
        %v3742 = vpop.permute.xlu0 %3741
        %3743 = vrot.lane.b32.xlu0 %v3705, 1
        %v3744 = vpop.permute.xlu0 %3743
        %3745 = vrot.lane.b32.xlu0 %v3706, 1
        %v3746 = vpop.permute.xlu0 %3745
        %3747 = vrot.lane.b32.xlu0 %v3707, 1
        %v3748 = vpop.permute.xlu0 %3747
        %v3749 = vsel %vm3623, %v3726, %v3728
        %v3750 = vsel %vm3623, %v3728, %v3730
        %v3751 = vsel %vm3623, %v3732, %v3734
        %v3752 = vsel %vm3623, %v3734, %v3736
        %v3753 = vsel %vm3623, %v3738, %v3740
        %v3754 = vsel %vm3623, %v3740, %v3742
        %v3755 = vsel %vm3623, %v3744, %v3746
        %v3756 = vsel %vm3623, %v3746, %v3748
        %vm3765 = vcmask 261120
        %v3767 = vsel %vm3765, %v3188, 0
        %v3769 = vand.u32 %v3750, 4294901760
        %3770 = vmatprep.subr.mxu0 %v3769
        %v3771 = vand.u32 %v3749, 4294901760
        %3772 = vmatpush1.msra.mxu0 %v3771
        %v3773 = vand.u32 %v3752, 4294901760
        %3774 = vmatprep.subr.mxu0 %v3773
        %v3775 = vand.u32 %v3751, 4294901760
        %3776 = vmatpush1.msra.mxu0 %v3775
        %v3777 = vand.u32 %v3754, 4294901760
        %3778 = vmatprep.subr.mxu0 %v3777
        %v3779 = vand.u32 %v3753, 4294901760
        %3780 = vmatpush1.msra.mxu0 %v3779
        %v3781 = vand.u32 %v3756, 4294901760
        %3782 = vmatprep.subr.mxu0 %v3781
        %v3783 = vand.u32 %v3755, 4294901760
        %3784 = vmatpush1.msra.mxu0 %v3783
        %3785 = vmatprep.subr.mxu0 0.0
        %3786 = vmatpush1.msra.mxu0 0.0
        %3787 = vmatprep.subr.mxu0 0.0
        %3788 = vmatpush1.msra.mxu0 0.0
        %3789 = vmatprep.subr.mxu0 0.0
        %3790 = vmatpush1.msra.mxu0 0.0
        %3791 = vmatprep.subr.mxu0 0.0
        %3792 = vmatpush1.msra.mxu0 0.0
        %3793 = vmatprep.subr.mxu0 0.0
        %3794 = vmatpush1.msra.mxu0 0.0
        %3795 = vmatprep.subr.mxu0 0.0
        %3796 = vmatpush1.msra.mxu0 0.0
        %3797 = vmatprep.subr.mxu0 0.0
        %3798 = vmatpush1.msra.mxu0 0.0
        %3799 = vmatprep.subr.mxu0 0.0
        %3800 = vmatpush1.msra.mxu0 0.0
        %3801 = vmatprep.subr.mxu0 0.0
        %3802 = vmatpush1.msra.mxu0 0.0
        %3803 = vmatprep.subr.mxu0 0.0
        %3804 = vmatpush1.msra.mxu0 0.0
        %3805 = vmatprep.subr.mxu0 0.0
        %3806 = vmatpush1.msra.mxu0 0.0
        %3807 = vmatprep.subr.mxu0 0.0
        %3808 = vmatpush1.msra.mxu0 0.0
        %3809 = vmatprep.subr.mxu0 0.0
        %3810 = vmatpush1.msra.mxu0 0.0
        %3811 = vmatprep.subr.mxu0 0.0
        %3812 = vmatpush1.msra.mxu0 0.0
        %3813 = vmatprep.subr.mxu0 0.0
        %3814 = vmatpush1.msra.mxu0 0.0
        %3815 = vmatprep.subr.mxu0 0.0
        %3816 = vmatpush1.msra.mxu0 0.0
        %3817 = vmatprep.subr.mxu0 0.0
        %3818 = vmatpush1.msra.mxu0 0.0
        %3819 = vmatprep.subr.mxu0 0.0
        %3820 = vmatpush1.msra.mxu0 0.0
        %3821 = vmatprep.subr.mxu0 0.0
        %3822 = vmatpush1.msra.mxu0 0.0
        %3823 = vmatprep.subr.mxu0 0.0
        %3824 = vmatpush1.msra.mxu0 0.0
        %3825 = vmatprep.subr.mxu0 0.0
        %3826 = vmatpush1.msra.mxu0 0.0
        %3827 = vmatprep.subr.mxu0 0.0
        %3828 = vmatpush1.msra.mxu0 0.0
        %3829 = vmatprep.subr.mxu0 0.0
        %3830 = vmatpush1.msra.mxu0 0.0
        %3831 = vmatprep.subr.mxu0 0.0
        %3832 = vmatpush1.msra.mxu0 0.0
        %3833 = vmatprep.subr.mxu0 0.0
        %3834 = vmatpush1.msra.mxu0 0.0
        %3835 = vmatprep.subr.mxu0 0.0
        %3836 = vmatpush1.msra.mxu0 0.0
        %3837 = vmatprep.subr.mxu0 0.0
        %3838 = vmatpush1.msra.mxu0 0.0
        %3839 = vmatprep.subr.mxu0 0.0
        %3840 = vmatpush1.msra.mxu0 0.0
        %3841 = vmatprep.mubr.f32.mxu0 0.0
        %v3842 = vand.u32 %v3767, 4294901760
        %v3843 = vsub.f32 %v3767, %v3842
        %v3844 = vand.u32 %v3843, 4294901760
        %v3845 = vsub.f32 %v3843, %v3844
        %v3846 = vand.u32 %v3845, 4294901760
        %3847 = vmatmul.mubr.f32.gmra.mrb[0].mxu0 %v3846
        %v3848 = vpop.f32.mrb[0].mxu0
        %v3849 = vadd.f32 %v3711, %v3848
        %v3850 = vpop.f32.mrb[0].mxu0
        %v3851 = vadd.f32 %v3711, %v3850
        %3852 = vdwg.mxu0
        %v3853 = vand.u32 %v3750, 4294901760
        %v3854 = vsub.f32 %v3750, %v3853
        %v3855 = vand.u32 %v3854, 4294901760
        %v3856 = vsub.f32 %v3854, %v3855
        %v3857 = vand.u32 %v3856, 4294901760
        %3858 = vmatprep.subr.mxu0 %v3857
        %v3859 = vand.u32 %v3749, 4294901760
        %v3860 = vsub.f32 %v3749, %v3859
        %v3861 = vand.u32 %v3860, 4294901760
        %v3862 = vsub.f32 %v3860, %v3861
        %v3863 = vand.u32 %v3862, 4294901760
        %3864 = vmatpush1.msra.mxu0 %v3863
        %v3865 = vand.u32 %v3752, 4294901760
        %v3866 = vsub.f32 %v3752, %v3865
        %v3867 = vand.u32 %v3866, 4294901760
        %v3868 = vsub.f32 %v3866, %v3867
        %v3869 = vand.u32 %v3868, 4294901760
        %3870 = vmatprep.subr.mxu0 %v3869
        %v3871 = vand.u32 %v3751, 4294901760
        %v3872 = vsub.f32 %v3751, %v3871
        %v3873 = vand.u32 %v3872, 4294901760
        %v3874 = vsub.f32 %v3872, %v3873
        %v3875 = vand.u32 %v3874, 4294901760
        %3876 = vmatpush1.msra.mxu0 %v3875
        %v3877 = vand.u32 %v3754, 4294901760
        %v3878 = vsub.f32 %v3754, %v3877
        %v3879 = vand.u32 %v3878, 4294901760
        %v3880 = vsub.f32 %v3878, %v3879
        %v3881 = vand.u32 %v3880, 4294901760
        %3882 = vmatprep.subr.mxu0 %v3881
        %v3883 = vand.u32 %v3753, 4294901760
        %v3884 = vsub.f32 %v3753, %v3883
        %v3885 = vand.u32 %v3884, 4294901760
        %v3886 = vsub.f32 %v3884, %v3885
        %v3887 = vand.u32 %v3886, 4294901760
        %3888 = vmatpush1.msra.mxu0 %v3887
        %v3889 = vand.u32 %v3756, 4294901760
        %v3890 = vsub.f32 %v3756, %v3889
        %v3891 = vand.u32 %v3890, 4294901760
        %v3892 = vsub.f32 %v3890, %v3891
        %v3893 = vand.u32 %v3892, 4294901760
        %3894 = vmatprep.subr.mxu0 %v3893
        %v3895 = vand.u32 %v3755, 4294901760
        %v3896 = vsub.f32 %v3755, %v3895
        %v3897 = vand.u32 %v3896, 4294901760
        %v3898 = vsub.f32 %v3896, %v3897
        %v3899 = vand.u32 %v3898, 4294901760
        %3900 = vmatpush1.msra.mxu0 %v3899
        %3901 = vmatprep.subr.mxu0 0.0
        %3902 = vmatpush1.msra.mxu0 0.0
        %3903 = vmatprep.subr.mxu0 0.0
        %3904 = vmatpush1.msra.mxu0 0.0
        %3905 = vmatprep.subr.mxu0 0.0
        %3906 = vmatpush1.msra.mxu0 0.0
        %3907 = vmatprep.subr.mxu0 0.0
        %3908 = vmatpush1.msra.mxu0 0.0
        %3909 = vmatprep.subr.mxu0 0.0
        %3910 = vmatpush1.msra.mxu0 0.0
        %3911 = vmatprep.subr.mxu0 0.0
        %3912 = vmatpush1.msra.mxu0 0.0
        %3913 = vmatprep.subr.mxu0 0.0
        %3914 = vmatpush1.msra.mxu0 0.0
        %3915 = vmatprep.subr.mxu0 0.0
        %3916 = vmatpush1.msra.mxu0 0.0
        %3917 = vmatprep.subr.mxu0 0.0
        %3918 = vmatpush1.msra.mxu0 0.0
        %3919 = vmatprep.subr.mxu0 0.0
        %3920 = vmatpush1.msra.mxu0 0.0
        %3921 = vmatprep.subr.mxu0 0.0
        %3922 = vmatpush1.msra.mxu0 0.0
        %3923 = vmatprep.subr.mxu0 0.0
        %3924 = vmatpush1.msra.mxu0 0.0
        %3925 = vmatprep.subr.mxu0 0.0
        %3926 = vmatpush1.msra.mxu0 0.0
        %3927 = vmatprep.subr.mxu0 0.0
        %3928 = vmatpush1.msra.mxu0 0.0
        %3929 = vmatprep.subr.mxu0 0.0
        %3930 = vmatpush1.msra.mxu0 0.0
        %3931 = vmatprep.subr.mxu0 0.0
        %3932 = vmatpush1.msra.mxu0 0.0
        %3933 = vmatprep.subr.mxu0 0.0
        %3934 = vmatpush1.msra.mxu0 0.0
        %3935 = vmatprep.subr.mxu0 0.0
        %3936 = vmatpush1.msra.mxu0 0.0
        %3937 = vmatprep.subr.mxu0 0.0
        %3938 = vmatpush1.msra.mxu0 0.0
        %3939 = vmatprep.subr.mxu0 0.0
        %3940 = vmatpush1.msra.mxu0 0.0
        %3941 = vmatprep.subr.mxu0 0.0
        %3942 = vmatpush1.msra.mxu0 0.0
        %3943 = vmatprep.subr.mxu0 0.0
        %3944 = vmatpush1.msra.mxu0 0.0
        %3945 = vmatprep.subr.mxu0 0.0
        %3946 = vmatpush1.msra.mxu0 0.0
        %3947 = vmatprep.subr.mxu0 0.0
        %3948 = vmatpush1.msra.mxu0 0.0
        %3949 = vmatprep.subr.mxu0 0.0
        %3950 = vmatpush1.msra.mxu0 0.0
        %3951 = vmatprep.subr.mxu0 0.0
        %3952 = vmatpush1.msra.mxu0 0.0
        %3953 = vmatprep.subr.mxu0 0.0
        %3954 = vmatpush1.msra.mxu0 0.0
        %3955 = vmatprep.subr.mxu0 0.0
        %3956 = vmatpush1.msra.mxu0 0.0
        %3957 = vmatprep.mubr.f32.mxu0 0.0
        %v3958 = vand.u32 %v3767, 4294901760
        %3959 = vmatmul.mubr.f32.gmra.mrb[0].mxu0 %v3958
        %v3960 = vpop.f32.mrb[0].mxu0
        %v3961 = vadd.f32 %v3849, %v3960
        %v3962 = vpop.f32.mrb[0].mxu0
        %v3963 = vadd.f32 %v3851, %v3962
        %3964 = vdwg.mxu0
        %v3965 = vand.u32 %v3750, 4294901760
        %v3966 = vsub.f32 %v3750, %v3965
        %3967 = vmatprep.subr.mxu0 %v3966
        %v3968 = vand.u32 %v3749, 4294901760
        %v3969 = vsub.f32 %v3749, %v3968
        %3970 = vmatpush1.msra.mxu0 %v3969
        %v3971 = vand.u32 %v3752, 4294901760
        %v3972 = vsub.f32 %v3752, %v3971
        %3973 = vmatprep.subr.mxu0 %v3972
        %v3974 = vand.u32 %v3751, 4294901760
        %v3975 = vsub.f32 %v3751, %v3974
        %3976 = vmatpush1.msra.mxu0 %v3975
        %v3977 = vand.u32 %v3754, 4294901760
        %v3978 = vsub.f32 %v3754, %v3977
        %3979 = vmatprep.subr.mxu0 %v3978
        %v3980 = vand.u32 %v3753, 4294901760
        %v3981 = vsub.f32 %v3753, %v3980
        %3982 = vmatpush1.msra.mxu0 %v3981
        %v3983 = vand.u32 %v3756, 4294901760
        %v3984 = vsub.f32 %v3756, %v3983
        %3985 = vmatprep.subr.mxu0 %v3984
        %v3986 = vand.u32 %v3755, 4294901760
        %v3987 = vsub.f32 %v3755, %v3986
        %3988 = vmatpush1.msra.mxu0 %v3987
        %3989 = vmatprep.subr.mxu0 0.0
        %3990 = vmatpush1.msra.mxu0 0.0
        %3991 = vmatprep.subr.mxu0 0.0
        %3992 = vmatpush1.msra.mxu0 0.0
        %3993 = vmatprep.subr.mxu0 0.0
        %3994 = vmatpush1.msra.mxu0 0.0
        %3995 = vmatprep.subr.mxu0 0.0
        %3996 = vmatpush1.msra.mxu0 0.0
        %3997 = vmatprep.subr.mxu0 0.0
        %3998 = vmatpush1.msra.mxu0 0.0
        %3999 = vmatprep.subr.mxu0 0.0
        %4000 = vmatpush1.msra.mxu0 0.0
        %4001 = vmatprep.subr.mxu0 0.0
        %4002 = vmatpush1.msra.mxu0 0.0
        %4003 = vmatprep.subr.mxu0 0.0
        %4004 = vmatpush1.msra.mxu0 0.0
        %4005 = vmatprep.subr.mxu0 0.0
        %4006 = vmatpush1.msra.mxu0 0.0
        %4007 = vmatprep.subr.mxu0 0.0
        %4008 = vmatpush1.msra.mxu0 0.0
        %4009 = vmatprep.subr.mxu0 0.0
        %4010 = vmatpush1.msra.mxu0 0.0
        %4011 = vmatprep.subr.mxu0 0.0
        %4012 = vmatpush1.msra.mxu0 0.0
        %4013 = vmatprep.subr.mxu0 0.0
        %4014 = vmatpush1.msra.mxu0 0.0
        %4015 = vmatprep.subr.mxu0 0.0
        %4016 = vmatpush1.msra.mxu0 0.0
        %4017 = vmatprep.subr.mxu0 0.0
        %4018 = vmatpush1.msra.mxu0 0.0
        %4019 = vmatprep.subr.mxu0 0.0
        %4020 = vmatpush1.msra.mxu0 0.0
        %4021 = vmatprep.subr.mxu0 0.0
        %4022 = vmatpush1.msra.mxu0 0.0
        %4023 = vmatprep.subr.mxu0 0.0
        %4024 = vmatpush1.msra.mxu0 0.0
        %4025 = vmatprep.subr.mxu0 0.0
        %4026 = vmatpush1.msra.mxu0 0.0
        %4027 = vmatprep.subr.mxu0 0.0
        %4028 = vmatpush1.msra.mxu0 0.0
        %4029 = vmatprep.subr.mxu0 0.0
        %4030 = vmatpush1.msra.mxu0 0.0
        %4031 = vmatprep.subr.mxu0 0.0
        %4032 = vmatpush1.msra.mxu0 0.0
        %4033 = vmatprep.subr.mxu0 0.0
        %4034 = vmatpush1.msra.mxu0 0.0
        %4035 = vmatprep.subr.mxu0 0.0
        %4036 = vmatpush1.msra.mxu0 0.0
        %4037 = vmatprep.subr.mxu0 0.0
        %4038 = vmatpush1.msra.mxu0 0.0
        %4039 = vmatprep.subr.mxu0 0.0
        %4040 = vmatpush1.msra.mxu0 0.0
        %4041 = vmatprep.subr.mxu0 0.0
        %4042 = vmatpush1.msra.mxu0 0.0
        %4043 = vmatprep.subr.mxu0 0.0
        %4044 = vmatpush1.msra.mxu0 0.0
        %4045 = vmatprep.mubr.f32.mxu0 0.0
        %v4046 = vand.u32 %v3767, 4294901760
        %v4047 = vsub.f32 %v3767, %v4046
        %4048 = vmatmul.mubr.f32.gmra.mrb[0].mxu0 %v4047
        %v4049 = vpop.f32.mrb[0].mxu0
        %v4050 = vadd.f32 %v3961, %v4049
        %v4051 = vpop.f32.mrb[0].mxu0
        %v4052 = vadd.f32 %v3963, %v4051
        %4053 = vdwg.mxu0
        %v4054 = vand.u32 %v3750, 4294901760
        %4055 = vmatprep.subr.mxu0 %v4054
        %v4056 = vand.u32 %v3749, 4294901760
        %4057 = vmatpush1.msra.mxu0 %v4056
        %v4058 = vand.u32 %v3752, 4294901760
        %4059 = vmatprep.subr.mxu0 %v4058
        %v4060 = vand.u32 %v3751, 4294901760
        %4061 = vmatpush1.msra.mxu0 %v4060
        %v4062 = vand.u32 %v3754, 4294901760
        %4063 = vmatprep.subr.mxu0 %v4062
        %v4064 = vand.u32 %v3753, 4294901760
        %4065 = vmatpush1.msra.mxu0 %v4064
        %v4066 = vand.u32 %v3756, 4294901760
        %4067 = vmatprep.subr.mxu0 %v4066
        %v4068 = vand.u32 %v3755, 4294901760
        %4069 = vmatpush1.msra.mxu0 %v4068
        %4070 = vmatprep.subr.mxu0 0.0
        %4071 = vmatpush1.msra.mxu0 0.0
        %4072 = vmatprep.subr.mxu0 0.0
        %4073 = vmatpush1.msra.mxu0 0.0
        %4074 = vmatprep.subr.mxu0 0.0
        %4075 = vmatpush1.msra.mxu0 0.0
        %4076 = vmatprep.subr.mxu0 0.0
        %4077 = vmatpush1.msra.mxu0 0.0
        %4078 = vmatprep.subr.mxu0 0.0
        %4079 = vmatpush1.msra.mxu0 0.0
        %4080 = vmatprep.subr.mxu0 0.0
        %4081 = vmatpush1.msra.mxu0 0.0
        %4082 = vmatprep.subr.mxu0 0.0
        %4083 = vmatpush1.msra.mxu0 0.0
        %4084 = vmatprep.subr.mxu0 0.0
        %4085 = vmatpush1.msra.mxu0 0.0
        %4086 = vmatprep.subr.mxu0 0.0
        %4087 = vmatpush1.msra.mxu0 0.0
        %4088 = vmatprep.subr.mxu0 0.0
        %4089 = vmatpush1.msra.mxu0 0.0
        %4090 = vmatprep.subr.mxu0 0.0
        %4091 = vmatpush1.msra.mxu0 0.0
        %4092 = vmatprep.subr.mxu0 0.0
        %4093 = vmatpush1.msra.mxu0 0.0
        %4094 = vmatprep.subr.mxu0 0.0
        %4095 = vmatpush1.msra.mxu0 0.0
        %4096 = vmatprep.subr.mxu0 0.0
        %4097 = vmatpush1.msra.mxu0 0.0
        %4098 = vmatprep.subr.mxu0 0.0
        %4099 = vmatpush1.msra.mxu0 0.0
        %4100 = vmatprep.subr.mxu0 0.0
        %4101 = vmatpush1.msra.mxu0 0.0
        %4102 = vmatprep.subr.mxu0 0.0
        %4103 = vmatpush1.msra.mxu0 0.0
        %4104 = vmatprep.subr.mxu0 0.0
        %4105 = vmatpush1.msra.mxu0 0.0
        %4106 = vmatprep.subr.mxu0 0.0
        %4107 = vmatpush1.msra.mxu0 0.0
        %4108 = vmatprep.subr.mxu0 0.0
        %4109 = vmatpush1.msra.mxu0 0.0
        %4110 = vmatprep.subr.mxu0 0.0
        %4111 = vmatpush1.msra.mxu0 0.0
        %4112 = vmatprep.subr.mxu0 0.0
        %4113 = vmatpush1.msra.mxu0 0.0
        %4114 = vmatprep.subr.mxu0 0.0
        %4115 = vmatpush1.msra.mxu0 0.0
        %4116 = vmatprep.subr.mxu0 0.0
        %4117 = vmatpush1.msra.mxu0 0.0
        %4118 = vmatprep.subr.mxu0 0.0
        %4119 = vmatpush1.msra.mxu0 0.0
        %4120 = vmatprep.subr.mxu0 0.0
        %4121 = vmatpush1.msra.mxu0 0.0
        %4122 = vmatprep.subr.mxu0 0.0
        %4123 = vmatpush1.msra.mxu0 0.0
        %4124 = vmatprep.subr.mxu0 0.0
        %4125 = vmatpush1.msra.mxu0 0.0
        %4126 = vmatprep.mubr.f32.mxu0 0.0
        %v4127 = vand.u32 %v3767, 4294901760
        %v4128 = vsub.f32 %v3767, %v4127
        %v4129 = vand.u32 %v4128, 4294901760
        %4130 = vmatmul.mubr.f32.gmra.mrb[0].mxu0 %v4129
        %v4131 = vpop.f32.mrb[0].mxu0
        %v4132 = vadd.f32 %v4050, %v4131
        %v4133 = vpop.f32.mrb[0].mxu0
        %v4134 = vadd.f32 %v4052, %v4133
        %4135 = vdwg.mxu0
        %v4136 = vand.u32 %v3750, 4294901760
        %v4137 = vsub.f32 %v3750, %v4136
        %v4138 = vand.u32 %v4137, 4294901760
        %4139 = vmatprep.subr.mxu0 %v4138
        %v4140 = vand.u32 %v3749, 4294901760
        %v4141 = vsub.f32 %v3749, %v4140
        %v4142 = vand.u32 %v4141, 4294901760
        %4143 = vmatpush1.msra.mxu0 %v4142
        %v4144 = vand.u32 %v3752, 4294901760
        %v4145 = vsub.f32 %v3752, %v4144
        %v4146 = vand.u32 %v4145, 4294901760
        %4147 = vmatprep.subr.mxu0 %v4146
        %v4148 = vand.u32 %v3751, 4294901760
        %v4149 = vsub.f32 %v3751, %v4148
        %v4150 = vand.u32 %v4149, 4294901760
        %4151 = vmatpush1.msra.mxu0 %v4150
        %v4152 = vand.u32 %v3754, 4294901760
        %v4153 = vsub.f32 %v3754, %v4152
        %v4154 = vand.u32 %v4153, 4294901760
        %4155 = vmatprep.subr.mxu0 %v4154
        %v4156 = vand.u32 %v3753, 4294901760
        %v4157 = vsub.f32 %v3753, %v4156
        %v4158 = vand.u32 %v4157, 4294901760
        %4159 = vmatpush1.msra.mxu0 %v4158
        %v4160 = vand.u32 %v3756, 4294901760
        %v4161 = vsub.f32 %v3756, %v4160
        %v4162 = vand.u32 %v4161, 4294901760
        %4163 = vmatprep.subr.mxu0 %v4162
        %v4164 = vand.u32 %v3755, 4294901760
        %v4165 = vsub.f32 %v3755, %v4164
        %v4166 = vand.u32 %v4165, 4294901760
        %4167 = vmatpush1.msra.mxu0 %v4166
        %4168 = vmatprep.subr.mxu0 0.0
        %4169 = vmatpush1.msra.mxu0 0.0
        %4170 = vmatprep.subr.mxu0 0.0
        %4171 = vmatpush1.msra.mxu0 0.0
        %4172 = vmatprep.subr.mxu0 0.0
        %4173 = vmatpush1.msra.mxu0 0.0
        %4174 = vmatprep.subr.mxu0 0.0
        %4175 = vmatpush1.msra.mxu0 0.0
        %4176 = vmatprep.subr.mxu0 0.0
        %4177 = vmatpush1.msra.mxu0 0.0
        %4178 = vmatprep.subr.mxu0 0.0
        %4179 = vmatpush1.msra.mxu0 0.0
        %4180 = vmatprep.subr.mxu0 0.0
        %4181 = vmatpush1.msra.mxu0 0.0
        %4182 = vmatprep.subr.mxu0 0.0
        %4183 = vmatpush1.msra.mxu0 0.0
        %4184 = vmatprep.subr.mxu0 0.0
        %4185 = vmatpush1.msra.mxu0 0.0
        %4186 = vmatprep.subr.mxu0 0.0
        %4187 = vmatpush1.msra.mxu0 0.0
        %4188 = vmatprep.subr.mxu0 0.0
        %4189 = vmatpush1.msra.mxu0 0.0
        %4190 = vmatprep.subr.mxu0 0.0
        %4191 = vmatpush1.msra.mxu0 0.0
        %4192 = vmatprep.subr.mxu0 0.0
        %4193 = vmatpush1.msra.mxu0 0.0
        %4194 = vmatprep.subr.mxu0 0.0
        %4195 = vmatpush1.msra.mxu0 0.0
        %4196 = vmatprep.subr.mxu0 0.0
        %4197 = vmatpush1.msra.mxu0 0.0
        %4198 = vmatprep.subr.mxu0 0.0
        %4199 = vmatpush1.msra.mxu0 0.0
        %4200 = vmatprep.subr.mxu0 0.0
        %4201 = vmatpush1.msra.mxu0 0.0
        %4202 = vmatprep.subr.mxu0 0.0
        %4203 = vmatpush1.msra.mxu0 0.0
        %4204 = vmatprep.subr.mxu0 0.0
        %4205 = vmatpush1.msra.mxu0 0.0
        %4206 = vmatprep.subr.mxu0 0.0
        %4207 = vmatpush1.msra.mxu0 0.0
        %4208 = vmatprep.subr.mxu0 0.0
        %4209 = vmatpush1.msra.mxu0 0.0
        %4210 = vmatprep.subr.mxu0 0.0
        %4211 = vmatpush1.msra.mxu0 0.0
        %4212 = vmatprep.subr.mxu0 0.0
        %4213 = vmatpush1.msra.mxu0 0.0
        %4214 = vmatprep.subr.mxu0 0.0
        %4215 = vmatpush1.msra.mxu0 0.0
        %4216 = vmatprep.subr.mxu0 0.0
        %4217 = vmatpush1.msra.mxu0 0.0
        %4218 = vmatprep.subr.mxu0 0.0
        %4219 = vmatpush1.msra.mxu0 0.0
        %4220 = vmatprep.subr.mxu0 0.0
        %4221 = vmatpush1.msra.mxu0 0.0
        %4222 = vmatprep.subr.mxu0 0.0
        %4223 = vmatpush1.msra.mxu0 0.0
        %4224 = vmatprep.mubr.f32.mxu0 0.0
        %v4225 = vand.u32 %v3767, 4294901760
        %4226 = vmatmul.mubr.f32.gmra.mrb[0].mxu0 %v4225
        %v4227 = vpop.f32.mrb[0].mxu0
        %v4228 = vadd.f32 %v4132, %v4227
        %v4229 = vpop.f32.mrb[0].mxu0
        %v4230 = vadd.f32 %v4134, %v4229
        %4231 = vdwg.mxu0
        %v4232 = vand.u32 %v3750, 4294901760
        %4233 = vmatprep.subr.mxu0 %v4232
        %v4234 = vand.u32 %v3749, 4294901760
        %4235 = vmatpush1.msra.mxu0 %v4234
        %v4236 = vand.u32 %v3752, 4294901760
        %4237 = vmatprep.subr.mxu0 %v4236
        %v4238 = vand.u32 %v3751, 4294901760
        %4239 = vmatpush1.msra.mxu0 %v4238
        %v4240 = vand.u32 %v3754, 4294901760
        %4241 = vmatprep.subr.mxu0 %v4240
        %v4242 = vand.u32 %v3753, 4294901760
        %4243 = vmatpush1.msra.mxu0 %v4242
        %v4244 = vand.u32 %v3756, 4294901760
        %4245 = vmatprep.subr.mxu0 %v4244
        %v4246 = vand.u32 %v3755, 4294901760
        %4247 = vmatpush1.msra.mxu0 %v4246
        %4248 = vmatprep.subr.mxu0 0.0
        %4249 = vmatpush1.msra.mxu0 0.0
        %4250 = vmatprep.subr.mxu0 0.0
        %4251 = vmatpush1.msra.mxu0 0.0
        %4252 = vmatprep.subr.mxu0 0.0
        %4253 = vmatpush1.msra.mxu0 0.0
        %4254 = vmatprep.subr.mxu0 0.0
        %4255 = vmatpush1.msra.mxu0 0.0
        %4256 = vmatprep.subr.mxu0 0.0
        %4257 = vmatpush1.msra.mxu0 0.0
        %4258 = vmatprep.subr.mxu0 0.0
        %4259 = vmatpush1.msra.mxu0 0.0
        %4260 = vmatprep.subr.mxu0 0.0
        %4261 = vmatpush1.msra.mxu0 0.0
        %4262 = vmatprep.subr.mxu0 0.0
        %4263 = vmatpush1.msra.mxu0 0.0
        %4264 = vmatprep.subr.mxu0 0.0
        %4265 = vmatpush1.msra.mxu0 0.0
        %4266 = vmatprep.subr.mxu0 0.0
        %4267 = vmatpush1.msra.mxu0 0.0
        %4268 = vmatprep.subr.mxu0 0.0
        %4269 = vmatpush1.msra.mxu0 0.0
        %4270 = vmatprep.subr.mxu0 0.0
        %4271 = vmatpush1.msra.mxu0 0.0
        %4272 = vmatprep.subr.mxu0 0.0
        %4273 = vmatpush1.msra.mxu0 0.0
        %4274 = vmatprep.subr.mxu0 0.0
        %4275 = vmatpush1.msra.mxu0 0.0
        %4276 = vmatprep.subr.mxu0 0.0
        %4277 = vmatpush1.msra.mxu0 0.0
        %4278 = vmatprep.subr.mxu0 0.0
        %4279 = vmatpush1.msra.mxu0 0.0
        %4280 = vmatprep.subr.mxu0 0.0
        %4281 = vmatpush1.msra.mxu0 0.0
        %4282 = vmatprep.subr.mxu0 0.0
        %4283 = vmatpush1.msra.mxu0 0.0
        %4284 = vmatprep.subr.mxu0 0.0
        %4285 = vmatpush1.msra.mxu0 0.0
        %4286 = vmatprep.subr.mxu0 0.0
        %4287 = vmatpush1.msra.mxu0 0.0
        %4288 = vmatprep.subr.mxu0 0.0
        %4289 = vmatpush1.msra.mxu0 0.0
        %4290 = vmatprep.subr.mxu0 0.0
        %4291 = vmatpush1.msra.mxu0 0.0
        %4292 = vmatprep.subr.mxu0 0.0
        %4293 = vmatpush1.msra.mxu0 0.0
        %4294 = vmatprep.subr.mxu0 0.0
        %4295 = vmatpush1.msra.mxu0 0.0
        %4296 = vmatprep.subr.mxu0 0.0
        %4297 = vmatpush1.msra.mxu0 0.0
        %4298 = vmatprep.subr.mxu0 0.0
        %4299 = vmatpush1.msra.mxu0 0.0
        %4300 = vmatprep.subr.mxu0 0.0
        %4301 = vmatpush1.msra.mxu0 0.0
        %4302 = vmatprep.subr.mxu0 0.0
        %4303 = vmatpush1.msra.mxu0 0.0
        %4304 = vmatprep.mubr.f32.mxu0 0.0
        %v4305 = vand.u32 %v3767, 4294901760
        %4306 = vmatmul.mubr.f32.gmra.mrb[0].mxu0 %v4305
        %v4307 = vpop.f32.mrb[0].mxu0
        %v4308 = vadd.f32 %v4228, %v4307
        %v4309 = vpop.f32.mrb[0].mxu0
        %v4310 = vadd.f32 %v4230, %v4309
        %4311 = vdwg.mxu0
        %v4312 = vsel %vm989, %v4308, 0.0
        %v4313 = vsel %vm989, %v4310, 0.0
        %v4314 = vadd.f32 %v4312, %v4313
        %4315 = vadd.xlane.f32.xlu0 %v4314
        %v4316 = vpop.xlane.xlu0 %4315
        %v4317 = vmul.f32 %v4316, %v995
        %v4318 = vmul.f32 %v4308, %v4308
        %v4319 = vmul.f32 %v4310, %v4310
        %v4320 = vsel %vm989, %v4318, 0.0
        %v4321 = vsel %vm989, %v4319, 0.0
        %v4322 = vadd.f32 %v4320, %v4321
        %4323 = vadd.xlane.f32.xlu0 %v4322
        %v4324 = vpop.xlane.xlu0 %4323
        %v4325 = vmul.f32 %v4324, %v995
        %v4326 = vmul.f32 %v4317, %v4317
        %v4327 = vsub.f32 %v4325, %v4326
        %v4328 = vsub.f32 %v4308, %v4317
        %v4329 = vsub.f32 %v4310, %v4317
        %v4330 = vadd.f32 %v4327, 1e-05
        %v4331 = vrsqrt.pop %v4330
        %v4332 = vmul.f32 %v4328, %v4331
        %v4333 = vmul.f32 %v4329, %v4331
        %4334 = vset.pattern.permute.xlu0 1
        %4335 = vperm.xlu0 %4334, %v3190
        %v4336 = vpop.permute.xlu0 %4335
        %v4338 = vmul.f32 %v4332, %v4336
        %v4339 = vmul.f32 %v4333, %v4336
        %4340 = vset.pattern.permute.xlu0 2
        %4341 = vperm.xlu0 %4340, %v3190
        %v4342 = vpop.permute.xlu0 %4341
        %v4344 = vadd.f32 %v4338, %v4342
        %v4345 = vadd.f32 %v4339, %v4342
        %vm4346 = vcmp.ge.f32.partialorder %v4344, 0.0
        %vm4347 = vcmp.ge.f32.partialorder %v4345, 0.0
        %4348 = vset.pattern.permute.xlu0 3
        %4349 = vperm.xlu0 %4348, %v3190
        %v4350 = vpop.permute.xlu0 %4349
        %v4352 = vmul.f32 %v4350, %v4344
        %v4353 = vmul.f32 %v4350, %v4345
        %v4354 = vsel %vm4346, %v4344, %v4352
        %v4355 = vsel %vm4347, %v4345, %v4353
        %v4358 = vcombine.low %v4354, %v4355
        %4360 = vst [vmem:[%s190] sm:$0xff] %v4358
        %s4361 = sand.u32 %s115, 1
        %s4362 = scalar_lea.sflag [#allocation4], %s4361
        %s4363 = sand.u32 %s115, 1
        %s4364 = smul.addr %s4363, 8
        %s4365 = scalar_lea.vmem [#allocation3], %s4364
        // Predicated region
        $region37: #{tpu_custom_call.1} parent=35 // pred_check
          %p4366 = pneg %p125
        $region38: #{tpu_custom_call.1} parent=35 // pred_check_branch
          %4368 = sbr.rel (%p4366) target = $region40
        $region39: #{tpu_custom_call.1} parent=35 // pred_region
          %s4370 = ssub.s32 128, 128
          %4371 = vsyncadd %s4362, %s4370
          %s4372 = smul.addr %s18, 2
          %s4373 = smul.addr %s4372, 64
          %s4374 = scalar_lea.hbm %s4, %s4373
          %s4376 = sshll.u32 %s4365, 4
          %s4377 = int_to_ptr.vmem [resolvable:$true] %s4376
          %4379 = dma.vmem_to_hbm [thread:$0]  %s4377, 128, %s4374, %s4362
        $region40: #{tpu_custom_call.1} parent=35 // pred_fallthru
          _
      $region36: #{tpu_custom_call.1} parent=5 // pred_fallthru
        _
      %p4380 = scmp.le.s32.totalorder 2, %s13
      // Predicated region
      $region41: #{tpu_custom_call.1} parent=5 // pred_check
        %p4381 = pneg %p4380
      $region42: #{tpu_custom_call.1} parent=5 // pred_check_branch
        %4383 = sbr.rel (%p4381) target = $region44
      $region43: #{tpu_custom_call.1} parent=5 // pred_region
        %s4384 = ssub.s32 %s13, 2
        // Predicated region
        $region45: #{tpu_custom_call.1} parent=43 // pred_check
          %p4385 = pneg %p131
        $region46: #{tpu_custom_call.1} parent=43 // pred_check_branch
          %4387 = sbr.rel (%p4385) target = $region48
        $region47: #{tpu_custom_call.1} parent=43 // pred_region
          %s4388 = sand.u32 %s116, 1
          %s4389 = scalar_lea.sflag [#allocation4], %s4388
          %s4390 = sand.u32 %s116, 1
          %s4391 = smul.addr %s4390, 8
          %s4392 = scalar_lea.vmem [#allocation3], %s4391
          %4393 = dma.done %s4389, 128
        $region48: #{tpu_custom_call.1} parent=43 // pred_fallthru
          _
      $region44: #{tpu_custom_call.1} parent=5 // pred_fallthru
        _
    $region6: #{tpu_custom_call.1} parent=1 // loop_footer
      %s17 = sadd.s32 1, %s13
    $region7: #{tpu_custom_call.1} parent=1 // loop_footer_branch
      %12 = sbr.rel target = $region3
    $region8: #{tpu_custom_call.1} parent=1 // loop_exit
      _
    %4394 = vsyncpa [#allocation4], 1
    %s4395 = scalar_lea.sflag [#allocation4], 1
    %4396 = vsyncpa %s4395, 1

</llo_original>
